<compile_context>
chip_gen: v7x
topology: tpu7x:2x2x1
jax: 0.10.0
libtpu: 0.0.40
codegen_flags: <defaults>
</compile_context>

<pallas_src>
import math

import jax
import jax.numpy as jnp
from jax.experimental import pallas as pl
from jax.experimental.pallas import tpu as pltpu

# ----------------------------- configuration -------------------------------
BATCH = 2
C = 3              # input channels (RGB, like ViT-B/16)
IMG = 32           # image size (real model: 224)
PATCH = 16         # patch size (matches ViT-B/16)
HIDDEN = 64        # hidden dim (real model: 768)
HEADS = 4          # attention heads (real model: 12)
HEAD_DIM = HIDDEN // HEADS
MLP_DIM = 128      # MLP dim (real model: 3072)
LAYERS = 2         # encoder layers (real model: 12)
NUM_CLASSES = 12   # from DirectionalSoundViT(num_classes=12)
HEAD_PAD = 128     # lane-dense padded class axis (sliced to 12 in wrapper)
N_PATCH = (IMG // PATCH) ** 2
SEQ = N_PATCH + 1  # +1 class token
LN_EPS = 1e-6      # torchvision ViT uses LayerNorm(eps=1e-6)

_VMEM_LIMIT = 32 * 1024 * 1024
_PAR = pltpu.CompilerParams(dimension_semantics=("parallel",),
                            vmem_limit_bytes=_VMEM_LIMIT)
_ARB = pltpu.CompilerParams(dimension_semantics=("arbitrary",),
                            vmem_limit_bytes=_VMEM_LIMIT)


# ------------------------------ BlockSpec helpers ---------------------------
def _whole_spec(shape):
    """Full-array block, same block for every grid step (rank-1 grid)."""
    nd = len(shape)
    return pl.BlockSpec(tuple(shape), lambda b, _n=nd: (0,) * _n)


def _batch_spec(shape):
    """(1, *rest) block indexed by the batch grid axis (rank-1 grid)."""
    nd = len(shape)
    return pl.BlockSpec((1,) + tuple(shape[1:]),
                        lambda b, _n=nd: (b,) + (0,) * (_n - 1))


def _layernorm_f32(x, g, b):
    mu = jnp.mean(x, axis=-1, keepdims=True)
    var = jnp.mean(jnp.square(x - mu), axis=-1, keepdims=True)
    return (x - mu) * jax.lax.rsqrt(var + LN_EPS) * g + b


# ------------------------------ fused kernels -------------------------------
def patch_embed(patches, conv_w, addvec):
    """tokens = patches @ conv_w + (conv_b + pos_embed[1:]).

    patches: (N, P, KP) f32, conv_w: (KP, HIDDEN) bf16, addvec: (P, HIDDEN) f32.
    """
    N, P, KP = patches.shape

    def kernel(p_ref, w_ref, a_ref, o_ref):
        t = jnp.dot(p_ref[0].astype(jnp.bfloat16), w_ref[...],
                    preferred_element_type=jnp.float32)
        o_ref[0] = (t + a_ref[...]).astype(o_ref.dtype)

    return pl.pallas_call(
        kernel,
        grid=(N,),
        in_specs=[_batch_spec((N, P, KP)),
                  _whole_spec(conv_w.shape),
                  _whole_spec(addvec.shape)],
        out_specs=_batch_spec((N, P, HIDDEN)),
        out_shape=jax.ShapeDtypeStruct((N, P, HIDDEN), jnp.float32),
        compiler_params=_PAR,
    )(patches, conv_w, addvec)


def attn_block(h, lyr):
    """Fused pre-LN attention block: LN1 + QKV + SDPA + out-proj + residual.

    h: (N, S, HIDDEN) f32 residual stream (aliased with the output).
    Per-head weight layout avoids every reshape/transpose of activations.
    """
    N, S, D = h.shape
    scale = 1.0 / math.sqrt(HEAD_DIM)

    def kernel(h_ref, g_ref, b_ref, wq_ref, wk_ref, wv_ref,
               bq_ref, bk_ref, bv_ref, wo_ref, bo_ref, o_ref):
        x = h_ref[0].astype(jnp.float32)                      # (S, D)
        y = _layernorm_f32(x, g_ref[...], b_ref[...]).astype(jnp.bfloat16)

        acc = jnp.zeros((S, D), jnp.float32)
        for hh in range(HEADS):                               # static unroll
            q = jnp.dot(y, wq_ref[hh], preferred_element_type=jnp.float32) + bq_ref[hh]
            k = jnp.dot(y, wk_ref[hh], preferred_element_type=jnp.float32) + bk_ref[hh]
            v = jnp.dot(y, wv_ref[hh], preferred_element_type=jnp.float32) + bv_ref[hh]
            # scores = q @ k^T * scale (contract head dims, no transpose op)
            s = jax.lax.dot_general(q, k, (((1,), (1,)), ((), ())),
                                    preferred_element_type=jnp.float32) * scale
            s = s - jnp.max(s, axis=-1, keepdims=True)        # softmax in f32
            p = jnp.exp(s)
            p = p * pl.reciprocal(jnp.sum(p, axis=-1, keepdims=True), approx=True)
            o = jnp.dot(p.astype(jnp.bfloat16), v.astype(jnp.bfloat16),
                        preferred_element_type=jnp.float32)   # (S, Dh)
            # per-head out-projection accumulated straight into (S, HIDDEN)
            acc = acc + jnp.dot(o.astype(jnp.bfloat16), wo_ref[hh],
                                preferred_element_type=jnp.float32)

        o_ref[0] = (acc + bo_ref[...] + x).astype(o_ref.dtype)

    args = (h, lyr["ln1_g"], lyr["ln1_b"], lyr["wq"], lyr["wk"], lyr["wv"],
            lyr["bq"], lyr["bk"], lyr["bv"], lyr["wo"], lyr["bo"])
    return pl.pallas_call(
        kernel,
        grid=(N,),
        in_specs=[_batch_spec(h.shape)] + [_whole_spec(a.shape) for a in args[1:]],
        out_specs=_batch_spec(h.shape),
        out_shape=jax.ShapeDtypeStruct(h.shape, h.dtype),
        input_output_aliases={0: 0},          # residual stream reuses its buffer
        compiler_params=_PAR,
    )(*args)


def mlp_block(h, lyr):
    """Fused pre-LN MLP block: LN2 + FC1 + GELU + FC2 + residual."""
    N, S, D = h.shape

    def kernel(h_ref, g_ref, b_ref, w1_ref, b1_ref, w2_ref, b2_ref, o_ref):
        x = h_ref[0].astype(jnp.float32)
        y = _layernorm_f32(x, g_ref[...], b_ref[...]).astype(jnp.bfloat16)
        a = jnp.dot(y, w1_ref[...], preferred_element_type=jnp.float32) + b1_ref[...]
        # exact (erf-based) GELU, matching torch.nn.GELU() default
        a = 0.5 * a * (1.0 + jax.lax.erf(a * 0.7071067811865476))
        out = jnp.dot(a.astype(jnp.bfloat16), w2_ref[...],
                      preferred_element_type=jnp.float32) + b2_ref[...]
        o_ref[0] = (out + x).astype(o_ref.dtype)

    args = (h, lyr["ln2_g"], lyr["ln2_b"], lyr["w1"], lyr["b1"],
            lyr["w2"], lyr["b2"])
    return pl.pallas_call(
        kernel,
        grid=(N,),
        in_specs=[_batch_spec(h.shape)] + [_whole_spec(a.shape) for a in args[1:]],
        out_specs=_batch_spec(h.shape),
        out_shape=jax.ShapeDtypeStruct(h.shape, h.dtype),
        input_output_aliases={0: 0},
        compiler_params=_PAR,
    )(*args)


def head_block(cls_tokens, ln_g, ln_b, head_w, head_b):
    """Fused final LayerNorm + classification head (lane-dense padded output)."""
    N, D = cls_tokens.shape

    def kernel(c_ref, g_ref, b_ref, w_ref, hb_ref, o_ref):
        x = c_ref[...].astype(jnp.float32)
        y = _layernorm_f32(x, g_ref[...], b_ref[...]).astype(jnp.bfloat16)
        o_ref[...] = (jnp.dot(y, w_ref[...], preferred_element_type=jnp.float32)
                      + hb_ref[...]).astype(o_ref.dtype)

    args = (cls_tokens, ln_g, ln_b, head_w, head_b)
    return pl.pallas_call(
        kernel,
        grid=(1,),
        in_specs=[_whole_spec(a.shape) for a in args],
        out_specs=_whole_spec((N, HEAD_PAD)),
        out_shape=jax.ShapeDtypeStruct((N, HEAD_PAD), jnp.float32),
        compiler_params=_ARB,
    )(*args)


# ------------------------------- ViT forward --------------------------------
def vit_forward(params, x):
    """Equivalent of DirectionalSoundViT.forward (eval mode). x: NCHW float32."""
    N, Cin, H, W = x.shape
    gh, gw = H // PATCH, W // PATCH
    P = gh * gw
    KP = Cin * PATCH * PATCH

    # conv_proj (kernel=stride=PATCH) as im2col (glue) + fused matmul kernel,
    # flatten order (c, ph, pw) matching the Conv2d weight reshape.
    patches = x.reshape(N, Cin, gh, PATCH, gw, PATCH).transpose(0, 2, 4, 1, 3, 5)
    patches = patches.reshape(N, P, KP)

    # conv bias + positional embedding for the patch rows, folded into the kernel
    addvec = params["conv_b"] + params["pos_embed"][0, 1:, :]          # (P, HIDDEN)
    tok = patch_embed(patches, params["conv_w"], addvec)               # (N, P, HIDDEN)

    # class-token row (+ its positional embedding); tiny glue concat
    row0 = jnp.broadcast_to(params["cls_token"] + params["pos_embed"][:, :1, :],
                            (N, 1, HIDDEN))
    h = jnp.concatenate([row0, tok], axis=1)                           # (N, S, HIDDEN)

    for lyr in params["layers"]:
        h = attn_block(h, lyr)
        h = mlp_block(h, lyr)

    cls_tokens = h[:, 0, :]                                            # (N, HIDDEN)
    logits_pad = head_block(cls_tokens, params["ln_g"], params["ln_b"],
                            params["head_w"], params["head_b"])        # (N, HEAD_PAD)
    return logits_pad[:, :NUM_CLASSES]                                 # (N, 12)


# ----------------------------- parameter setup ------------------------------
def init_params(key):
    """Generate PyTorch-convention weights, then convert ONCE to kernel layouts:
    pre-transposed (K, N) matmul weights in bf16, attention weights split
    per-head, classifier weights padded to a 128-wide lane-dense class axis."""

    def nrm(k, shape, scale=0.02):
        return scale * jax.random.normal(k, shape, dtype=jnp.float32)

    keys = jax.random.split(key, 6 + LAYERS)

    conv_w = nrm(keys[0], (HIDDEN, C, PATCH, PATCH))     # Conv2d (O, C, kH, kW)
    conv_b = nrm(keys[1], (HIDDEN,))
    cls_token = nrm(keys[2], (1, 1, HIDDEN))
    pos_embed = nrm(keys[3], (1, SEQ, HIDDEN))
    head_w = nrm(keys[4], (NUM_CLASSES, HIDDEN))         # Linear (out, in)
    head_b = nrm(keys[5], (NUM_CLASSES,))

    head_w_pad = jnp.zeros((HIDDEN, HEAD_PAD), jnp.float32)
    head_w_pad = head_w_pad.at[:, :NUM_CLASSES].set(head_w.T)
    head_b_pad = jnp.zeros((1, HEAD_PAD), jnp.float32)
    head_b_pad = head_b_pad.at[0, :NUM_CLASSES].set(head_b)

    params = {
        "conv_w": conv_w.reshape(HIDDEN, C * PATCH * PATCH).T.astype(jnp.bfloat16),
        "conv_b": conv_b.reshape(1, HIDDEN),
        "cls_token": cls_token,
        "pos_embed": pos_embed,
        "ln_g": jnp.ones((1, HIDDEN), jnp.float32),
        "ln_b": jnp.zeros((1, HIDDEN), jnp.float32),
        "head_w": head_w_pad.astype(jnp.bfloat16),
        "head_b": head_b_pad,
        "layers": [],
    }

    def per_head_w(w):   # (H_out, H_in) torch Linear -> (HEADS, H_in, HEAD_DIM)
        return w.reshape(HEADS, HEAD_DIM, HIDDEN).transpose(0, 2, 1).astype(jnp.bfloat16)

    def per_head_b(b):   # (H,) -> (HEADS, 1, HEAD_DIM)
        return b.reshape(HEADS, 1, HEAD_DIM)

    for l in range(LAYERS):
        lk = jax.random.split(keys[6 + l], 8)
        in_w = nrm(lk[0], (3 * HIDDEN, HIDDEN))          # in_proj_weight
        in_b = nrm(lk[1], (3 * HIDDEN,))
        out_w = nrm(lk[2], (HIDDEN, HIDDEN))             # out_proj
        out_b = nrm(lk[3], (HIDDEN,))
        fc1_w = nrm(lk[4], (MLP_DIM, HIDDEN))
        fc1_b = nrm(lk[5], (MLP_DIM,))
        fc2_w = nrm(lk[6], (HIDDEN, MLP_DIM))
        fc2_b = nrm(lk[7], (HIDDEN,))

        params["layers"].append({
            "ln1_g": jnp.ones((1, HIDDEN), jnp.float32),
            "ln1_b": jnp.zeros((1, HIDDEN), jnp.float32),
            "wq": per_head_w(in_w[:HIDDEN]),
            "wk": per_head_w(in_w[HIDDEN:2 * HIDDEN]),
            "wv": per_head_w(in_w[2 * HIDDEN:]),
            "bq": per_head_b(in_b[:HIDDEN]),
            "bk": per_head_b(in_b[HIDDEN:2 * HIDDEN]),
            "bv": per_head_b(in_b[2 * HIDDEN:]),
            # out_proj split per head: (HEADS, HEAD_DIM, HIDDEN)
            "wo": out_w.T.reshape(HEADS, HEAD_DIM, HIDDEN).astype(jnp.bfloat16),
            "bo": out_b.reshape(1, HIDDEN),
            "ln2_g": jnp.ones((1, HIDDEN), jnp.float32),
            "ln2_b": jnp.zeros((1, HIDDEN), jnp.float32),
            "w1": fc1_w.T.astype(jnp.bfloat16),
            "b1": fc1_b.reshape(1, MLP_DIM),
            "w2": fc2_w.T.astype(jnp.bfloat16),
            "b2": fc2_b.reshape(1, HIDDEN),
        })
    return params


# ----------------------------------- main ------------------------------------
if __name__ == "__main__":
    key = jax.random.PRNGKey(0)
    kx, kp = jax.random.split(key)
    x = jax.random.normal(kx, (BATCH, C, IMG, IMG), dtype=jnp.float32)  # NCHW
    params = init_params(kp)

    logits = jax.jit(vit_forward)(params, x)
    logits = jax.block_until_ready(logits)
    assert logits.shape == (BATCH, NUM_CLASSES)
    assert bool(jnp.all(jnp.isfinite(logits)))
    print("KERNEL_OK")
</pallas_src>

<mosaic_0001>
module attributes {stable_mosaic.version = 11 : i64} {
  func.func @kernel(%arg0: i32, %arg1: memref<1x4x768xf32, #tpu.memory_space<vmem>>, %arg2: memref<768x64xbf16, #tpu.memory_space<vmem>>, %arg3: memref<4x64xf32, #tpu.memory_space<vmem>>, %arg4: memref<1x4x64xf32, #tpu.memory_space<vmem>>) attributes {dimension_semantics = [#tpu.dimension_semantics<parallel>], iteration_bounds = array<i64: 2>, scalar_prefetch = 0 : i64, scratch_operands = 0 : i64, tpu.core_type = #tpu.core_type<tc>, window_params = [{transform_indices = @transform_0, window_bounds = array<i64: 1, 4, 768>}, {pipeline_mode = #tpu.pipeline_mode<synchronous>, transform_indices = @transform_1, window_bounds = array<i64: 768, 64>}, {pipeline_mode = #tpu.pipeline_mode<synchronous>, transform_indices = @transform_2, window_bounds = array<i64: 4, 64>}, {transform_indices = @transform_3, window_bounds = array<i64: 1, 4, 64>}]} {
    %c0 = arith.constant 0 : index
    %c0_0 = arith.constant 0 : index
    %c0_1 = arith.constant 0 : index
    %0 = vector.load %arg1[%c0, %c0_0, %c0_1] : memref<1x4x768xf32, #tpu.memory_space<vmem>>, vector<1x4x768xf32>
    %1 = vector.shape_cast %0 : vector<1x4x768xf32> to vector<4x768xf32>
    %2 = arith.truncf %1 : vector<4x768xf32> to vector<4x768xbf16>
    %c0_2 = arith.constant 0 : index
    %c0_3 = arith.constant 0 : index
    %3 = vector.load %arg2[%c0_2, %c0_3] : memref<768x64xbf16, #tpu.memory_space<vmem>>, vector<768x64xbf16>
    %cst = arith.constant dense<0.000000e+00> : vector<4x64xf32>
    %4 = tpu.matmul %2, %3, %cst {dimension_numbers = #tpu.dot_dimension_numbers<[1], [0], [0], [1], [0, 0, 1, 1], [], []>} : vector<4x768xbf16>, vector<768x64xbf16>, vector<4x64xf32> -> vector<4x64xf32>
    %c0_4 = arith.constant 0 : index
    %c0_5 = arith.constant 0 : index
    %5 = vector.load %arg3[%c0_4, %c0_5] : memref<4x64xf32, #tpu.memory_space<vmem>>, vector<4x64xf32>
    %6 = arith.addf %4, %5 : vector<4x64xf32>
    %c0_6 = arith.constant 0 : index
    %c0_7 = arith.constant 0 : index
    %c0_8 = arith.constant 0 : index
    %7 = vector.load %arg4[%c0_6, %c0_7, %c0_8] : memref<1x4x64xf32, #tpu.memory_space<vmem>>, vector<1x4x64xf32>
    %8 = vector.shape_cast %7 : vector<1x4x64xf32> to vector<4x64xf32>
    %9 = vector.shape_cast %6 : vector<4x64xf32> to vector<1x4x64xf32>
    tpu.vector_store %arg4[%c0_6, %c0_7, %c0_8], %9 {strides = array<i32>} : memref<1x4x64xf32, #tpu.memory_space<vmem>>, vector<1x4x64xf32>,
    return
  }
  func.func @transform_0(%arg0: i32) -> (i32, i32, i32) {
    %c0_i32 = arith.constant 0 : i32
    %c0_i32_0 = arith.constant 0 : i32
    %c0_i32_1 = arith.constant 0 : i32
    return %arg0, %c0_i32, %c0_i32_0 : i32, i32, i32
  }
  func.func @transform_1(%arg0: i32) -> (i32, i32) {
    %c0_i32 = arith.constant 0 : i32
    %c0_i32_0 = arith.constant 0 : i32
    %c0_i32_1 = arith.constant 0 : i32
    return %c0_i32, %c0_i32_0 : i32, i32
  }
  func.func @transform_2(%arg0: i32) -> (i32, i32) {
    %c0_i32 = arith.constant 0 : i32
    %c0_i32_0 = arith.constant 0 : i32
    %c0_i32_1 = arith.constant 0 : i32
    return %c0_i32, %c0_i32_0 : i32, i32
  }
  func.func @transform_3(%arg0: i32) -> (i32, i32, i32) {
    %c0_i32 = arith.constant 0 : i32
    %c0_i32_0 = arith.constant 0 : i32
    %c0_i32_1 = arith.constant 0 : i32
    return %arg0, %c0_i32, %c0_i32_0 : i32, i32, i32
  }
}

module attributes {stable_mosaic.version = 11 : i64} {
  func.func @kernel(%arg0: i32, %arg1: memref<1x5x64xf32, #tpu.memory_space<vmem>>, %arg2: memref<1x64xf32, #tpu.memory_space<vmem>>, %arg3: memref<1x64xf32, #tpu.memory_space<vmem>>, %arg4: memref<64x128xbf16, #tpu.memory_space<vmem>>, %arg5: memref<1x128xf32, #tpu.memory_space<vmem>>, %arg6: memref<128x64xbf16, #tpu.memory_space<vmem>>, %arg7: memref<1x64xf32, #tpu.memory_space<vmem>>, %arg8: memref<1x5x64xf32, #tpu.memory_space<vmem>>) attributes {dimension_semantics = [#tpu.dimension_semantics<parallel>], iteration_bounds = array<i64: 2>, scalar_prefetch = 0 : i64, scratch_operands = 0 : i64, tpu.core_type = #tpu.core_type<tc>, window_params = [{transform_indices = @transform_0, window_bounds = array<i64: 1, 5, 64>}, {pipeline_mode = #tpu.pipeline_mode<synchronous>, transform_indices = @transform_1, window_bounds = array<i64: 1, 64>}, {pipeline_mode = #tpu.pipeline_mode<synchronous>, transform_indices = @transform_2, window_bounds = array<i64: 1, 64>}, {pipeline_mode = #tpu.pipeline_mode<synchronous>, transform_indices = @transform_3, window_bounds = array<i64: 64, 128>}, {pipeline_mode = #tpu.pipeline_mode<synchronous>, transform_indices = @transform_4, window_bounds = array<i64: 1, 128>}, {pipeline_mode = #tpu.pipeline_mode<synchronous>, transform_indices = @transform_5, window_bounds = array<i64: 128, 64>}, {pipeline_mode = #tpu.pipeline_mode<synchronous>, transform_indices = @transform_6, window_bounds = array<i64: 1, 64>}, {transform_indices = @transform_7, window_bounds = array<i64: 1, 5, 64>}]} {
    %c0 = arith.constant 0 : index
    %c0_0 = arith.constant 0 : index
    %c0_1 = arith.constant 0 : index
    %0 = vector.load %arg1[%c0, %c0_0, %c0_1] : memref<1x5x64xf32, #tpu.memory_space<vmem>>, vector<1x5x64xf32>
    %1 = vector.shape_cast %0 : vector<1x5x64xf32> to vector<5x64xf32>
    %c0_2 = arith.constant 0 : index
    %c0_3 = arith.constant 0 : index
    %2 = vector.load %arg2[%c0_2, %c0_3] : memref<1x64xf32, #tpu.memory_space<vmem>>, vector<1x64xf32>
    %c0_4 = arith.constant 0 : index
    %c0_5 = arith.constant 0 : index
    %3 = vector.load %arg3[%c0_4, %c0_5] : memref<1x64xf32, #tpu.memory_space<vmem>>, vector<1x64xf32>
    %cst = arith.constant dense<0.000000e+00> : vector<5xf32>
    %4 = vector.multi_reduction <add>, %1, %cst [1] : vector<5x64xf32> to vector<5xf32>
    %5 = vector.shape_cast %4 : vector<5xf32> to vector<5x1xf32>
    %cst_6 = arith.constant 6.400000e+01 : f32
    %6 = vector.broadcast %cst_6 : f32 to vector<5x1xf32>
    %7 = arith.divf %5, %6 : vector<5x1xf32>
    %8 = vector.broadcast %7 : vector<5x1xf32> to vector<5x64xf32>
    %9 = arith.subf %1, %8 : vector<5x64xf32>
    %10 = arith.mulf %9, %9 : vector<5x64xf32>
    %cst_7 = arith.constant dense<0.000000e+00> : vector<5xf32>
    %11 = vector.multi_reduction <add>, %10, %cst_7 [1] : vector<5x64xf32> to vector<5xf32>
    %12 = vector.shape_cast %11 : vector<5xf32> to vector<5x1xf32>
    %cst_8 = arith.constant 6.400000e+01 : f32
    %13 = vector.broadcast %cst_8 : f32 to vector<5x1xf32>
    %14 = arith.divf %12, %13 : vector<5x1xf32>
    %15 = vector.broadcast %7 : vector<5x1xf32> to vector<5x64xf32>
    %16 = arith.subf %1, %15 : vector<5x64xf32>
    %cst_9 = arith.constant 9.99999997E-7 : f32
    %17 = vector.broadcast %cst_9 : f32 to vector<5x1xf32>
    %18 = arith.addf %14, %17 : vector<5x1xf32>
    %19 = math.rsqrt %18 : vector<5x1xf32>
    %20 = vector.broadcast %19 : vector<5x1xf32> to vector<5x64xf32>
    %21 = arith.mulf %16, %20 : vector<5x64xf32>
    %22 = vector.broadcast %2 : vector<1x64xf32> to vector<5x64xf32>
    %23 = arith.mulf %21, %22 : vector<5x64xf32>
    %24 = vector.broadcast %3 : vector<1x64xf32> to vector<5x64xf32>
    %25 = arith.addf %23, %24 : vector<5x64xf32>
    %26 = arith.truncf %25 : vector<5x64xf32> to vector<5x64xbf16>
    %c0_10 = arith.constant 0 : index
    %c0_11 = arith.constant 0 : index
    %27 = vector.load %arg4[%c0_10, %c0_11] : memref<64x128xbf16, #tpu.memory_space<vmem>>, vector<64x128xbf16>
    %cst_12 = arith.constant dense<0.000000e+00> : vector<5x128xf32>
    %28 = tpu.matmul %26, %27, %cst_12 {dimension_numbers = #tpu.dot_dimension_numbers<[1], [0], [0], [1], [0, 0, 1, 1], [], []>} : vector<5x64xbf16>, vector<64x128xbf16>, vector<5x128xf32> -> vector<5x128xf32>
    %c0_13 = arith.constant 0 : index
    %c0_14 = arith.constant 0 : index
    %29 = vector.load %arg5[%c0_13, %c0_14] : memref<1x128xf32, #tpu.memory_space<vmem>>, vector<1x128xf32>
    %30 = vector.broadcast %29 : vector<1x128xf32> to vector<5x128xf32>
    %31 = arith.addf %28, %30 : vector<5x128xf32>
    %cst_15 = arith.constant 5.000000e-01 : f32
    %32 = vector.broadcast %cst_15 : f32 to vector<5x128xf32>
    %33 = arith.mulf %32, %31 : vector<5x128xf32>
    %cst_16 = arith.constant 0.707106769 : f32
    %34 = vector.broadcast %cst_16 : f32 to vector<5x128xf32>
    %35 = arith.mulf %31, %34 : vector<5x128xf32>
    %36 = math.erf %35 : vector<5x128xf32>
    %cst_17 = arith.constant 1.000000e+00 : f32
    %37 = vector.broadcast %cst_17 : f32 to vector<5x128xf32>
    %38 = arith.addf %37, %36 : vector<5x128xf32>
    %39 = arith.mulf %33, %38 : vector<5x128xf32>
    %40 = arith.truncf %39 : vector<5x128xf32> to vector<5x128xbf16>
    %c0_18 = arith.constant 0 : index
    %c0_19 = arith.constant 0 : index
    %41 = vector.load %arg6[%c0_18, %c0_19] : memref<128x64xbf16, #tpu.memory_space<vmem>>, vector<128x64xbf16>
    %cst_20 = arith.constant dense<0.000000e+00> : vector<5x64xf32>
    %42 = tpu.matmul %40, %41, %cst_20 {dimension_numbers = #tpu.dot_dimension_numbers<[1], [0], [0], [1], [0, 0, 1, 1], [], []>} : vector<5x128xbf16>, vector<128x64xbf16>, vector<5x64xf32> -> vector<5x64xf32>
    %c0_21 = arith.constant 0 : index
    %c0_22 = arith.constant 0 : index
    %43 = vector.load %arg7[%c0_21, %c0_22] : memref<1x64xf32, #tpu.memory_space<vmem>>, vector<1x64xf32>
    %44 = vector.broadcast %43 : vector<1x64xf32> to vector<5x64xf32>
    %45 = arith.addf %42, %44 : vector<5x64xf32>
    %46 = arith.addf %45, %1 : vector<5x64xf32>
    %c0_23 = arith.constant 0 : index
    %c0_24 = arith.constant 0 : index
    %c0_25 = arith.constant 0 : index
    %47 = vector.load %arg8[%c0_23, %c0_24, %c0_25] : memref<1x5x64xf32, #tpu.memory_space<vmem>>, vector<1x5x64xf32>
    %48 = vector.shape_cast %47 : vector<1x5x64xf32> to vector<5x64xf32>
    %49 = vector.shape_cast %46 : vector<5x64xf32> to vector<1x5x64xf32>
    tpu.vector_store %arg8[%c0_23, %c0_24, %c0_25], %49 {strides = array<i32>} : memref<1x5x64xf32, #tpu.memory_space<vmem>>, vector<1x5x64xf32>,
    return
  }
  func.func @transform_0(%arg0: i32) -> (i32, i32, i32) {
    %c0_i32 = arith.constant 0 : i32
    %c0_i32_0 = arith.constant 0 : i32
    %c0_i32_1 = arith.constant 0 : i32
    return %arg0, %c0_i32, %c0_i32_0 : i32, i32, i32
  }
  func.func @transform_1(%arg0: i32) -> (i32, i32) {
    %c0_i32 = arith.constant 0 : i32
    %c0_i32_0 = arith.constant 0 : i32
    %c0_i32_1 = arith.constant 0 : i32
    return %c0_i32, %c0_i32_0 : i32, i32
  }
  func.func @transform_2(%arg0: i32) -> (i32, i32) {
    %c0_i32 = arith.constant 0 : i32
    %c0_i32_0 = arith.constant 0 : i32
    %c0_i32_1 = arith.constant 0 : i32
    return %c0_i32, %c0_i32_0 : i32, i32
  }
  func.func @transform_3(%arg0: i32) -> (i32, i32) {
    %c0_i32 = arith.constant 0 : i32
    %c0_i32_0 = arith.constant 0 : i32
    %c0_i32_1 = arith.constant 0 : i32
    return %c0_i32, %c0_i32_0 : i32, i32
  }
  func.func @transform_4(%arg0: i32) -> (i32, i32) {
    %c0_i32 = arith.constant 0 : i32
    %c0_i32_0 = arith.constant 0 : i32
    %c0_i32_1 = arith.constant 0 : i32
    return %c0_i32, %c0_i32_0 : i32, i32
  }
  func.func @transform_5(%arg0: i32) -> (i32, i32) {
    %c0_i32 = arith.constant 0 : i32
    %c0_i32_0 = arith.constant 0 : i32
    %c0_i32_1 = arith.constant 0 : i32
    return %c0_i32, %c0_i32_0 : i32, i32
  }
  func.func @transform_6(%arg0: i32) -> (i32, i32) {
    %c0_i32 = arith.constant 0 : i32
    %c0_i32_0 = arith.constant 0 : i32
    %c0_i32_1 = arith.constant 0 : i32
    return %c0_i32, %c0_i32_0 : i32, i32
  }
  func.func @transform_7(%arg0: i32) -> (i32, i32, i32) {
    %c0_i32 = arith.constant 0 : i32
    %c0_i32_0 = arith.constant 0 : i32
    %c0_i32_1 = arith.constant 0 : i32
    return %arg0, %c0_i32, %c0_i32_0 : i32, i32, i32
  }
}

module attributes {stable_mosaic.version = 11 : i64} {
  func.func @kernel(%arg0: i32, %arg1: memref<2x64xf32, #tpu.memory_space<vmem>>, %arg2: memref<1x64xf32, #tpu.memory_space<vmem>>, %arg3: memref<1x64xf32, #tpu.memory_space<vmem>>, %arg4: memref<64x128xbf16, #tpu.memory_space<vmem>>, %arg5: memref<1x128xf32, #tpu.memory_space<vmem>>, %arg6: memref<2x128xf32, #tpu.memory_space<vmem>>) attributes {dimension_semantics = [#tpu.dimension_semantics<arbitrary>], iteration_bounds = array<i64: 1>, scalar_prefetch = 0 : i64, scratch_operands = 0 : i64, tpu.core_type = #tpu.core_type<tc>, window_params = [{pipeline_mode = #tpu.pipeline_mode<synchronous>, transform_indices = @transform_0, window_bounds = array<i64: 2, 64>}, {pipeline_mode = #tpu.pipeline_mode<synchronous>, transform_indices = @transform_1, window_bounds = array<i64: 1, 64>}, {pipeline_mode = #tpu.pipeline_mode<synchronous>, transform_indices = @transform_2, window_bounds = array<i64: 1, 64>}, {pipeline_mode = #tpu.pipeline_mode<synchronous>, transform_indices = @transform_3, window_bounds = array<i64: 64, 128>}, {pipeline_mode = #tpu.pipeline_mode<synchronous>, transform_indices = @transform_4, window_bounds = array<i64: 1, 128>}, {pipeline_mode = #tpu.pipeline_mode<synchronous>, transform_indices = @transform_5, window_bounds = array<i64: 2, 128>}]} {
    %c0 = arith.constant 0 : index
    %c0_0 = arith.constant 0 : index
    %0 = vector.load %arg1[%c0, %c0_0] : memref<2x64xf32, #tpu.memory_space<vmem>>, vector<2x64xf32>
    %c0_1 = arith.constant 0 : index
    %c0_2 = arith.constant 0 : index
    %1 = vector.load %arg2[%c0_1, %c0_2] : memref<1x64xf32, #tpu.memory_space<vmem>>, vector<1x64xf32>
    %c0_3 = arith.constant 0 : index
    %c0_4 = arith.constant 0 : index
    %2 = vector.load %arg3[%c0_3, %c0_4] : memref<1x64xf32, #tpu.memory_space<vmem>>, vector<1x64xf32>
    %cst = arith.constant dense<0.000000e+00> : vector<2xf32>
    %3 = vector.multi_reduction <add>, %0, %cst [1] : vector<2x64xf32> to vector<2xf32>
    %4 = vector.shape_cast %3 : vector<2xf32> to vector<2x1xf32>
    %cst_5 = arith.constant 6.400000e+01 : f32
    %5 = vector.broadcast %cst_5 : f32 to vector<2x1xf32>
    %6 = arith.divf %4, %5 : vector<2x1xf32>
    %7 = vector.broadcast %6 : vector<2x1xf32> to vector<2x64xf32>
    %8 = arith.subf %0, %7 : vector<2x64xf32>
    %9 = arith.mulf %8, %8 : vector<2x64xf32>
    %cst_6 = arith.constant dense<0.000000e+00> : vector<2xf32>
    %10 = vector.multi_reduction <add>, %9, %cst_6 [1] : vector<2x64xf32> to vector<2xf32>
    %11 = vector.shape_cast %10 : vector<2xf32> to vector<2x1xf32>
    %cst_7 = arith.constant 6.400000e+01 : f32
    %12 = vector.broadcast %cst_7 : f32 to vector<2x1xf32>
    %13 = arith.divf %11, %12 : vector<2x1xf32>
    %14 = vector.broadcast %6 : vector<2x1xf32> to vector<2x64xf32>
    %15 = arith.subf %0, %14 : vector<2x64xf32>
    %cst_8 = arith.constant 9.99999997E-7 : f32
    %16 = vector.broadcast %cst_8 : f32 to vector<2x1xf32>
    %17 = arith.addf %13, %16 : vector<2x1xf32>
    %18 = math.rsqrt %17 : vector<2x1xf32>
    %19 = vector.broadcast %18 : vector<2x1xf32> to vector<2x64xf32>
    %20 = arith.mulf %15, %19 : vector<2x64xf32>
    %21 = vector.broadcast %1 : vector<1x64xf32> to vector<2x64xf32>
    %22 = arith.mulf %20, %21 : vector<2x64xf32>
    %23 = vector.broadcast %2 : vector<1x64xf32> to vector<2x64xf32>
    %24 = arith.addf %22, %23 : vector<2x64xf32>
    %25 = arith.truncf %24 : vector<2x64xf32> to vector<2x64xbf16>
    %c0_9 = arith.constant 0 : index
    %c0_10 = arith.constant 0 : index
    %26 = vector.load %arg4[%c0_9, %c0_10] : memref<64x128xbf16, #tpu.memory_space<vmem>>, vector<64x128xbf16>
    %cst_11 = arith.constant dense<0.000000e+00> : vector<2x128xf32>
    %27 = tpu.matmul %25, %26, %cst_11 {dimension_numbers = #tpu.dot_dimension_numbers<[1], [0], [0], [1], [0, 0, 1, 1], [], []>} : vector<2x64xbf16>, vector<64x128xbf16>, vector<2x128xf32> -> vector<2x128xf32>
    %c0_12 = arith.constant 0 : index
    %c0_13 = arith.constant 0 : index
    %28 = vector.load %arg5[%c0_12, %c0_13] : memref<1x128xf32, #tpu.memory_space<vmem>>, vector<1x128xf32>
    %29 = vector.broadcast %28 : vector<1x128xf32> to vector<2x128xf32>
    %30 = arith.addf %27, %29 : vector<2x128xf32>
    %c0_14 = arith.constant 0 : index
    %c0_15 = arith.constant 0 : index
    %31 = vector.load %arg6[%c0_14, %c0_15] : memref<2x128xf32, #tpu.memory_space<vmem>>, vector<2x128xf32>
    tpu.vector_store %arg6[%c0_14, %c0_15], %30 {strides = array<i32>} : memref<2x128xf32, #tpu.memory_space<vmem>>, vector<2x128xf32>,
    return
  }
  func.func @transform_0(%arg0: i32) -> (i32, i32) {
    %c0_i32 = arith.constant 0 : i32
    %c0_i32_0 = arith.constant 0 : i32
    %c0_i32_1 = arith.constant 0 : i32
    return %c0_i32, %c0_i32_0 : i32, i32
  }
  func.func @transform_1(%arg0: i32) -> (i32, i32) {
    %c0_i32 = arith.constant 0 : i32
    %c0_i32_0 = arith.constant 0 : i32
    %c0_i32_1 = arith.constant 0 : i32
    return %c0_i32, %c0_i32_0 : i32, i32
  }
  func.func @transform_2(%arg0: i32) -> (i32, i32) {
    %c0_i32 = arith.constant 0 : i32
    %c0_i32_0 = arith.constant 0 : i32
    %c0_i32_1 = arith.constant 0 : i32
    return %c0_i32, %c0_i32_0 : i32, i32
  }
  func.func @transform_3(%arg0: i32) -> (i32, i32) {
    %c0_i32 = arith.constant 0 : i32
    %c0_i32_0 = arith.constant 0 : i32
    %c0_i32_1 = arith.constant 0 : i32
    return %c0_i32, %c0_i32_0 : i32, i32
  }
  func.func @transform_4(%arg0: i32) -> (i32, i32) {
    %c0_i32 = arith.constant 0 : i32
    %c0_i32_0 = arith.constant 0 : i32
    %c0_i32_1 = arith.constant 0 : i32
    return %c0_i32, %c0_i32_0 : i32, i32
  }
  func.func @transform_5(%arg0: i32) -> (i32, i32) {
    %c0_i32 = arith.constant 0 : i32
    %c0_i32_0 = arith.constant 0 : i32
    %c0_i32_1 = arith.constant 0 : i32
    return %c0_i32, %c0_i32_0 : i32, i32
  }
}

module attributes {stable_mosaic.version = 11 : i64} {
  func.func @kernel(%arg0: i32, %arg1: memref<1x5x64xf32, #tpu.memory_space<vmem>>, %arg2: memref<1x64xf32, #tpu.memory_space<vmem>>, %arg3: memref<1x64xf32, #tpu.memory_space<vmem>>, %arg4: memref<4x64x16xbf16, #tpu.memory_space<vmem>>, %arg5: memref<4x64x16xbf16, #tpu.memory_space<vmem>>, %arg6: memref<4x64x16xbf16, #tpu.memory_space<vmem>>, %arg7: memref<4x1x16xf32, #tpu.memory_space<vmem>>, %arg8: memref<4x1x16xf32, #tpu.memory_space<vmem>>, %arg9: memref<4x1x16xf32, #tpu.memory_space<vmem>>, %arg10: memref<4x16x64xbf16, #tpu.memory_space<vmem>>, %arg11: memref<1x64xf32, #tpu.memory_space<vmem>>, %arg12: memref<1x5x64xf32, #tpu.memory_space<vmem>>) attributes {dimension_semantics = [#tpu.dimension_semantics<parallel>], iteration_bounds = array<i64: 2>, scalar_prefetch = 0 : i64, scratch_operands = 0 : i64, tpu.core_type = #tpu.core_type<tc>, window_params = [{transform_indices = @transform_0, window_bounds = array<i64: 1, 5, 64>}, {pipeline_mode = #tpu.pipeline_mode<synchronous>, transform_indices = @transform_1, window_bounds = array<i64: 1, 64>}, {pipeline_mode = #tpu.pipeline_mode<synchronous>, transform_indices = @transform_2, window_bounds = array<i64: 1, 64>}, {pipeline_mode = #tpu.pipeline_mode<synchronous>, transform_indices = @transform_3, window_bounds = array<i64: 4, 64, 16>}, {pipeline_mode = #tpu.pipeline_mode<synchronous>, transform_indices = @transform_4, window_bounds = array<i64: 4, 64, 16>}, {pipeline_mode = #tpu.pipeline_mode<synchronous>, transform_indices = @transform_5, window_bounds = array<i64: 4, 64, 16>}, {pipeline_mode = #tpu.pipeline_mode<synchronous>, transform_indices = @transform_6, window_bounds = array<i64: 4, 1, 16>}, {pipeline_mode = #tpu.pipeline_mode<synchronous>, transform_indices = @transform_7, window_bounds = array<i64: 4, 1, 16>}, {pipeline_mode = #tpu.pipeline_mode<synchronous>, transform_indices = @transform_8, window_bounds = array<i64: 4, 1, 16>}, {pipeline_mode = #tpu.pipeline_mode<synchronous>, transform_indices = @transform_9, window_bounds = array<i64: 4, 16, 64>}, {pipeline_mode = #tpu.pipeline_mode<synchronous>, transform_indices = @transform_10, window_bounds = array<i64: 1, 64>}, {transform_indices = @transform_11, window_bounds = array<i64: 1, 5, 64>}]} {
    %c0 = arith.constant 0 : index
    %c0_0 = arith.constant 0 : index
    %c0_1 = arith.constant 0 : index
    %0 = vector.load %arg1[%c0, %c0_0, %c0_1] : memref<1x5x64xf32, #tpu.memory_space<vmem>>, vector<1x5x64xf32>
    %1 = vector.shape_cast %0 : vector<1x5x64xf32> to vector<5x64xf32>
    %c0_2 = arith.constant 0 : index
    %c0_3 = arith.constant 0 : index
    %2 = vector.load %arg2[%c0_2, %c0_3] : memref<1x64xf32, #tpu.memory_space<vmem>>, vector<1x64xf32>
    %c0_4 = arith.constant 0 : index
    %c0_5 = arith.constant 0 : index
    %3 = vector.load %arg3[%c0_4, %c0_5] : memref<1x64xf32, #tpu.memory_space<vmem>>, vector<1x64xf32>
    %cst = arith.constant dense<0.000000e+00> : vector<5xf32>
    %4 = vector.multi_reduction <add>, %1, %cst [1] : vector<5x64xf32> to vector<5xf32>
    %5 = vector.shape_cast %4 : vector<5xf32> to vector<5x1xf32>
    %cst_6 = arith.constant 6.400000e+01 : f32
    %6 = vector.broadcast %cst_6 : f32 to vector<5x1xf32>
    %7 = arith.divf %5, %6 : vector<5x1xf32>
    %8 = vector.broadcast %7 : vector<5x1xf32> to vector<5x64xf32>
    %9 = arith.subf %1, %8 : vector<5x64xf32>
    %10 = arith.mulf %9, %9 : vector<5x64xf32>
    %cst_7 = arith.constant dense<0.000000e+00> : vector<5xf32>
    %11 = vector.multi_reduction <add>, %10, %cst_7 [1] : vector<5x64xf32> to vector<5xf32>
    %12 = vector.shape_cast %11 : vector<5xf32> to vector<5x1xf32>
    %cst_8 = arith.constant 6.400000e+01 : f32
    %13 = vector.broadcast %cst_8 : f32 to vector<5x1xf32>
    %14 = arith.divf %12, %13 : vector<5x1xf32>
    %15 = vector.broadcast %7 : vector<5x1xf32> to vector<5x64xf32>
    %16 = arith.subf %1, %15 : vector<5x64xf32>
    %cst_9 = arith.constant 9.99999997E-7 : f32
    %17 = vector.broadcast %cst_9 : f32 to vector<5x1xf32>
    %18 = arith.addf %14, %17 : vector<5x1xf32>
    %19 = math.rsqrt %18 : vector<5x1xf32>
    %20 = vector.broadcast %19 : vector<5x1xf32> to vector<5x64xf32>
    %21 = arith.mulf %16, %20 : vector<5x64xf32>
    %22 = vector.broadcast %2 : vector<1x64xf32> to vector<5x64xf32>
    %23 = arith.mulf %21, %22 : vector<5x64xf32>
    %24 = vector.broadcast %3 : vector<1x64xf32> to vector<5x64xf32>
    %25 = arith.addf %23, %24 : vector<5x64xf32>
    %26 = arith.truncf %25 : vector<5x64xf32> to vector<5x64xbf16>
    %cst_10 = arith.constant 0.000000e+00 : f32
    %27 = vector.broadcast %cst_10 : f32 to vector<5x64xf32>
    %c0_11 = arith.constant 0 : index
    %c0_12 = arith.constant 0 : index
    %c0_13 = arith.constant 0 : index
    %28 = vector.load %arg4[%c0_11, %c0_12, %c0_13] : memref<4x64x16xbf16, #tpu.memory_space<vmem>>, vector<1x64x16xbf16>
    %29 = vector.shape_cast %28 : vector<1x64x16xbf16> to vector<64x16xbf16>
    %cst_14 = arith.constant dense<0.000000e+00> : vector<5x16xf32>
    %30 = tpu.matmul %26, %29, %cst_14 {dimension_numbers = #tpu.dot_dimension_numbers<[1], [0], [0], [1], [0, 0, 1, 1], [], []>} : vector<5x64xbf16>, vector<64x16xbf16>, vector<5x16xf32> -> vector<5x16xf32>
    %c0_15 = arith.constant 0 : index
    %c0_16 = arith.constant 0 : index
    %c0_17 = arith.constant 0 : index
    %31 = vector.load %arg7[%c0_15, %c0_16, %c0_17] : memref<4x1x16xf32, #tpu.memory_space<vmem>>, vector<1x1x16xf32>
    %32 = vector.shape_cast %31 : vector<1x1x16xf32> to vector<1x16xf32>
    %33 = vector.broadcast %32 : vector<1x16xf32> to vector<5x16xf32>
    %34 = arith.addf %30, %33 : vector<5x16xf32>
    %c0_18 = arith.constant 0 : index
    %c0_19 = arith.constant 0 : index
    %c0_20 = arith.constant 0 : index
    %35 = vector.load %arg5[%c0_18, %c0_19, %c0_20] : memref<4x64x16xbf16, #tpu.memory_space<vmem>>, vector<1x64x16xbf16>
    %36 = vector.shape_cast %35 : vector<1x64x16xbf16> to vector<64x16xbf16>
    %cst_21 = arith.constant dense<0.000000e+00> : vector<5x16xf32>
    %37 = tpu.matmul %26, %36, %cst_21 {dimension_numbers = #tpu.dot_dimension_numbers<[1], [0], [0], [1], [0, 0, 1, 1], [], []>} : vector<5x64xbf16>, vector<64x16xbf16>, vector<5x16xf32> -> vector<5x16xf32>
    %c0_22 = arith.constant 0 : index
    %c0_23 = arith.constant 0 : index
    %c0_24 = arith.constant 0 : index
    %38 = vector.load %arg8[%c0_22, %c0_23, %c0_24] : memref<4x1x16xf32, #tpu.memory_space<vmem>>, vector<1x1x16xf32>
    %39 = vector.shape_cast %38 : vector<1x1x16xf32> to vector<1x16xf32>
    %40 = vector.broadcast %39 : vector<1x16xf32> to vector<5x16xf32>
    %41 = arith.addf %37, %40 : vector<5x16xf32>
    %c0_25 = arith.constant 0 : index
    %c0_26 = arith.constant 0 : index
    %c0_27 = arith.constant 0 : index
    %42 = vector.load %arg6[%c0_25, %c0_26, %c0_27] : memref<4x64x16xbf16, #tpu.memory_space<vmem>>, vector<1x64x16xbf16>
    %43 = vector.shape_cast %42 : vector<1x64x16xbf16> to vector<64x16xbf16>
    %cst_28 = arith.constant dense<0.000000e+00> : vector<5x16xf32>
    %44 = tpu.matmul %26, %43, %cst_28 {dimension_numbers = #tpu.dot_dimension_numbers<[1], [0], [0], [1], [0, 0, 1, 1], [], []>} : vector<5x64xbf16>, vector<64x16xbf16>, vector<5x16xf32> -> vector<5x16xf32>
    %c0_29 = arith.constant 0 : index
    %c0_30 = arith.constant 0 : index
    %c0_31 = arith.constant 0 : index
    %45 = vector.load %arg9[%c0_29, %c0_30, %c0_31] : memref<4x1x16xf32, #tpu.memory_space<vmem>>, vector<1x1x16xf32>
    %46 = vector.shape_cast %45 : vector<1x1x16xf32> to vector<1x16xf32>
    %47 = vector.broadcast %46 : vector<1x16xf32> to vector<5x16xf32>
    %48 = arith.addf %44, %47 : vector<5x16xf32>
    %cst_32 = arith.constant dense<0.000000e+00> : vector<5x5xf32>
    %49 = tpu.matmul %34, %41, %cst_32 {dimension_numbers = #tpu.dot_dimension_numbers<[1], [1], [0], [0], [0, 0, 1, 0], [], []>} : vector<5x16xf32>, vector<5x16xf32>, vector<5x5xf32> -> vector<5x5xf32>
    %cst_33 = arith.constant 2.500000e-01 : f32
    %50 = vector.broadcast %cst_33 : f32 to vector<5x5xf32>
    %51 = arith.mulf %49, %50 : vector<5x5xf32>
    %cst_34 = arith.constant dense<0xFF800000> : vector<5xf32>
    %52 = vector.multi_reduction <maximumf>, %51, %cst_34 [1] : vector<5x5xf32> to vector<5xf32>
    %53 = vector.shape_cast %52 : vector<5xf32> to vector<5x1xf32>
    %54 = vector.broadcast %53 : vector<5x1xf32> to vector<5x5xf32>
    %55 = arith.subf %51, %54 : vector<5x5xf32>
    %56 = math.exp %55 : vector<5x5xf32>
    %cst_35 = arith.constant dense<0.000000e+00> : vector<5xf32>
    %57 = vector.multi_reduction <add>, %56, %cst_35 [1] : vector<5x5xf32> to vector<5xf32>
    %58 = vector.shape_cast %57 : vector<5xf32> to vector<5x1xf32>
    %59 = tpu.reciprocal %58 {approx = true} : vector<5x1xf32> -> vector<5x1xf32>
    %60 = vector.broadcast %59 : vector<5x1xf32> to vector<5x5xf32>
    %61 = arith.mulf %56, %60 : vector<5x5xf32>
    %62 = arith.truncf %61 : vector<5x5xf32> to vector<5x5xbf16>
    %63 = arith.truncf %48 : vector<5x16xf32> to vector<5x16xbf16>
    %cst_36 = arith.constant dense<0.000000e+00> : vector<5x16xf32>
    %64 = tpu.matmul %62, %63, %cst_36 {dimension_numbers = #tpu.dot_dimension_numbers<[1], [0], [0], [1], [0, 0, 1, 1], [], []>} : vector<5x5xbf16>, vector<5x16xbf16>, vector<5x16xf32> -> vector<5x16xf32>
    %65 = arith.truncf %64 : vector<5x16xf32> to vector<5x16xbf16>
    %c0_37 = arith.constant 0 : index
    %c0_38 = arith.constant 0 : index
    %c0_39 = arith.constant 0 : index
    %66 = vector.load %arg10[%c0_37, %c0_38, %c0_39] : memref<4x16x64xbf16, #tpu.memory_space<vmem>>, vector<1x16x64xbf16>
    %67 = vector.shape_cast %66 : vector<1x16x64xbf16> to vector<16x64xbf16>
    %cst_40 = arith.constant dense<0.000000e+00> : vector<5x64xf32>
    %68 = tpu.matmul %65, %67, %cst_40 {dimension_numbers = #tpu.dot_dimension_numbers<[1], [0], [0], [1], [0, 0, 1, 1], [], []>} : vector<5x16xbf16>, vector<16x64xbf16>, vector<5x64xf32> -> vector<5x64xf32>
    %69 = arith.addf %27, %68 : vector<5x64xf32>
    %c1 = arith.constant 1 : index
    %c0_41 = arith.constant 0 : index
    %c0_42 = arith.constant 0 : index
    %70 = vector.load %arg4[%c1, %c0_41, %c0_42] : memref<4x64x16xbf16, #tpu.memory_space<vmem>>, vector<1x64x16xbf16>
    %71 = vector.shape_cast %70 : vector<1x64x16xbf16> to vector<64x16xbf16>
    %cst_43 = arith.constant dense<0.000000e+00> : vector<5x16xf32>
    %72 = tpu.matmul %26, %71, %cst_43 {dimension_numbers = #tpu.dot_dimension_numbers<[1], [0], [0], [1], [0, 0, 1, 1], [], []>} : vector<5x64xbf16>, vector<64x16xbf16>, vector<5x16xf32> -> vector<5x16xf32>
    %c1_44 = arith.constant 1 : index
    %c0_45 = arith.constant 0 : index
    %c0_46 = arith.constant 0 : index
    %73 = vector.load %arg7[%c1_44, %c0_45, %c0_46] : memref<4x1x16xf32, #tpu.memory_space<vmem>>, vector<1x1x16xf32>
    %74 = vector.shape_cast %73 : vector<1x1x16xf32> to vector<1x16xf32>
    %75 = vector.broadcast %74 : vector<1x16xf32> to vector<5x16xf32>
    %76 = arith.addf %72, %75 : vector<5x16xf32>
    %c1_47 = arith.constant 1 : index
    %c0_48 = arith.constant 0 : index
    %c0_49 = arith.constant 0 : index
    %77 = vector.load %arg5[%c1_47, %c0_48, %c0_49] : memref<4x64x16xbf16, #tpu.memory_space<vmem>>, vector<1x64x16xbf16>
    %78 = vector.shape_cast %77 : vector<1x64x16xbf16> to vector<64x16xbf16>
    %cst_50 = arith.constant dense<0.000000e+00> : vector<5x16xf32>
    %79 = tpu.matmul %26, %78, %cst_50 {dimension_numbers = #tpu.dot_dimension_numbers<[1], [0], [0], [1], [0, 0, 1, 1], [], []>} : vector<5x64xbf16>, vector<64x16xbf16>, vector<5x16xf32> -> vector<5x16xf32>
    %c1_51 = arith.constant 1 : index
    %c0_52 = arith.constant 0 : index
    %c0_53 = arith.constant 0 : index
    %80 = vector.load %arg8[%c1_51, %c0_52, %c0_53] : memref<4x1x16xf32, #tpu.memory_space<vmem>>, vector<1x1x16xf32>
    %81 = vector.shape_cast %80 : vector<1x1x16xf32> to vector<1x16xf32>
    %82 = vector.broadcast %81 : vector<1x16xf32> to vector<5x16xf32>
    %83 = arith.addf %79, %82 : vector<5x16xf32>
    %c1_54 = arith.constant 1 : index
    %c0_55 = arith.constant 0 : index
    %c0_56 = arith.constant 0 : index
    %84 = vector.load %arg6[%c1_54, %c0_55, %c0_56] : memref<4x64x16xbf16, #tpu.memory_space<vmem>>, vector<1x64x16xbf16>
    %85 = vector.shape_cast %84 : vector<1x64x16xbf16> to vector<64x16xbf16>
    %cst_57 = arith.constant dense<0.000000e+00> : vector<5x16xf32>
    %86 = tpu.matmul %26, %85, %cst_57 {dimension_numbers = #tpu.dot_dimension_numbers<[1], [0], [0], [1], [0, 0, 1, 1], [], []>} : vector<5x64xbf16>, vector<64x16xbf16>, vector<5x16xf32> -> vector<5x16xf32>
    %c1_58 = arith.constant 1 : index
    %c0_59 = arith.constant 0 : index
    %c0_60 = arith.constant 0 : index
    %87 = vector.load %arg9[%c1_58, %c0_59, %c0_60] : memref<4x1x16xf32, #tpu.memory_space<vmem>>, vector<1x1x16xf32>
    %88 = vector.shape_cast %87 : vector<1x1x16xf32> to vector<1x16xf32>
    %89 = vector.broadcast %88 : vector<1x16xf32> to vector<5x16xf32>
    %90 = arith.addf %86, %89 : vector<5x16xf32>
    %cst_61 = arith.constant dense<0.000000e+00> : vector<5x5xf32>
    %91 = tpu.matmul %76, %83, %cst_61 {dimension_numbers = #tpu.dot_dimension_numbers<[1], [1], [0], [0], [0, 0, 1, 0], [], []>} : vector<5x16xf32>, vector<5x16xf32>, vector<5x5xf32> -> vector<5x5xf32>
    %cst_62 = arith.constant 2.500000e-01 : f32
    %92 = vector.broadcast %cst_62 : f32 to vector<5x5xf32>
    %93 = arith.mulf %91, %92 : vector<5x5xf32>
    %cst_63 = arith.constant dense<0xFF800000> : vector<5xf32>
    %94 = vector.multi_reduction <maximumf>, %93, %cst_63 [1] : vector<5x5xf32> to vector<5xf32>
    %95 = vector.shape_cast %94 : vector<5xf32> to vector<5x1xf32>
    %96 = vector.broadcast %95 : vector<5x1xf32> to vector<5x5xf32>
    %97 = arith.subf %93, %96 : vector<5x5xf32>
    %98 = math.exp %97 : vector<5x5xf32>
    %cst_64 = arith.constant dense<0.000000e+00> : vector<5xf32>
    %99 = vector.multi_reduction <add>, %98, %cst_64 [1] : vector<5x5xf32> to vector<5xf32>
    %100 = vector.shape_cast %99 : vector<5xf32> to vector<5x1xf32>
    %101 = tpu.reciprocal %100 {approx = true} : vector<5x1xf32> -> vector<5x1xf32>
    %102 = vector.broadcast %101 : vector<5x1xf32> to vector<5x5xf32>
    %103 = arith.mulf %98, %102 : vector<5x5xf32>
    %104 = arith.truncf %103 : vector<5x5xf32> to vector<5x5xbf16>
    %105 = arith.truncf %90 : vector<5x16xf32> to vector<5x16xbf16>
    %cst_65 = arith.constant dense<0.000000e+00> : vector<5x16xf32>
    %106 = tpu.matmul %104, %105, %cst_65 {dimension_numbers = #tpu.dot_dimension_numbers<[1], [0], [0], [1], [0, 0, 1, 1], [], []>} : vector<5x5xbf16>, vector<5x16xbf16>, vector<5x16xf32> -> vector<5x16xf32>
    %107 = arith.truncf %106 : vector<5x16xf32> to vector<5x16xbf16>
    %c1_66 = arith.constant 1 : index
    %c0_67 = arith.constant 0 : index
    %c0_68 = arith.constant 0 : index
    %108 = vector.load %arg10[%c1_66, %c0_67, %c0_68] : memref<4x16x64xbf16, #tpu.memory_space<vmem>>, vector<1x16x64xbf16>
    %109 = vector.shape_cast %108 : vector<1x16x64xbf16> to vector<16x64xbf16>
    %cst_69 = arith.constant dense<0.000000e+00> : vector<5x64xf32>
    %110 = tpu.matmul %107, %109, %cst_69 {dimension_numbers = #tpu.dot_dimension_numbers<[1], [0], [0], [1], [0, 0, 1, 1], [], []>} : vector<5x16xbf16>, vector<16x64xbf16>, vector<5x64xf32> -> vector<5x64xf32>
    %111 = arith.addf %69, %110 : vector<5x64xf32>
    %c2 = arith.constant 2 : index
    %c0_70 = arith.constant 0 : index
    %c0_71 = arith.constant 0 : index
    %112 = vector.load %arg4[%c2, %c0_70, %c0_71] : memref<4x64x16xbf16, #tpu.memory_space<vmem>>, vector<1x64x16xbf16>
    %113 = vector.shape_cast %112 : vector<1x64x16xbf16> to vector<64x16xbf16>
    %cst_72 = arith.constant dense<0.000000e+00> : vector<5x16xf32>
    %114 = tpu.matmul %26, %113, %cst_72 {dimension_numbers = #tpu.dot_dimension_numbers<[1], [0], [0], [1], [0, 0, 1, 1], [], []>} : vector<5x64xbf16>, vector<64x16xbf16>, vector<5x16xf32> -> vector<5x16xf32>
    %c2_73 = arith.constant 2 : index
    %c0_74 = arith.constant 0 : index
    %c0_75 = arith.constant 0 : index
    %115 = vector.load %arg7[%c2_73, %c0_74, %c0_75] : memref<4x1x16xf32, #tpu.memory_space<vmem>>, vector<1x1x16xf32>
    %116 = vector.shape_cast %115 : vector<1x1x16xf32> to vector<1x16xf32>
    %117 = vector.broadcast %116 : vector<1x16xf32> to vector<5x16xf32>
    %118 = arith.addf %114, %117 : vector<5x16xf32>
    %c2_76 = arith.constant 2 : index
    %c0_77 = arith.constant 0 : index
    %c0_78 = arith.constant 0 : index
    %119 = vector.load %arg5[%c2_76, %c0_77, %c0_78] : memref<4x64x16xbf16, #tpu.memory_space<vmem>>, vector<1x64x16xbf16>
    %120 = vector.shape_cast %119 : vector<1x64x16xbf16> to vector<64x16xbf16>
    %cst_79 = arith.constant dense<0.000000e+00> : vector<5x16xf32>
    %121 = tpu.matmul %26, %120, %cst_79 {dimension_numbers = #tpu.dot_dimension_numbers<[1], [0], [0], [1], [0, 0, 1, 1], [], []>} : vector<5x64xbf16>, vector<64x16xbf16>, vector<5x16xf32> -> vector<5x16xf32>
    %c2_80 = arith.constant 2 : index
    %c0_81 = arith.constant 0 : index
    %c0_82 = arith.constant 0 : index
    %122 = vector.load %arg8[%c2_80, %c0_81, %c0_82] : memref<4x1x16xf32, #tpu.memory_space<vmem>>, vector<1x1x16xf32>
    %123 = vector.shape_cast %122 : vector<1x1x16xf32> to vector<1x16xf32>
    %124 = vector.broadcast %123 : vector<1x16xf32> to vector<5x16xf32>
    %125 = arith.addf %121, %124 : vector<5x16xf32>
    %c2_83 = arith.constant 2 : index
    %c0_84 = arith.constant 0 : index
    %c0_85 = arith.constant 0 : index
    %126 = vector.load %arg6[%c2_83, %c0_84, %c0_85] : memref<4x64x16xbf16, #tpu.memory_space<vmem>>, vector<1x64x16xbf16>
    %127 = vector.shape_cast %126 : vector<1x64x16xbf16> to vector<64x16xbf16>
    %cst_86 = arith.constant dense<0.000000e+00> : vector<5x16xf32>
    %128 = tpu.matmul %26, %127, %cst_86 {dimension_numbers = #tpu.dot_dimension_numbers<[1], [0], [0], [1], [0, 0, 1, 1], [], []>} : vector<5x64xbf16>, vector<64x16xbf16>, vector<5x16xf32> -> vector<5x16xf32>
    %c2_87 = arith.constant 2 : index
    %c0_88 = arith.constant 0 : index
    %c0_89 = arith.constant 0 : index
    %129 = vector.load %arg9[%c2_87, %c0_88, %c0_89] : memref<4x1x16xf32, #tpu.memory_space<vmem>>, vector<1x1x16xf32>
    %130 = vector.shape_cast %129 : vector<1x1x16xf32> to vector<1x16xf32>
    %131 = vector.broadcast %130 : vector<1x16xf32> to vector<5x16xf32>
    %132 = arith.addf %128, %131 : vector<5x16xf32>
    %cst_90 = arith.constant dense<0.000000e+00> : vector<5x5xf32>
    %133 = tpu.matmul %118, %125, %cst_90 {dimension_numbers = #tpu.dot_dimension_numbers<[1], [1], [0], [0], [0, 0, 1, 0], [], []>} : vector<5x16xf32>, vector<5x16xf32>, vector<5x5xf32> -> vector<5x5xf32>
    %cst_91 = arith.constant 2.500000e-01 : f32
    %134 = vector.broadcast %cst_91 : f32 to vector<5x5xf32>
    %135 = arith.mulf %133, %134 : vector<5x5xf32>
    %cst_92 = arith.constant dense<0xFF800000> : vector<5xf32>
    %136 = vector.multi_reduction <maximumf>, %135, %cst_92 [1] : vector<5x5xf32> to vector<5xf32>
    %137 = vector.shape_cast %136 : vector<5xf32> to vector<5x1xf32>
    %138 = vector.broadcast %137 : vector<5x1xf32> to vector<5x5xf32>
    %139 = arith.subf %135, %138 : vector<5x5xf32>
    %140 = math.exp %139 : vector<5x5xf32>
    %cst_93 = arith.constant dense<0.000000e+00> : vector<5xf32>
    %141 = vector.multi_reduction <add>, %140, %cst_93 [1] : vector<5x5xf32> to vector<5xf32>
    %142 = vector.shape_cast %141 : vector<5xf32> to vector<5x1xf32>
    %143 = tpu.reciprocal %142 {approx = true} : vector<5x1xf32> -> vector<5x1xf32>
    %144 = vector.broadcast %143 : vector<5x1xf32> to vector<5x5xf32>
    %145 = arith.mulf %140, %144 : vector<5x5xf32>
    %146 = arith.truncf %145 : vector<5x5xf32> to vector<5x5xbf16>
    %147 = arith.truncf %132 : vector<5x16xf32> to vector<5x16xbf16>
    %cst_94 = arith.constant dense<0.000000e+00> : vector<5x16xf32>
    %148 = tpu.matmul %146, %147, %cst_94 {dimension_numbers = #tpu.dot_dimension_numbers<[1], [0], [0], [1], [0, 0, 1, 1], [], []>} : vector<5x5xbf16>, vector<5x16xbf16>, vector<5x16xf32> -> vector<5x16xf32>
    %149 = arith.truncf %148 : vector<5x16xf32> to vector<5x16xbf16>
    %c2_95 = arith.constant 2 : index
    %c0_96 = arith.constant 0 : index
    %c0_97 = arith.constant 0 : index
    %150 = vector.load %arg10[%c2_95, %c0_96, %c0_97] : memref<4x16x64xbf16, #tpu.memory_space<vmem>>, vector<1x16x64xbf16>
    %151 = vector.shape_cast %150 : vector<1x16x64xbf16> to vector<16x64xbf16>
    %cst_98 = arith.constant dense<0.000000e+00> : vector<5x64xf32>
    %152 = tpu.matmul %149, %151, %cst_98 {dimension_numbers = #tpu.dot_dimension_numbers<[1], [0], [0], [1], [0, 0, 1, 1], [], []>} : vector<5x16xbf16>, vector<16x64xbf16>, vector<5x64xf32> -> vector<5x64xf32>
    %153 = arith.addf %111, %152 : vector<5x64xf32>
    %c3 = arith.constant 3 : index
    %c0_99 = arith.constant 0 : index
    %c0_100 = arith.constant 0 : index
    %154 = vector.load %arg4[%c3, %c0_99, %c0_100] : memref<4x64x16xbf16, #tpu.memory_space<vmem>>, vector<1x64x16xbf16>
    %155 = vector.shape_cast %154 : vector<1x64x16xbf16> to vector<64x16xbf16>
    %cst_101 = arith.constant dense<0.000000e+00> : vector<5x16xf32>
    %156 = tpu.matmul %26, %155, %cst_101 {dimension_numbers = #tpu.dot_dimension_numbers<[1], [0], [0], [1], [0, 0, 1, 1], [], []>} : vector<5x64xbf16>, vector<64x16xbf16>, vector<5x16xf32> -> vector<5x16xf32>
    %c3_102 = arith.constant 3 : index
    %c0_103 = arith.constant 0 : index
    %c0_104 = arith.constant 0 : index
    %157 = vector.load %arg7[%c3_102, %c0_103, %c0_104] : memref<4x1x16xf32, #tpu.memory_space<vmem>>, vector<1x1x16xf32>
    %158 = vector.shape_cast %157 : vector<1x1x16xf32> to vector<1x16xf32>
    %159 = vector.broadcast %158 : vector<1x16xf32> to vector<5x16xf32>
    %160 = arith.addf %156, %159 : vector<5x16xf32>
    %c3_105 = arith.constant 3 : index
    %c0_106 = arith.constant 0 : index
    %c0_107 = arith.constant 0 : index
    %161 = vector.load %arg5[%c3_105, %c0_106, %c0_107] : memref<4x64x16xbf16, #tpu.memory_space<vmem>>, vector<1x64x16xbf16>
    %162 = vector.shape_cast %161 : vector<1x64x16xbf16> to vector<64x16xbf16>
    %cst_108 = arith.constant dense<0.000000e+00> : vector<5x16xf32>
    %163 = tpu.matmul %26, %162, %cst_108 {dimension_numbers = #tpu.dot_dimension_numbers<[1], [0], [0], [1], [0, 0, 1, 1], [], []>} : vector<5x64xbf16>, vector<64x16xbf16>, vector<5x16xf32> -> vector<5x16xf32>
    %c3_109 = arith.constant 3 : index
    %c0_110 = arith.constant 0 : index
    %c0_111 = arith.constant 0 : index
    %164 = vector.load %arg8[%c3_109, %c0_110, %c0_111] : memref<4x1x16xf32, #tpu.memory_space<vmem>>, vector<1x1x16xf32>
    %165 = vector.shape_cast %164 : vector<1x1x16xf32> to vector<1x16xf32>
    %166 = vector.broadcast %165 : vector<1x16xf32> to vector<5x16xf32>
    %167 = arith.addf %163, %166 : vector<5x16xf32>
    %c3_112 = arith.constant 3 : index
    %c0_113 = arith.constant 0 : index
    %c0_114 = arith.constant 0 : index
    %168 = vector.load %arg6[%c3_112, %c0_113, %c0_114] : memref<4x64x16xbf16, #tpu.memory_space<vmem>>, vector<1x64x16xbf16>
    %169 = vector.shape_cast %168 : vector<1x64x16xbf16> to vector<64x16xbf16>
    %cst_115 = arith.constant dense<0.000000e+00> : vector<5x16xf32>
    %170 = tpu.matmul %26, %169, %cst_115 {dimension_numbers = #tpu.dot_dimension_numbers<[1], [0], [0], [1], [0, 0, 1, 1], [], []>} : vector<5x64xbf16>, vector<64x16xbf16>, vector<5x16xf32> -> vector<5x16xf32>
    %c3_116 = arith.constant 3 : index
    %c0_117 = arith.constant 0 : index
    %c0_118 = arith.constant 0 : index
    %171 = vector.load %arg9[%c3_116, %c0_117, %c0_118] : memref<4x1x16xf32, #tpu.memory_space<vmem>>, vector<1x1x16xf32>
    %172 = vector.shape_cast %171 : vector<1x1x16xf32> to vector<1x16xf32>
    %173 = vector.broadcast %172 : vector<1x16xf32> to vector<5x16xf32>
    %174 = arith.addf %170, %173 : vector<5x16xf32>
    %cst_119 = arith.constant dense<0.000000e+00> : vector<5x5xf32>
    %175 = tpu.matmul %160, %167, %cst_119 {dimension_numbers = #tpu.dot_dimension_numbers<[1], [1], [0], [0], [0, 0, 1, 0], [], []>} : vector<5x16xf32>, vector<5x16xf32>, vector<5x5xf32> -> vector<5x5xf32>
    %cst_120 = arith.constant 2.500000e-01 : f32
    %176 = vector.broadcast %cst_120 : f32 to vector<5x5xf32>
    %177 = arith.mulf %175, %176 : vector<5x5xf32>
    %cst_121 = arith.constant dense<0xFF800000> : vector<5xf32>
    %178 = vector.multi_reduction <maximumf>, %177, %cst_121 [1] : vector<5x5xf32> to vector<5xf32>
    %179 = vector.shape_cast %178 : vector<5xf32> to vector<5x1xf32>
    %180 = vector.broadcast %179 : vector<5x1xf32> to vector<5x5xf32>
    %181 = arith.subf %177, %180 : vector<5x5xf32>
    %182 = math.exp %181 : vector<5x5xf32>
    %cst_122 = arith.constant dense<0.000000e+00> : vector<5xf32>
    %183 = vector.multi_reduction <add>, %182, %cst_122 [1] : vector<5x5xf32> to vector<5xf32>
    %184 = vector.shape_cast %183 : vector<5xf32> to vector<5x1xf32>
    %185 = tpu.reciprocal %184 {approx = true} : vector<5x1xf32> -> vector<5x1xf32>
    %186 = vector.broadcast %185 : vector<5x1xf32> to vector<5x5xf32>
    %187 = arith.mulf %182, %186 : vector<5x5xf32>
    %188 = arith.truncf %187 : vector<5x5xf32> to vector<5x5xbf16>
    %189 = arith.truncf %174 : vector<5x16xf32> to vector<5x16xbf16>
    %cst_123 = arith.constant dense<0.000000e+00> : vector<5x16xf32>
    %190 = tpu.matmul %188, %189, %cst_123 {dimension_numbers = #tpu.dot_dimension_numbers<[1], [0], [0], [1], [0, 0, 1, 1], [], []>} : vector<5x5xbf16>, vector<5x16xbf16>, vector<5x16xf32> -> vector<5x16xf32>
    %191 = arith.truncf %190 : vector<5x16xf32> to vector<5x16xbf16>
    %c3_124 = arith.constant 3 : index
    %c0_125 = arith.constant 0 : index
    %c0_126 = arith.constant 0 : index
    %192 = vector.load %arg10[%c3_124, %c0_125, %c0_126] : memref<4x16x64xbf16, #tpu.memory_space<vmem>>, vector<1x16x64xbf16>
    %193 = vector.shape_cast %192 : vector<1x16x64xbf16> to vector<16x64xbf16>
    %cst_127 = arith.constant dense<0.000000e+00> : vector<5x64xf32>
    %194 = tpu.matmul %191, %193, %cst_127 {dimension_numbers = #tpu.dot_dimension_numbers<[1], [0], [0], [1], [0, 0, 1, 1], [], []>} : vector<5x16xbf16>, vector<16x64xbf16>, vector<5x64xf32> -> vector<5x64xf32>
    %195 = arith.addf %153, %194 : vector<5x64xf32>
    %c0_128 = arith.constant 0 : index
    %c0_129 = arith.constant 0 : index
    %196 = vector.load %arg11[%c0_128, %c0_129] : memref<1x64xf32, #tpu.memory_space<vmem>>, vector<1x64xf32>
    %197 = vector.broadcast %196 : vector<1x64xf32> to vector<5x64xf32>
    %198 = arith.addf %195, %197 : vector<5x64xf32>
    %199 = arith.addf %198, %1 : vector<5x64xf32>
    %c0_130 = arith.constant 0 : index
    %c0_131 = arith.constant 0 : index
    %c0_132 = arith.constant 0 : index
    %200 = vector.load %arg12[%c0_130, %c0_131, %c0_132] : memref<1x5x64xf32, #tpu.memory_space<vmem>>, vector<1x5x64xf32>
    %201 = vector.shape_cast %200 : vector<1x5x64xf32> to vector<5x64xf32>
    %202 = vector.shape_cast %199 : vector<5x64xf32> to vector<1x5x64xf32>
    tpu.vector_store %arg12[%c0_130, %c0_131, %c0_132], %202 {strides = array<i32>} : memref<1x5x64xf32, #tpu.memory_space<vmem>>, vector<1x5x64xf32>,
    return
  }
  func.func @transform_0(%arg0: i32) -> (i32, i32, i32) {
    %c0_i32 = arith.constant 0 : i32
    %c0_i32_0 = arith.constant 0 : i32
    %c0_i32_1 = arith.constant 0 : i32
    return %arg0, %c0_i32, %c0_i32_0 : i32, i32, i32
  }
  func.func @transform_1(%arg0: i32) -> (i32, i32) {
    %c0_i32 = arith.constant 0 : i32
    %c0_i32_0 = arith.constant 0 : i32
    %c0_i32_1 = arith.constant 0 : i32
    return %c0_i32, %c0_i32_0 : i32, i32
  }
  func.func @transform_2(%arg0: i32) -> (i32, i32) {
    %c0_i32 = arith.constant 0 : i32
    %c0_i32_0 = arith.constant 0 : i32
    %c0_i32_1 = arith.constant 0 : i32
    return %c0_i32, %c0_i32_0 : i32, i32
  }
  func.func @transform_3(%arg0: i32) -> (i32, i32, i32) {
    %c0_i32 = arith.constant 0 : i32
    %c0_i32_0 = arith.constant 0 : i32
    %c0_i32_1 = arith.constant 0 : i32
    %c0_i32_2 = arith.constant 0 : i32
    return %c0_i32, %c0_i32_0, %c0_i32_1 : i32, i32, i32
  }
  func.func @transform_4(%arg0: i32) -> (i32, i32, i32) {
    %c0_i32 = arith.constant 0 : i32
    %c0_i32_0 = arith.constant 0 : i32
    %c0_i32_1 = arith.constant 0 : i32
    %c0_i32_2 = arith.constant 0 : i32
    return %c0_i32, %c0_i32_0, %c0_i32_1 : i32, i32, i32
  }
  func.func @transform_5(%arg0: i32) -> (i32, i32, i32) {
    %c0_i32 = arith.constant 0 : i32
    %c0_i32_0 = arith.constant 0 : i32
    %c0_i32_1 = arith.constant 0 : i32
    %c0_i32_2 = arith.constant 0 : i32
    return %c0_i32, %c0_i32_0, %c0_i32_1 : i32, i32, i32
  }
  func.func @transform_6(%arg0: i32) -> (i32, i32, i32) {
    %c0_i32 = arith.constant 0 : i32
    %c0_i32_0 = arith.constant 0 : i32
    %c0_i32_1 = arith.constant 0 : i32
    %c0_i32_2 = arith.constant 0 : i32
    return %c0_i32, %c0_i32_0, %c0_i32_1 : i32, i32, i32
  }
  func.func @transform_7(%arg0: i32) -> (i32, i32, i32) {
    %c0_i32 = arith.constant 0 : i32
    %c0_i32_0 = arith.constant 0 : i32
    %c0_i32_1 = arith.constant 0 : i32
    %c0_i32_2 = arith.constant 0 : i32
    return %c0_i32, %c0_i32_0, %c0_i32_1 : i32, i32, i32
  }
  func.func @transform_8(%arg0: i32) -> (i32, i32, i32) {
    %c0_i32 = arith.constant 0 : i32
    %c0_i32_0 = arith.constant 0 : i32
    %c0_i32_1 = arith.constant 0 : i32
    %c0_i32_2 = arith.constant 0 : i32
    return %c0_i32, %c0_i32_0, %c0_i32_1 : i32, i32, i32
  }
  func.func @transform_9(%arg0: i32) -> (i32, i32, i32) {
    %c0_i32 = arith.constant 0 : i32
    %c0_i32_0 = arith.constant 0 : i32
    %c0_i32_1 = arith.constant 0 : i32
    %c0_i32_2 = arith.constant 0 : i32
    return %c0_i32, %c0_i32_0, %c0_i32_1 : i32, i32, i32
  }
  func.func @transform_10(%arg0: i32) -> (i32, i32) {
    %c0_i32 = arith.constant 0 : i32
    %c0_i32_0 = arith.constant 0 : i32
    %c0_i32_1 = arith.constant 0 : i32
    return %c0_i32, %c0_i32_0 : i32, i32
  }
  func.func @transform_11(%arg0: i32) -> (i32, i32, i32) {
    %c0_i32 = arith.constant 0 : i32
    %c0_i32_0 = arith.constant 0 : i32
    %c0_i32_1 = arith.constant 0 : i32
    return %arg0, %c0_i32, %c0_i32_0 : i32, i32, i32
  }
}

</mosaic_0001>

<llo_original>
// kernel: vit_forward.11
$region0: #{vit_forward.11}
  #allocation0 [shape = 'u32[]', space=smem, size = 0x4, offset = 0x4, fixed_abs, tag = 'smem constant byte address 0x4 - core index']
  #allocation1 [shape = 'u32[144,128]{1,0:T(1,128)}', space=vmem, size = 0x12000, scoped, tag = 'internal scratch']
  %s0 = inlined_call_operand.vmem [shape: f32[2,64], index: 0, kind: input, shape index: {}]
  %s1 = inlined_call_operand.vmem [shape: f32[1,64], index: 1, kind: input, shape index: {}]
  %s2 = inlined_call_operand.vmem [shape: f32[1,64], index: 2, kind: input, shape index: {}]
  %s3 = inlined_call_operand.vmem [shape: bf16[64,128], index: 3, kind: input, shape index: {}]
  %s4 = inlined_call_operand.vmem [shape: f32[1,128], index: 4, kind: input, shape index: {}]
  %s5 = inlined_call_operand.hbm [shape: f32[2,128], index: 5, kind: output, shape index: {}]
  %s6 = sld [smem:[#allocation0]]
  $region30: #{vit_forward.11} parent=0
    _
  %s8 = ssub.s32 1, %s6
  %s9 = scalar_select 0, %s8, %s6
  $region1: #{vit_forward.11} parent=0
    #allocation2 [shape = 'u8[1024]{0}', space=vmem, size = 0x400, scoped, tag = 'output window, operand 0, single buffered']
    #allocation3 [shape = 's32[1]{0}', space=sflag, size = 0x4, scoped, tag = 'scoped memory for vit_forward.11']
    %10 = vsyncpa [#allocation3], 0
    // Predicated region
    $region2: #{vit_forward.11} parent=1 // pred_check
      _
    $region3: #{vit_forward.11} parent=1 // pred_check_branch
      %12 = sbr.rel (0) target = $region5
    $region4: #{vit_forward.11} parent=1 // pred_region
      _
    $region5: #{vit_forward.11} parent=1 // pred_fallthru
      _
    // Predicated region
    $region6: #{vit_forward.11} parent=1 // pred_check
      _
    $region7: #{vit_forward.11} parent=1 // pred_check_branch
      %14 = sbr.rel (0) target = $region9
    $region8: #{vit_forward.11} parent=1 // pred_region
      _
    $region9: #{vit_forward.11} parent=1 // pred_fallthru
      _
    // Predicated region
    $region10: #{vit_forward.11} parent=1 // pred_check
      _
    $region11: #{vit_forward.11} parent=1 // pred_check_branch
      %16 = sbr.rel (0) target = $region13
    $region12: #{vit_forward.11} parent=1 // pred_region
      _
    $region13: #{vit_forward.11} parent=1 // pred_fallthru
      _
    // Predicated region
    $region14: #{vit_forward.11} parent=1 // pred_check
      _
    $region15: #{vit_forward.11} parent=1 // pred_check_branch
      %18 = sbr.rel (0) target = $region17
    $region16: #{vit_forward.11} parent=1 // pred_region
      _
    $region17: #{vit_forward.11} parent=1 // pred_fallthru
      _
    // Predicated region
    $region18: #{vit_forward.11} parent=1 // pred_check
      _
    $region19: #{vit_forward.11} parent=1 // pred_check_branch
      %20 = sbr.rel (0) target = $region21
    $region20: #{vit_forward.11} parent=1 // pred_region
      _
    $region21: #{vit_forward.11} parent=1 // pred_fallthru
      _
    %v22 = vld [vmem:[%s0] sm:$0x3]
    %v23 = vld [vmem:[%s1] sm:$0x1]
    %v24 = vld [vmem:[%s2] sm:$0x1]
    %vm25 = vcmask 517120
    %v26 = vsel %vm25, %v22, 0.0
    %27 = vadd.xlane.f32.xlu0 %v26
    %v28 = vpop.xlane.xlu0 %27
    %v29 = vrcp.pop 64.0
    %v30 = vmul.f32 %v28, %v29
    %v31 = vsub.f32 %v22, %v30
    %v32 = vmul.f32 %v31, %v31
    %v33 = vsel %vm25, %v32, 0.0
    %34 = vadd.xlane.f32.xlu0 %v33
    %v35 = vpop.xlane.xlu0 %34
    %v36 = vmul.f32 %v35, %v29
    %v37 = vadd.f32 %v36, 1e-06
    %v38 = vrsqrt.pop %v37
    %v39 = vmul.f32 %v31, %v38
    %v41 = vlaneseq
    %v42 = vshrl.u32 %v41, 7
    %v43 = vsub.s32 0, %v42
    %v44 = vrot.slane %v23, %v43
    %v46 = vmul.f32 %v39, %v44
    %v48 = vlaneseq
    %v49 = vshrl.u32 %v48, 7
    %v50 = vsub.s32 0, %v49
    %v51 = vrot.slane %v24, %v50
    %v53 = vadd.f32 %v46, %v51
    %v54 = vpack.c.bf16 %v53, %v53
    %v55 = vld [vmem:[%s3] sm:$0xf]
    %v56 = vld [vmem:[%s3 + $0x4] sm:$0xf]
    %v57 = vld [vmem:[%s3 + $0x8] sm:$0xf]
    %v58 = vld [vmem:[%s3 + $0xc] sm:$0xf]
    %v59 = vld [vmem:[%s3 + $0x10] sm:$0xf]
    %v60 = vld [vmem:[%s3 + $0x14] sm:$0xf]
    %v61 = vld [vmem:[%s3 + $0x18] sm:$0xf]
    %v62 = vld [vmem:[%s3 + $0x1c] sm:$0xf]
    %v63 = vld [vmem:[%s4] sm:$0x1]
    %v65 = vlaneseq
    %v66 = vshrl.u32 %v65, 7
    %v67 = vsub.s32 0, %v66
    %v68 = vrot.slane %v63, %v67
    %v78 = vunpack.c.l.b16 %v55
    %v79 = vunpack.c.l.b16 %v56
    %v80 = vunpack.c.l.b16 %v57
    %v81 = vunpack.c.l.b16 %v58
    %v82 = vunpack.c.l.b16 %v59
    %v83 = vunpack.c.l.b16 %v60
    %v84 = vunpack.c.l.b16 %v61
    %v85 = vunpack.c.l.b16 %v62
    %v86 = vpack.c.b16 %v79, %v78
    %v87 = vpack.c.b16 %v81, %v80
    %v88 = vpack.c.b16 %v83, %v82
    %v89 = vpack.c.b16 %v85, %v84
    %vm94 = vcmask 523264
    %v96 = vsel %vm94, %v54, 0
    %98 = vmatprep.subr.bf16.mxu0 0
    %99 = vmatpush1.bf16.msra.mxu0 %v86
    %100 = vmatprep.subr.bf16.mxu0 0
    %101 = vmatpush1.bf16.msra.mxu0 %v87
    %102 = vmatprep.subr.bf16.mxu0 0
    %103 = vmatpush1.bf16.msra.mxu0 %v88
    %104 = vmatprep.subr.bf16.mxu0 0
    %105 = vmatpush1.bf16.msra.mxu0 %v89
    %106 = vmatprep.subr.bf16.mxu0 0
    %107 = vmatpush1.bf16.msra.mxu0 0
    %108 = vmatprep.subr.bf16.mxu0 0
    %109 = vmatpush1.bf16.msra.mxu0 0
    %110 = vmatprep.subr.bf16.mxu0 0
    %111 = vmatpush1.bf16.msra.mxu0 0
    %112 = vmatprep.subr.bf16.mxu0 0
    %113 = vmatpush1.bf16.msra.mxu0 0
    %114 = vmatprep.subr.bf16.mxu0 0
    %115 = vmatpush1.bf16.msra.mxu0 0
    %116 = vmatprep.subr.bf16.mxu0 0
    %117 = vmatpush1.bf16.msra.mxu0 0
    %118 = vmatprep.subr.bf16.mxu0 0
    %119 = vmatpush1.bf16.msra.mxu0 0
    %120 = vmatprep.subr.bf16.mxu0 0
    %121 = vmatpush1.bf16.msra.mxu0 0
    %122 = vmatprep.subr.bf16.mxu0 0
    %123 = vmatpush1.bf16.msra.mxu0 0
    %124 = vmatprep.subr.bf16.mxu0 0
    %125 = vmatpush1.bf16.msra.mxu0 0
    %126 = vmatprep.subr.bf16.mxu0 0
    %127 = vmatpush1.bf16.msra.mxu0 0
    %128 = vmatprep.subr.bf16.mxu0 0
    %129 = vmatpush1.bf16.msra.mxu0 0
    %130 = vmatprep.mubr.bf16.mxu0 0
    %131 = vmatmul.mubr.bf16.gmra.mrb[0].mxu0 %v96
    %v132 = vpop.f32.mrb[0].mxu0
    %v133 = vadd.f32 %v68, %v132
    %v134 = vpop.f32.mrb[0].mxu0
    %v135 = vpop.f32.mrb[0].mxu0
    %v136 = vpop.f32.mrb[0].mxu0
    %137 = vdwg.mxu0
    %138 = vst [vmem:[#allocation2] sm:$0x3] %v133
    // Predicated region
    $region22: #{vit_forward.11} parent=1 // pred_check
      _
    $region23: #{vit_forward.11} parent=1 // pred_check_branch
      %140 = sbr.rel (0) target = $region25
    $region24: #{vit_forward.11} parent=1 // pred_region
      %s142 = ssub.s32 32, 32
      %143 = vsyncadd [#allocation3], %s142
      %s145 = sshll.u32 [#allocation2], 4
      %s146 = int_to_ptr.vmem [resolvable:$true] %s145
      %148 = dma.vmem_to_hbm [thread:$0]  %s146, 32, %s5, [#allocation3]
    $region25: #{vit_forward.11} parent=1 // pred_fallthru
      _
    // Predicated region
    $region26: #{vit_forward.11} parent=1 // pred_check
      _
    $region27: #{vit_forward.11} parent=1 // pred_check_branch
      %150 = sbr.rel (0) target = $region29
    $region28: #{vit_forward.11} parent=1 // pred_region
      %151 = dma.done [#allocation3], 32
    $region29: #{vit_forward.11} parent=1 // pred_fallthru
      _
    %152 = vsyncpa [#allocation3], 1

// kernel: vit_forward.8
$region0: #{vit_forward.8}
  #allocation0 [shape = 'u32[]', space=smem, size = 0x4, offset = 0x4, fixed_abs, tag = 'smem constant byte address 0x4 - core index']
  #allocation1 [shape = 'u32[144,128]{1,0:T(1,128)}', space=vmem, size = 0x12000, scoped, tag = 'internal scratch']
  %s0 = inlined_call_operand.vmem [shape: f32[2,5,64], index: 0, kind: input, shape index: {}, may-alias: {0,7}]
  %s1 = inlined_call_operand.vmem [shape: f32[1,64], index: 1, kind: input, shape index: {}]
  %s2 = inlined_call_operand.vmem [shape: f32[1,64], index: 2, kind: input, shape index: {}]
  %s3 = inlined_call_operand.vmem [shape: bf16[64,128], index: 3, kind: input, shape index: {}]
  %s4 = inlined_call_operand.vmem [shape: f32[1,128], index: 4, kind: input, shape index: {}]
  %s5 = inlined_call_operand.vmem [shape: bf16[128,64], index: 5, kind: input, shape index: {}]
  %s6 = inlined_call_operand.vmem [shape: f32[1,64], index: 6, kind: input, shape index: {}]
  %s7 = inlined_call_operand.vmem [shape: f32[2,5,64], index: 7, kind: output, shape index: {}, may-alias: {0,7}]
  %s8 = sld [smem:[#allocation0]]
  $region61: #{vit_forward.8} parent=0
    _
  %s10 = ssub.s32 1, %s8
  %s11 = scalar_select 0, %s10, %s8
  loop: start=0, step=1, limit=4
  $region2: #{vit_forward.8} parent=0 // loop_pre_header
    _
  $region3: #{vit_forward.8} parent=0 // loop_header
    %s13 = sphi 0, %s17
    %p14 = scmp.ge.s32.totalorder %s13, 4
    %s23 = sphi 0, %s25
    %s26 = sphi 0, %s23
    %s27 = sphi 0, %s26
    %s43 = sphi 0, %s27
    %s47 = sphi 0, %s47
    %s49 = sphi 0, %s47
    %s50 = sphi 0, %s49
    %s64 = sphi 0, %s50
    %s68 = sphi 0, %s68
    %s70 = sphi 0, %s68
    %s71 = sphi 0, %s70
    %s85 = sphi 0, %s71
    %s89 = sphi 0, %s89
    %s91 = sphi 0, %s89
    %s92 = sphi 0, %s91
    %s106 = sphi 0, %s92
    %s110 = sphi 0, %s110
    %s112 = sphi 0, %s110
    %s113 = sphi 0, %s112
    %s127 = sphi 0, %s113
    %s131 = sphi 0, %s131
    %s133 = sphi 0, %s131
    %s134 = sphi 0, %s133
    %s148 = sphi 0, %s134
    %s152 = sphi 0, %s152
    %s154 = sphi 0, %s152
    %s155 = sphi 0, %s154
    %s169 = sphi 0, %s155
    %s175 = sphi 0, %s177
    %s178 = sphi 0, %s175
    %s179 = sphi 0, %s178
    %s195 = sphi 0, %s179
  $region4: #{vit_forward.8} parent=0 // loop_header_branch
    %16 = sbr.rel (%p14) target = $region8
  $region5: #{vit_forward.8} parent=0 // loop_body
    %s18 = ssub.s32 %s13, 1
    %s19 = ssub.s32 %s13, 2
    %s20 = sadd.s32 %s13, 1
    %s21 = ssub.s32 %s13, %s20
    %p22 = scmp.eq.s32.totalorder %s21, 0
    %s24 = sadd.s32 %s23, 1
    %s25 = scalar_select %p22, %s23, %s24
    %p28 = pneg %p22
    %p29 = scmp.eq.s32.totalorder %s13, 1
    %p30 = por %p28, %p29
    %p31 = scmp.ne.s32.totalorder %s23, %s26
    %p32 = scmp.eq.s32.totalorder %s13, 0
    %p33 = por %p31, %p32
    %p34 = scmp.ne.s32.totalorder %s23, %s26
    %p35 = scmp.eq.s32.totalorder %s18, 1
    %p36 = por %p34, %p35
    %p37 = scmp.ne.s32.totalorder %s26, %s27
    %p38 = scmp.eq.s32.totalorder %s18, 0
    %p39 = por %p37, %p38
    %p40 = scmp.ne.s32.totalorder %s26, %s27
    %p41 = scmp.eq.s32.totalorder %s19, 1
    %p42 = por %p40, %p41
    %p44 = scmp.ne.s32.totalorder %s27, %s43
    %p45 = scmp.eq.s32.totalorder %s19, 0
    %p46 = por %p44, %p45
    %s48 = sadd.s32 %s47, 1
    %p51 = scmp.eq.s32.totalorder %s13, 1
    %p52 = scmp.ne.s32.totalorder %s47, %s49
    %p53 = scmp.eq.s32.totalorder %s13, 0
    %p54 = por %p52, %p53
    %p55 = scmp.ne.s32.totalorder %s47, %s49
    %p56 = scmp.eq.s32.totalorder %s18, 1
    %p57 = por %p55, %p56
    %p58 = scmp.ne.s32.totalorder %s49, %s50
    %p59 = scmp.eq.s32.totalorder %s18, 0
    %p60 = por %p58, %p59
    %p61 = scmp.ne.s32.totalorder %s49, %s50
    %p62 = scmp.eq.s32.totalorder %s19, 1
    %p63 = por %p61, %p62
    %p65 = scmp.ne.s32.totalorder %s50, %s64
    %p66 = scmp.eq.s32.totalorder %s19, 0
    %p67 = por %p65, %p66
    %s69 = sadd.s32 %s68, 1
    %p72 = scmp.eq.s32.totalorder %s13, 1
    %p73 = scmp.ne.s32.totalorder %s68, %s70
    %p74 = scmp.eq.s32.totalorder %s13, 0
    %p75 = por %p73, %p74
    %p76 = scmp.ne.s32.totalorder %s68, %s70
    %p77 = scmp.eq.s32.totalorder %s18, 1
    %p78 = por %p76, %p77
    %p79 = scmp.ne.s32.totalorder %s70, %s71
    %p80 = scmp.eq.s32.totalorder %s18, 0
    %p81 = por %p79, %p80
    %p82 = scmp.ne.s32.totalorder %s70, %s71
    %p83 = scmp.eq.s32.totalorder %s19, 1
    %p84 = por %p82, %p83
    %p86 = scmp.ne.s32.totalorder %s71, %s85
    %p87 = scmp.eq.s32.totalorder %s19, 0
    %p88 = por %p86, %p87
    %s90 = sadd.s32 %s89, 1
    %p93 = scmp.eq.s32.totalorder %s13, 1
    %p94 = scmp.ne.s32.totalorder %s89, %s91
    %p95 = scmp.eq.s32.totalorder %s13, 0
    %p96 = por %p94, %p95
    %p97 = scmp.ne.s32.totalorder %s89, %s91
    %p98 = scmp.eq.s32.totalorder %s18, 1
    %p99 = por %p97, %p98
    %p100 = scmp.ne.s32.totalorder %s91, %s92
    %p101 = scmp.eq.s32.totalorder %s18, 0
    %p102 = por %p100, %p101
    %p103 = scmp.ne.s32.totalorder %s91, %s92
    %p104 = scmp.eq.s32.totalorder %s19, 1
    %p105 = por %p103, %p104
    %p107 = scmp.ne.s32.totalorder %s92, %s106
    %p108 = scmp.eq.s32.totalorder %s19, 0
    %p109 = por %p107, %p108
    %s111 = sadd.s32 %s110, 1
    %p114 = scmp.eq.s32.totalorder %s13, 1
    %p115 = scmp.ne.s32.totalorder %s110, %s112
    %p116 = scmp.eq.s32.totalorder %s13, 0
    %p117 = por %p115, %p116
    %p118 = scmp.ne.s32.totalorder %s110, %s112
    %p119 = scmp.eq.s32.totalorder %s18, 1
    %p120 = por %p118, %p119
    %p121 = scmp.ne.s32.totalorder %s112, %s113
    %p122 = scmp.eq.s32.totalorder %s18, 0
    %p123 = por %p121, %p122
    %p124 = scmp.ne.s32.totalorder %s112, %s113
    %p125 = scmp.eq.s32.totalorder %s19, 1
    %p126 = por %p124, %p125
    %p128 = scmp.ne.s32.totalorder %s113, %s127
    %p129 = scmp.eq.s32.totalorder %s19, 0
    %p130 = por %p128, %p129
    %s132 = sadd.s32 %s131, 1
    %p135 = scmp.eq.s32.totalorder %s13, 1
    %p136 = scmp.ne.s32.totalorder %s131, %s133
    %p137 = scmp.eq.s32.totalorder %s13, 0
    %p138 = por %p136, %p137
    %p139 = scmp.ne.s32.totalorder %s131, %s133
    %p140 = scmp.eq.s32.totalorder %s18, 1
    %p141 = por %p139, %p140
    %p142 = scmp.ne.s32.totalorder %s133, %s134
    %p143 = scmp.eq.s32.totalorder %s18, 0
    %p144 = por %p142, %p143
    %p145 = scmp.ne.s32.totalorder %s133, %s134
    %p146 = scmp.eq.s32.totalorder %s19, 1
    %p147 = por %p145, %p146
    %p149 = scmp.ne.s32.totalorder %s134, %s148
    %p150 = scmp.eq.s32.totalorder %s19, 0
    %p151 = por %p149, %p150
    %s153 = sadd.s32 %s152, 1
    %p156 = scmp.eq.s32.totalorder %s13, 1
    %p157 = scmp.ne.s32.totalorder %s152, %s154
    %p158 = scmp.eq.s32.totalorder %s13, 0
    %p159 = por %p157, %p158
    %p160 = scmp.ne.s32.totalorder %s152, %s154
    %p161 = scmp.eq.s32.totalorder %s18, 1
    %p162 = por %p160, %p161
    %p163 = scmp.ne.s32.totalorder %s154, %s155
    %p164 = scmp.eq.s32.totalorder %s18, 0
    %p165 = por %p163, %p164
    %p166 = scmp.ne.s32.totalorder %s154, %s155
    %p167 = scmp.eq.s32.totalorder %s19, 1
    %p168 = por %p166, %p167
    %p170 = scmp.ne.s32.totalorder %s155, %s169
    %p171 = scmp.eq.s32.totalorder %s19, 0
    %p172 = por %p170, %p171
    %s173 = ssub.s32 %s13, %s20
    %p174 = scmp.eq.s32.totalorder %s173, 0
    %s176 = sadd.s32 %s175, 1
    %s177 = scalar_select %p174, %s175, %s176
    %p180 = pneg %p174
    %p181 = scmp.eq.s32.totalorder %s13, 1
    %p182 = por %p180, %p181
    %p183 = scmp.ne.s32.totalorder %s175, %s178
    %p184 = scmp.eq.s32.totalorder %s13, 0
    %p185 = por %p183, %p184
    %p186 = scmp.ne.s32.totalorder %s175, %s178
    %p187 = scmp.eq.s32.totalorder %s18, 1
    %p188 = por %p186, %p187
    %p189 = scmp.ne.s32.totalorder %s178, %s179
    %p190 = scmp.eq.s32.totalorder %s18, 0
    %p191 = por %p189, %p190
    %p192 = scmp.ne.s32.totalorder %s178, %s179
    %p193 = scmp.eq.s32.totalorder %s19, 1
    %p194 = por %p192, %p193
    %p196 = scmp.ne.s32.totalorder %s179, %s195
    %p197 = scmp.eq.s32.totalorder %s19, 0
    %p198 = por %p196, %p197
    %p199 = scmp.le.s32.totalorder 1, %s13
    %p200 = scmp.lt.s32.totalorder %s13, 3
    %p201 = pnand %p199, %p200
    %p202 = pneg %p201
    // Predicated region
    $region9: #{vit_forward.8} parent=5 // pred_check
      _
    $region10: #{vit_forward.8} parent=5 // pred_check_branch
      %204 = sbr.rel (%p201) target = $region12
    $region11: #{vit_forward.8} parent=5 // pred_region
      %s205 = ssub.s32 %s13, 1
      // Predicated region
      $region13: #{vit_forward.8} parent=11 // pred_check
        %p206 = pneg %p60
      $region14: #{vit_forward.8} parent=11 // pred_check_branch
        %208 = sbr.rel (%p206) target = $region16
      $region15: #{vit_forward.8} parent=11 // pred_region
        _
      $region16: #{vit_forward.8} parent=11 // pred_fallthru
        _
      // Predicated region
      $region17: #{vit_forward.8} parent=11 // pred_check
        %p209 = pneg %p81
      $region18: #{vit_forward.8} parent=11 // pred_check_branch
        %211 = sbr.rel (%p209) target = $region20
      $region19: #{vit_forward.8} parent=11 // pred_region
        _
      $region20: #{vit_forward.8} parent=11 // pred_fallthru
        _
      // Predicated region
      $region21: #{vit_forward.8} parent=11 // pred_check
        %p212 = pneg %p102
      $region22: #{vit_forward.8} parent=11 // pred_check_branch
        %214 = sbr.rel (%p212) target = $region24
      $region23: #{vit_forward.8} parent=11 // pred_region
        _
      $region24: #{vit_forward.8} parent=11 // pred_fallthru
        _
      // Predicated region
      $region25: #{vit_forward.8} parent=11 // pred_check
        %p215 = pneg %p123
      $region26: #{vit_forward.8} parent=11 // pred_check_branch
        %217 = sbr.rel (%p215) target = $region28
      $region27: #{vit_forward.8} parent=11 // pred_region
        _
      $region28: #{vit_forward.8} parent=11 // pred_fallthru
        _
      // Predicated region
      $region29: #{vit_forward.8} parent=11 // pred_check
        %p218 = pneg %p144
      $region30: #{vit_forward.8} parent=11 // pred_check_branch
        %220 = sbr.rel (%p218) target = $region32
      $region31: #{vit_forward.8} parent=11 // pred_region
        _
      $region32: #{vit_forward.8} parent=11 // pred_fallthru
        _
      // Predicated region
      $region33: #{vit_forward.8} parent=11 // pred_check
        %p221 = pneg %p165
      $region34: #{vit_forward.8} parent=11 // pred_check_branch
        %223 = sbr.rel (%p221) target = $region36
      $region35: #{vit_forward.8} parent=11 // pred_region
        _
      $region36: #{vit_forward.8} parent=11 // pred_fallthru
        _
    $region12: #{vit_forward.8} parent=5 // pred_fallthru
      _
    %p224 = scmp.lt.s32.totalorder %s13, 2
    // Predicated region
    $region37: #{vit_forward.8} parent=5 // pred_check
      %p225 = pneg %p224
    $region38: #{vit_forward.8} parent=5 // pred_check_branch
      %227 = sbr.rel (%p225) target = $region40
    $region39: #{vit_forward.8} parent=5 // pred_region
      // Predicated region
      $region41: #{vit_forward.8} parent=39 // pred_check
        %p228 = pneg %p33
      $region42: #{vit_forward.8} parent=39 // pred_check_branch
        %230 = sbr.rel (%p228) target = $region44
      $region43: #{vit_forward.8} parent=39 // pred_region
        %p231 = scmp.lt.s32.totalorder %s13, 1
        %s232 = scalar_select %p231, %s13, 1
        %s233 = smul.addr %s232, 8
        %s234 = scalar_lea.vmem %s0, %s233
      $region44: #{vit_forward.8} parent=39 // pred_fallthru
        _
    $region40: #{vit_forward.8} parent=5 // pred_fallthru
      _
    %p235 = scmp.le.s32.totalorder 1, %s13
    %p236 = scmp.lt.s32.totalorder %s13, 3
    %p237 = pnand %p235, %p236
    %p238 = pneg %p237
    // Predicated region
    $region45: #{vit_forward.8} parent=5 // pred_check
      _
    $region46: #{vit_forward.8} parent=5 // pred_check_branch
      %240 = sbr.rel (%p237) target = $region48
    $region47: #{vit_forward.8} parent=5 // pred_region
      %s241 = ssub.s32 %s13, 1
      %p242 = scmp.lt.s32.totalorder %s18, 1
      %s243 = scalar_select %p242, %s18, 1
      %s244 = smul.addr %s243, 8
      %s245 = scalar_lea.vmem %s0, %s244
      %p246 = pneg %p39
      %p247 = pneg %p36
      %p248 = pneg %p60
      %p249 = pneg %p57
      %p250 = pneg %p81
      %p251 = pneg %p78
      %p252 = pneg %p102
      %p253 = pneg %p99
      %p254 = pneg %p123
      %p255 = pneg %p120
      %p256 = pneg %p144
      %p257 = pneg %p141
      %p258 = pneg %p165
      %p259 = pneg %p162
      %p260 = pneg %p191
      %p261 = pneg %p188
      %p262 = scmp.lt.s32.totalorder %s18, 1
      %s263 = scalar_select %p262, %s18, 1
      %s264 = smul.addr %s263, 8
      %s265 = scalar_lea.vmem %s7, %s264
      %p266 = scmp.lt.s32.totalorder %s18, 1
      %s267 = scalar_select %p266, %s18, 1
      %s268 = smul.addr %s267, 8
      %s269 = scalar_lea.vmem %s0, %s268
      %p270 = scmp.lt.s32.totalorder %s18, 1
      %s271 = scalar_select %p270, %s18, 1
      %s272 = smul.addr %s271, 8
      %s273 = scalar_lea.vmem %s7, %s272
      %v275 = vld [vmem:[%s269] sm:$0x1f]
      %v276 = vld [vmem:[%s1] sm:$0x1]
      %v277 = vld [vmem:[%s2] sm:$0x1]
      %vm278 = vcmask 520192
      %v279 = vsel %vm278, %v275, 0.0
      %280 = vadd.xlane.f32.xlu0 %v279
      %v281 = vpop.xlane.xlu0 %280
      %v282 = vrcp.pop 64.0
      %v283 = vmul.f32 %v281, %v282
      %v284 = vsub.f32 %v275, %v283
      %v285 = vmul.f32 %v284, %v284
      %v286 = vsel %vm278, %v285, 0.0
      %287 = vadd.xlane.f32.xlu0 %v286
      %v288 = vpop.xlane.xlu0 %287
      %v289 = vmul.f32 %v288, %v282
      %v290 = vadd.f32 %v289, 1e-06
      %v291 = vrsqrt.pop %v290
      %v292 = vmul.f32 %v284, %v291
      %v294 = vlaneseq
      %v295 = vshrl.u32 %v294, 7
      %v296 = vsub.s32 0, %v295
      %v297 = vrot.slane %v276, %v296
      %v299 = vmul.f32 %v292, %v297
      %v301 = vlaneseq
      %v302 = vshrl.u32 %v301, 7
      %v303 = vsub.s32 0, %v302
      %v304 = vrot.slane %v277, %v303
      %v306 = vadd.f32 %v299, %v304
      %v307 = vpack.c.bf16 %v306, %v306
      %v308 = vld [vmem:[%s3] sm:$0xf]
      %v309 = vld [vmem:[%s3 + $0x4] sm:$0xf]
      %v310 = vld [vmem:[%s3 + $0x8] sm:$0xf]
      %v311 = vld [vmem:[%s3 + $0xc] sm:$0xf]
      %v312 = vld [vmem:[%s3 + $0x10] sm:$0xf]
      %v313 = vld [vmem:[%s3 + $0x14] sm:$0xf]
      %v314 = vld [vmem:[%s3 + $0x18] sm:$0xf]
      %v315 = vld [vmem:[%s3 + $0x1c] sm:$0xf]
      %v316 = vld [vmem:[%s4] sm:$0x1]
      %v318 = vlaneseq
      %v319 = vshrl.u32 %v318, 7
      %v320 = vsub.s32 0, %v319
      %v321 = vrot.slane %v316, %v320
      %v331 = vunpack.c.l.b16 %v308
      %v332 = vunpack.c.l.b16 %v309
      %v333 = vunpack.c.l.b16 %v310
      %v334 = vunpack.c.l.b16 %v311
      %v335 = vunpack.c.l.b16 %v312
      %v336 = vunpack.c.l.b16 %v313
      %v337 = vunpack.c.l.b16 %v314
      %v338 = vunpack.c.l.b16 %v315
      %v339 = vpack.c.b16 %v332, %v331
      %v340 = vpack.c.b16 %v334, %v333
      %v341 = vpack.c.b16 %v336, %v335
      %v342 = vpack.c.b16 %v338, %v337
      %vm347 = vcmask 523264
      %v349 = vsel %vm347, %v307, 0
      %351 = vmatprep.subr.bf16.mxu0 0
      %352 = vmatpush1.bf16.msra.mxu0 %v339
      %353 = vmatprep.subr.bf16.mxu0 0
      %354 = vmatpush1.bf16.msra.mxu0 %v340
      %355 = vmatprep.subr.bf16.mxu0 0
      %356 = vmatpush1.bf16.msra.mxu0 %v341
      %357 = vmatprep.subr.bf16.mxu0 0
      %358 = vmatpush1.bf16.msra.mxu0 %v342
      %359 = vmatprep.subr.bf16.mxu0 0
      %360 = vmatpush1.bf16.msra.mxu0 0
      %361 = vmatprep.subr.bf16.mxu0 0
      %362 = vmatpush1.bf16.msra.mxu0 0
      %363 = vmatprep.subr.bf16.mxu0 0
      %364 = vmatpush1.bf16.msra.mxu0 0
      %365 = vmatprep.subr.bf16.mxu0 0
      %366 = vmatpush1.bf16.msra.mxu0 0
      %367 = vmatprep.subr.bf16.mxu0 0
      %368 = vmatpush1.bf16.msra.mxu0 0
      %369 = vmatprep.subr.bf16.mxu0 0
      %370 = vmatpush1.bf16.msra.mxu0 0
      %371 = vmatprep.subr.bf16.mxu0 0
      %372 = vmatpush1.bf16.msra.mxu0 0
      %373 = vmatprep.subr.bf16.mxu0 0
      %374 = vmatpush1.bf16.msra.mxu0 0
      %375 = vmatprep.subr.bf16.mxu0 0
      %376 = vmatpush1.bf16.msra.mxu0 0
      %377 = vmatprep.subr.bf16.mxu0 0
      %378 = vmatpush1.bf16.msra.mxu0 0
      %379 = vmatprep.subr.bf16.mxu0 0
      %380 = vmatpush1.bf16.msra.mxu0 0
      %381 = vmatprep.subr.bf16.mxu0 0
      %382 = vmatpush1.bf16.msra.mxu0 0
      %383 = vmatprep.mubr.bf16.mxu0 0
      %384 = vmatmul.mubr.bf16.gmra.mrb[0].mxu0 %v349
      %v385 = vpop.f32.mrb[0].mxu0
      %v386 = vadd.f32 %v321, %v385
      %v387 = vpop.f32.mrb[0].mxu0
      %v388 = vpop.f32.mrb[0].mxu0
      %v389 = vpop.f32.mrb[0].mxu0
      %390 = vdwg.mxu0
      %v391 = vmul.f32 %v386, 0.5
      %v392 = vmul.f32 %v386, 0.70710677
      %v393 = verf.f32.pop %v392
      %v394 = vadd.f32 %v393, 1.0
      %v395 = vmul.f32 %v391, %v394
      %v396 = vpack.c.bf16 %v395, %v395
      %v397 = vld [vmem:[%s5] sm:$0xf]
      %v398 = vld [vmem:[%s5 + $0x4] sm:$0xf]
      %v399 = vld [vmem:[%s5 + $0x8] sm:$0xf]
      %v400 = vld [vmem:[%s5 + $0xc] sm:$0xf]
      %v401 = vld [vmem:[%s5 + $0x10] sm:$0xf]
      %v402 = vld [vmem:[%s5 + $0x14] sm:$0xf]
      %v403 = vld [vmem:[%s5 + $0x18] sm:$0xf]
      %v404 = vld [vmem:[%s5 + $0x1c] sm:$0xf]
      %v405 = vld [vmem:[%s5 + $0x20] sm:$0xf]
      %v406 = vld [vmem:[%s5 + $0x24] sm:$0xf]
      %v407 = vld [vmem:[%s5 + $0x28] sm:$0xf]
      %v408 = vld [vmem:[%s5 + $0x2c] sm:$0xf]
      %v409 = vld [vmem:[%s5 + $0x30] sm:$0xf]
      %v410 = vld [vmem:[%s5 + $0x34] sm:$0xf]
      %v411 = vld [vmem:[%s5 + $0x38] sm:$0xf]
      %v412 = vld [vmem:[%s5 + $0x3c] sm:$0xf]
      %v413 = vld [vmem:[%s6] sm:$0x1]
      %v415 = vlaneseq
      %v416 = vshrl.u32 %v415, 7
      %v417 = vsub.s32 0, %v416
      %v418 = vrot.slane %v413, %v417
      %v436 = vunpack.c.l.b16 %v397
      %v437 = vunpack.c.l.b16 %v398
      %v438 = vunpack.c.l.b16 %v399
      %v439 = vunpack.c.l.b16 %v400
      %v440 = vunpack.c.l.b16 %v401
      %v441 = vunpack.c.l.b16 %v402
      %v442 = vunpack.c.l.b16 %v403
      %v443 = vunpack.c.l.b16 %v404
      %v444 = vunpack.c.l.b16 %v405
      %v445 = vunpack.c.l.b16 %v406
      %v446 = vunpack.c.l.b16 %v407
      %v447 = vunpack.c.l.b16 %v408
      %v448 = vunpack.c.l.b16 %v409
      %v449 = vunpack.c.l.b16 %v410
      %v450 = vunpack.c.l.b16 %v411
      %v451 = vunpack.c.l.b16 %v412
      %v452 = vpack.c.b16 %v437, %v436
      %v453 = vpack.c.b16 %v439, %v438
      %v454 = vpack.c.b16 %v441, %v440
      %v455 = vpack.c.b16 %v443, %v442
      %v456 = vpack.c.b16 %v445, %v444
      %v457 = vpack.c.b16 %v447, %v446
      %v458 = vpack.c.b16 %v449, %v448
      %v459 = vpack.c.b16 %v451, %v450
      %468 = vmatprep.subr.bf16.mxu0 0
      %469 = vmatpush1.bf16.msra.mxu0 %v452
      %470 = vmatprep.subr.bf16.mxu0 0
      %471 = vmatpush1.bf16.msra.mxu0 %v453
      %472 = vmatprep.subr.bf16.mxu0 0
      %473 = vmatpush1.bf16.msra.mxu0 %v454
      %474 = vmatprep.subr.bf16.mxu0 0
      %475 = vmatpush1.bf16.msra.mxu0 %v455
      %476 = vmatprep.subr.bf16.mxu0 0
      %477 = vmatpush1.bf16.msra.mxu0 %v456
      %478 = vmatprep.subr.bf16.mxu0 0
      %479 = vmatpush1.bf16.msra.mxu0 %v457
      %480 = vmatprep.subr.bf16.mxu0 0
      %481 = vmatpush1.bf16.msra.mxu0 %v458
      %482 = vmatprep.subr.bf16.mxu0 0
      %483 = vmatpush1.bf16.msra.mxu0 %v459
      %484 = vmatprep.subr.bf16.mxu0 0
      %485 = vmatpush1.bf16.msra.mxu0 0
      %486 = vmatprep.subr.bf16.mxu0 0
      %487 = vmatpush1.bf16.msra.mxu0 0
      %488 = vmatprep.subr.bf16.mxu0 0
      %489 = vmatpush1.bf16.msra.mxu0 0
      %490 = vmatprep.subr.bf16.mxu0 0
      %491 = vmatpush1.bf16.msra.mxu0 0
      %492 = vmatprep.subr.bf16.mxu0 0
      %493 = vmatpush1.bf16.msra.mxu0 0
      %494 = vmatprep.subr.bf16.mxu0 0
      %495 = vmatpush1.bf16.msra.mxu0 0
      %496 = vmatprep.subr.bf16.mxu0 0
      %497 = vmatpush1.bf16.msra.mxu0 0
      %498 = vmatprep.subr.bf16.mxu0 0
      %499 = vmatpush1.bf16.msra.mxu0 0
      %500 = vmatprep.mubr.bf16.mxu0 0
      %501 = vmatmul.mubr.bf16.gmra.mrb[0].mxu0 %v396
      %v502 = vpop.f32.mrb[0].mxu0
      %v503 = vadd.f32 %v418, %v502
      %v504 = vpop.f32.mrb[0].mxu0
      %v505 = vpop.f32.mrb[0].mxu0
      %v506 = vpop.f32.mrb[0].mxu0
      %507 = vdwg.mxu0
      %v508 = vadd.f32 %v503, %v275
      %509 = vst.msk [vmem:[%s273] sm:$0x1f] %vm278, %v508
      %p510 = scmp.lt.s32.totalorder %s18, 1
      %s511 = scalar_select %p510, %s18, 1
      %s512 = smul.addr %s511, 8
      %s513 = scalar_lea.vmem %s7, %s512
      // Predicated region
      $region49: #{vit_forward.8} parent=47 // pred_check
        %p514 = pneg %p188
      $region50: #{vit_forward.8} parent=47 // pred_check_branch
        %516 = sbr.rel (%p514) target = $region52
      $region51: #{vit_forward.8} parent=47 // pred_region
        _
      $region52: #{vit_forward.8} parent=47 // pred_fallthru
        _
    $region48: #{vit_forward.8} parent=5 // pred_fallthru
      _
    %p517 = scmp.le.s32.totalorder 2, %s13
    // Predicated region
    $region53: #{vit_forward.8} parent=5 // pred_check
      %p518 = pneg %p517
    $region54: #{vit_forward.8} parent=5 // pred_check_branch
      %520 = sbr.rel (%p518) target = $region56
    $region55: #{vit_forward.8} parent=5 // pred_region
      %s521 = ssub.s32 %s13, 2
      // Predicated region
      $region57: #{vit_forward.8} parent=55 // pred_check
        %p522 = pneg %p194
      $region58: #{vit_forward.8} parent=55 // pred_check_branch
        %524 = sbr.rel (%p522) target = $region60
      $region59: #{vit_forward.8} parent=55 // pred_region
        %p525 = scmp.lt.s32.totalorder %s19, 1
        %s526 = scalar_select %p525, %s19, 1
        %s527 = smul.addr %s526, 8
        %s528 = scalar_lea.vmem %s7, %s527
      $region60: #{vit_forward.8} parent=55 // pred_fallthru
        _
    $region56: #{vit_forward.8} parent=5 // pred_fallthru
      _
  $region6: #{vit_forward.8} parent=0 // loop_footer
    %s17 = sadd.s32 1, %s13
  $region7: #{vit_forward.8} parent=0 // loop_footer_branch
    %12 = sbr.rel target = $region3
  $region8: #{vit_forward.8} parent=0 // loop_exit
    _

// kernel: vit_forward.6
$region0: #{vit_forward.6}
  #allocation0 [shape = 'u32[]', space=smem, size = 0x4, offset = 0x4, fixed_abs, tag = 'smem constant byte address 0x4 - core index']
  #allocation1 [shape = 'u32[144,128]{1,0:T(1,128)}', space=vmem, size = 0x12000, scoped, tag = 'internal scratch']
  %s0 = inlined_call_operand.vmem [shape: f32[2,4,768], index: 0, kind: input, shape index: {}]
  %s1 = inlined_call_operand.vmem [shape: bf16[768,64], index: 1, kind: input, shape index: {}]
  %s2 = inlined_call_operand.vmem [shape: f32[4,64], index: 2, kind: input, shape index: {}]
  %s3 = inlined_call_operand.vmem [shape: f32[2,4,64], index: 3, kind: output, shape index: {}]
  %s4 = sld [smem:[#allocation0]]
  $region45: #{vit_forward.6} parent=0
    _
  %s6 = ssub.s32 1, %s4
  %s7 = scalar_select 0, %s6, %s4
  loop: start=0, step=1, limit=4
  $region2: #{vit_forward.6} parent=0 // loop_pre_header
    _
  $region3: #{vit_forward.6} parent=0 // loop_header
    %s9 = sphi 0, %s13
    %p10 = scmp.ge.s32.totalorder %s9, 4
    %s19 = sphi 0, %s21
    %s22 = sphi 0, %s19
    %s23 = sphi 0, %s22
    %s39 = sphi 0, %s23
    %s43 = sphi 0, %s43
    %s45 = sphi 0, %s43
    %s46 = sphi 0, %s45
    %s60 = sphi 0, %s46
    %s64 = sphi 0, %s64
    %s66 = sphi 0, %s64
    %s67 = sphi 0, %s66
    %s81 = sphi 0, %s67
    %s87 = sphi 0, %s89
    %s90 = sphi 0, %s87
    %s91 = sphi 0, %s90
    %s107 = sphi 0, %s91
  $region4: #{vit_forward.6} parent=0 // loop_header_branch
    %12 = sbr.rel (%p10) target = $region8
  $region5: #{vit_forward.6} parent=0 // loop_body
    %s14 = ssub.s32 %s9, 1
    %s15 = ssub.s32 %s9, 2
    %s16 = sadd.s32 %s9, 1
    %s17 = ssub.s32 %s9, %s16
    %p18 = scmp.eq.s32.totalorder %s17, 0
    %s20 = sadd.s32 %s19, 1
    %s21 = scalar_select %p18, %s19, %s20
    %p24 = pneg %p18
    %p25 = scmp.eq.s32.totalorder %s9, 1
    %p26 = por %p24, %p25
    %p27 = scmp.ne.s32.totalorder %s19, %s22
    %p28 = scmp.eq.s32.totalorder %s9, 0
    %p29 = por %p27, %p28
    %p30 = scmp.ne.s32.totalorder %s19, %s22
    %p31 = scmp.eq.s32.totalorder %s14, 1
    %p32 = por %p30, %p31
    %p33 = scmp.ne.s32.totalorder %s22, %s23
    %p34 = scmp.eq.s32.totalorder %s14, 0
    %p35 = por %p33, %p34
    %p36 = scmp.ne.s32.totalorder %s22, %s23
    %p37 = scmp.eq.s32.totalorder %s15, 1
    %p38 = por %p36, %p37
    %p40 = scmp.ne.s32.totalorder %s23, %s39
    %p41 = scmp.eq.s32.totalorder %s15, 0
    %p42 = por %p40, %p41
    %s44 = sadd.s32 %s43, 1
    %p47 = scmp.eq.s32.totalorder %s9, 1
    %p48 = scmp.ne.s32.totalorder %s43, %s45
    %p49 = scmp.eq.s32.totalorder %s9, 0
    %p50 = por %p48, %p49
    %p51 = scmp.ne.s32.totalorder %s43, %s45
    %p52 = scmp.eq.s32.totalorder %s14, 1
    %p53 = por %p51, %p52
    %p54 = scmp.ne.s32.totalorder %s45, %s46
    %p55 = scmp.eq.s32.totalorder %s14, 0
    %p56 = por %p54, %p55
    %p57 = scmp.ne.s32.totalorder %s45, %s46
    %p58 = scmp.eq.s32.totalorder %s15, 1
    %p59 = por %p57, %p58
    %p61 = scmp.ne.s32.totalorder %s46, %s60
    %p62 = scmp.eq.s32.totalorder %s15, 0
    %p63 = por %p61, %p62
    %s65 = sadd.s32 %s64, 1
    %p68 = scmp.eq.s32.totalorder %s9, 1
    %p69 = scmp.ne.s32.totalorder %s64, %s66
    %p70 = scmp.eq.s32.totalorder %s9, 0
    %p71 = por %p69, %p70
    %p72 = scmp.ne.s32.totalorder %s64, %s66
    %p73 = scmp.eq.s32.totalorder %s14, 1
    %p74 = por %p72, %p73
    %p75 = scmp.ne.s32.totalorder %s66, %s67
    %p76 = scmp.eq.s32.totalorder %s14, 0
    %p77 = por %p75, %p76
    %p78 = scmp.ne.s32.totalorder %s66, %s67
    %p79 = scmp.eq.s32.totalorder %s15, 1
    %p80 = por %p78, %p79
    %p82 = scmp.ne.s32.totalorder %s67, %s81
    %p83 = scmp.eq.s32.totalorder %s15, 0
    %p84 = por %p82, %p83
    %s85 = ssub.s32 %s9, %s16
    %p86 = scmp.eq.s32.totalorder %s85, 0
    %s88 = sadd.s32 %s87, 1
    %s89 = scalar_select %p86, %s87, %s88
    %p92 = pneg %p86
    %p93 = scmp.eq.s32.totalorder %s9, 1
    %p94 = por %p92, %p93
    %p95 = scmp.ne.s32.totalorder %s87, %s90
    %p96 = scmp.eq.s32.totalorder %s9, 0
    %p97 = por %p95, %p96
    %p98 = scmp.ne.s32.totalorder %s87, %s90
    %p99 = scmp.eq.s32.totalorder %s14, 1
    %p100 = por %p98, %p99
    %p101 = scmp.ne.s32.totalorder %s90, %s91
    %p102 = scmp.eq.s32.totalorder %s14, 0
    %p103 = por %p101, %p102
    %p104 = scmp.ne.s32.totalorder %s90, %s91
    %p105 = scmp.eq.s32.totalorder %s15, 1
    %p106 = por %p104, %p105
    %p108 = scmp.ne.s32.totalorder %s91, %s107
    %p109 = scmp.eq.s32.totalorder %s15, 0
    %p110 = por %p108, %p109
    %p111 = scmp.le.s32.totalorder 1, %s9
    %p112 = scmp.lt.s32.totalorder %s9, 3
    %p113 = pnand %p111, %p112
    %p114 = pneg %p113
    // Predicated region
    $region9: #{vit_forward.6} parent=5 // pred_check
      _
    $region10: #{vit_forward.6} parent=5 // pred_check_branch
      %116 = sbr.rel (%p113) target = $region12
    $region11: #{vit_forward.6} parent=5 // pred_region
      %s117 = ssub.s32 %s9, 1
      // Predicated region
      $region13: #{vit_forward.6} parent=11 // pred_check
        %p118 = pneg %p56
      $region14: #{vit_forward.6} parent=11 // pred_check_branch
        %120 = sbr.rel (%p118) target = $region16
      $region15: #{vit_forward.6} parent=11 // pred_region
        _
      $region16: #{vit_forward.6} parent=11 // pred_fallthru
        _
      // Predicated region
      $region17: #{vit_forward.6} parent=11 // pred_check
        %p121 = pneg %p77
      $region18: #{vit_forward.6} parent=11 // pred_check_branch
        %123 = sbr.rel (%p121) target = $region20
      $region19: #{vit_forward.6} parent=11 // pred_region
        _
      $region20: #{vit_forward.6} parent=11 // pred_fallthru
        _
    $region12: #{vit_forward.6} parent=5 // pred_fallthru
      _
    %p124 = scmp.lt.s32.totalorder %s9, 2
    // Predicated region
    $region21: #{vit_forward.6} parent=5 // pred_check
      %p125 = pneg %p124
    $region22: #{vit_forward.6} parent=5 // pred_check_branch
      %127 = sbr.rel (%p125) target = $region24
    $region23: #{vit_forward.6} parent=5 // pred_region
      // Predicated region
      $region25: #{vit_forward.6} parent=23 // pred_check
        %p128 = pneg %p29
      $region26: #{vit_forward.6} parent=23 // pred_check_branch
        %130 = sbr.rel (%p128) target = $region28
      $region27: #{vit_forward.6} parent=23 // pred_region
        %p131 = scmp.lt.s32.totalorder %s9, 1
        %s132 = scalar_select %p131, %s9, 1
        %s133 = smul.addr %s132, 6
        %s134 = smul.addr %s133, 4
        %s135 = scalar_lea.vmem %s0, %s134
      $region28: #{vit_forward.6} parent=23 // pred_fallthru
        _
    $region24: #{vit_forward.6} parent=5 // pred_fallthru
      _
    %p136 = scmp.le.s32.totalorder 1, %s9
    %p137 = scmp.lt.s32.totalorder %s9, 3
    %p138 = pnand %p136, %p137
    %p139 = pneg %p138
    // Predicated region
    $region29: #{vit_forward.6} parent=5 // pred_check
      _
    $region30: #{vit_forward.6} parent=5 // pred_check_branch
      %141 = sbr.rel (%p138) target = $region32
    $region31: #{vit_forward.6} parent=5 // pred_region
      %s142 = ssub.s32 %s9, 1
      %p143 = scmp.lt.s32.totalorder %s14, 1
      %s144 = scalar_select %p143, %s14, 1
      %s145 = smul.addr %s144, 6
      %s146 = smul.addr %s145, 4
      %s147 = scalar_lea.vmem %s0, %s146
      %p148 = pneg %p35
      %p149 = pneg %p32
      %p150 = pneg %p56
      %p151 = pneg %p53
      %p152 = pneg %p77
      %p153 = pneg %p74
      %p154 = pneg %p103
      %p155 = pneg %p100
      %p156 = scmp.lt.s32.totalorder %s14, 1
      %s157 = scalar_select %p156, %s14, 1
      %s158 = smul.addr %s157, 4
      %s159 = scalar_lea.vmem %s3, %s158
      %p160 = scmp.lt.s32.totalorder %s14, 1
      %s161 = scalar_select %p160, %s14, 1
      %s162 = smul.addr %s161, 6
      %s163 = smul.addr %s162, 4
      %s164 = scalar_lea.vmem %s0, %s163
      %p165 = scmp.lt.s32.totalorder %s14, 1
      %s166 = scalar_select %p165, %s14, 1
      %s167 = smul.addr %s166, 4
      %s168 = scalar_lea.vmem %s3, %s167
      %v170 = vld [vmem:[%s164] sm:$0xff]
      %v171 = vld [vmem:[%s164 + $0x8] sm:$0xff]
      %v172 = vld [vmem:[%s164 + $0x10] sm:$0xff]
      %v176 = vcombine.high %v170, %v170
      %v177 = vcombine.high %v171, %v171
      %v178 = vcombine.high %v172, %v172
      %v182 = vpack.c.bf16 %v170, %v170
      %v183 = vpack.c.bf16 %v176, %v176
      %v184 = vpack.c.bf16 %v171, %v171
      %v185 = vpack.c.bf16 %v177, %v177
      %v186 = vpack.c.bf16 %v172, %v172
      %v187 = vpack.c.bf16 %v178, %v178
      %v188 = vld [vmem:[%s1] sm:$0xf]
      %v189 = vld [vmem:[%s1 + $0x4] sm:$0xf]
      %v190 = vld [vmem:[%s1 + $0x8] sm:$0xf]
      %v191 = vld [vmem:[%s1 + $0xc] sm:$0xf]
      %v192 = vld [vmem:[%s1 + $0x10] sm:$0xf]
      %v193 = vld [vmem:[%s1 + $0x14] sm:$0xf]
      %v194 = vld [vmem:[%s1 + $0x18] sm:$0xf]
      %v195 = vld [vmem:[%s1 + $0x1c] sm:$0xf]
      %v196 = vld [vmem:[%s1 + $0x20] sm:$0xf]
      %v197 = vld [vmem:[%s1 + $0x24] sm:$0xf]
      %v198 = vld [vmem:[%s1 + $0x28] sm:$0xf]
      %v199 = vld [vmem:[%s1 + $0x2c] sm:$0xf]
      %v200 = vld [vmem:[%s1 + $0x30] sm:$0xf]
      %v201 = vld [vmem:[%s1 + $0x34] sm:$0xf]
      %v202 = vld [vmem:[%s1 + $0x38] sm:$0xf]
      %v203 = vld [vmem:[%s1 + $0x3c] sm:$0xf]
      %v204 = vld [vmem:[%s1 + $0x40] sm:$0xf]
      %v205 = vld [vmem:[%s1 + $0x44] sm:$0xf]
      %v206 = vld [vmem:[%s1 + $0x48] sm:$0xf]
      %v207 = vld [vmem:[%s1 + $0x4c] sm:$0xf]
      %v208 = vld [vmem:[%s1 + $0x50] sm:$0xf]
      %v209 = vld [vmem:[%s1 + $0x54] sm:$0xf]
      %v210 = vld [vmem:[%s1 + $0x58] sm:$0xf]
      %v211 = vld [vmem:[%s1 + $0x5c] sm:$0xf]
      %v212 = vld [vmem:[%s1 + $0x60] sm:$0xf]
      %v213 = vld [vmem:[%s1 + $0x64] sm:$0xf]
      %v214 = vld [vmem:[%s1 + $0x68] sm:$0xf]
      %v215 = vld [vmem:[%s1 + $0x6c] sm:$0xf]
      %v216 = vld [vmem:[%s1 + $0x70] sm:$0xf]
      %v217 = vld [vmem:[%s1 + $0x74] sm:$0xf]
      %v218 = vld [vmem:[%s1 + $0x78] sm:$0xf]
      %v219 = vld [vmem:[%s1 + $0x7c] sm:$0xf]
      %v220 = vld [vmem:[%s1 + $0x80] sm:$0xf]
      %v221 = vld [vmem:[%s1 + $0x84] sm:$0xf]
      %v222 = vld [vmem:[%s1 + $0x88] sm:$0xf]
      %v223 = vld [vmem:[%s1 + $0x8c] sm:$0xf]
      %v224 = vld [vmem:[%s1 + $0x90] sm:$0xf]
      %v225 = vld [vmem:[%s1 + $0x94] sm:$0xf]
      %v226 = vld [vmem:[%s1 + $0x98] sm:$0xf]
      %v227 = vld [vmem:[%s1 + $0x9c] sm:$0xf]
      %v228 = vld [vmem:[%s1 + $0xa0] sm:$0xf]
      %v229 = vld [vmem:[%s1 + $0xa4] sm:$0xf]
      %v230 = vld [vmem:[%s1 + $0xa8] sm:$0xf]
      %v231 = vld [vmem:[%s1 + $0xac] sm:$0xf]
      %v232 = vld [vmem:[%s1 + $0xb0] sm:$0xf]
      %v233 = vld [vmem:[%s1 + $0xb4] sm:$0xf]
      %v234 = vld [vmem:[%s1 + $0xb8] sm:$0xf]
      %v235 = vld [vmem:[%s1 + $0xbc] sm:$0xf]
      %v236 = vld [vmem:[%s1 + $0xc0] sm:$0xf]
      %v237 = vld [vmem:[%s1 + $0xc4] sm:$0xf]
      %v238 = vld [vmem:[%s1 + $0xc8] sm:$0xf]
      %v239 = vld [vmem:[%s1 + $0xcc] sm:$0xf]
      %v240 = vld [vmem:[%s1 + $0xd0] sm:$0xf]
      %v241 = vld [vmem:[%s1 + $0xd4] sm:$0xf]
      %v242 = vld [vmem:[%s1 + $0xd8] sm:$0xf]
      %v243 = vld [vmem:[%s1 + $0xdc] sm:$0xf]
      %v244 = vld [vmem:[%s1 + $0xe0] sm:$0xf]
      %v245 = vld [vmem:[%s1 + $0xe4] sm:$0xf]
      %v246 = vld [vmem:[%s1 + $0xe8] sm:$0xf]
      %v247 = vld [vmem:[%s1 + $0xec] sm:$0xf]
      %v248 = vld [vmem:[%s1 + $0xf0] sm:$0xf]
      %v249 = vld [vmem:[%s1 + $0xf4] sm:$0xf]
      %v250 = vld [vmem:[%s1 + $0xf8] sm:$0xf]
      %v251 = vld [vmem:[%s1 + $0xfc] sm:$0xf]
      %v252 = vld [vmem:[%s1 + $0x100] sm:$0xf]
      %v253 = vld [vmem:[%s1 + $0x104] sm:$0xf]
      %v254 = vld [vmem:[%s1 + $0x108] sm:$0xf]
      %v255 = vld [vmem:[%s1 + $0x10c] sm:$0xf]
      %v256 = vld [vmem:[%s1 + $0x110] sm:$0xf]
      %v257 = vld [vmem:[%s1 + $0x114] sm:$0xf]
      %v258 = vld [vmem:[%s1 + $0x118] sm:$0xf]
      %v259 = vld [vmem:[%s1 + $0x11c] sm:$0xf]
      %v260 = vld [vmem:[%s1 + $0x120] sm:$0xf]
      %v261 = vld [vmem:[%s1 + $0x124] sm:$0xf]
      %v262 = vld [vmem:[%s1 + $0x128] sm:$0xf]
      %v263 = vld [vmem:[%s1 + $0x12c] sm:$0xf]
      %v264 = vld [vmem:[%s1 + $0x130] sm:$0xf]
      %v265 = vld [vmem:[%s1 + $0x134] sm:$0xf]
      %v266 = vld [vmem:[%s1 + $0x138] sm:$0xf]
      %v267 = vld [vmem:[%s1 + $0x13c] sm:$0xf]
      %v268 = vld [vmem:[%s1 + $0x140] sm:$0xf]
      %v269 = vld [vmem:[%s1 + $0x144] sm:$0xf]
      %v270 = vld [vmem:[%s1 + $0x148] sm:$0xf]
      %v271 = vld [vmem:[%s1 + $0x14c] sm:$0xf]
      %v272 = vld [vmem:[%s1 + $0x150] sm:$0xf]
      %v273 = vld [vmem:[%s1 + $0x154] sm:$0xf]
      %v274 = vld [vmem:[%s1 + $0x158] sm:$0xf]
      %v275 = vld [vmem:[%s1 + $0x15c] sm:$0xf]
      %v276 = vld [vmem:[%s1 + $0x160] sm:$0xf]
      %v277 = vld [vmem:[%s1 + $0x164] sm:$0xf]
      %v278 = vld [vmem:[%s1 + $0x168] sm:$0xf]
      %v279 = vld [vmem:[%s1 + $0x16c] sm:$0xf]
      %v280 = vld [vmem:[%s1 + $0x170] sm:$0xf]
      %v281 = vld [vmem:[%s1 + $0x174] sm:$0xf]
      %v282 = vld [vmem:[%s1 + $0x178] sm:$0xf]
      %v283 = vld [vmem:[%s1 + $0x17c] sm:$0xf]
      %v284 = vld [vmem:[%s2] sm:$0xf]
      %v381 = vunpack.c.l.b16 %v188
      %v382 = vunpack.c.l.b16 %v189
      %v383 = vunpack.c.l.b16 %v190
      %v384 = vunpack.c.l.b16 %v191
      %v385 = vunpack.c.l.b16 %v192
      %v386 = vunpack.c.l.b16 %v193
      %v387 = vunpack.c.l.b16 %v194
      %v388 = vunpack.c.l.b16 %v195
      %v389 = vunpack.c.l.b16 %v196
      %v390 = vunpack.c.l.b16 %v197
      %v391 = vunpack.c.l.b16 %v198
      %v392 = vunpack.c.l.b16 %v199
      %v393 = vunpack.c.l.b16 %v200
      %v394 = vunpack.c.l.b16 %v201
      %v395 = vunpack.c.l.b16 %v202
      %v396 = vunpack.c.l.b16 %v203
      %v397 = vunpack.c.l.b16 %v204
      %v398 = vunpack.c.l.b16 %v205
      %v399 = vunpack.c.l.b16 %v206
      %v400 = vunpack.c.l.b16 %v207
      %v401 = vunpack.c.l.b16 %v208
      %v402 = vunpack.c.l.b16 %v209
      %v403 = vunpack.c.l.b16 %v210
      %v404 = vunpack.c.l.b16 %v211
      %v405 = vunpack.c.l.b16 %v212
      %v406 = vunpack.c.l.b16 %v213
      %v407 = vunpack.c.l.b16 %v214
      %v408 = vunpack.c.l.b16 %v215
      %v409 = vunpack.c.l.b16 %v216
      %v410 = vunpack.c.l.b16 %v217
      %v411 = vunpack.c.l.b16 %v218
      %v412 = vunpack.c.l.b16 %v219
      %v413 = vunpack.c.l.b16 %v220
      %v414 = vunpack.c.l.b16 %v221
      %v415 = vunpack.c.l.b16 %v222
      %v416 = vunpack.c.l.b16 %v223
      %v417 = vunpack.c.l.b16 %v224
      %v418 = vunpack.c.l.b16 %v225
      %v419 = vunpack.c.l.b16 %v226
      %v420 = vunpack.c.l.b16 %v227
      %v421 = vunpack.c.l.b16 %v228
      %v422 = vunpack.c.l.b16 %v229
      %v423 = vunpack.c.l.b16 %v230
      %v424 = vunpack.c.l.b16 %v231
      %v425 = vunpack.c.l.b16 %v232
      %v426 = vunpack.c.l.b16 %v233
      %v427 = vunpack.c.l.b16 %v234
      %v428 = vunpack.c.l.b16 %v235
      %v429 = vunpack.c.l.b16 %v236
      %v430 = vunpack.c.l.b16 %v237
      %v431 = vunpack.c.l.b16 %v238
      %v432 = vunpack.c.l.b16 %v239
      %v433 = vunpack.c.l.b16 %v240
      %v434 = vunpack.c.l.b16 %v241
      %v435 = vunpack.c.l.b16 %v242
      %v436 = vunpack.c.l.b16 %v243
      %v437 = vunpack.c.l.b16 %v244
      %v438 = vunpack.c.l.b16 %v245
      %v439 = vunpack.c.l.b16 %v246
      %v440 = vunpack.c.l.b16 %v247
      %v441 = vunpack.c.l.b16 %v248
      %v442 = vunpack.c.l.b16 %v249
      %v443 = vunpack.c.l.b16 %v250
      %v444 = vunpack.c.l.b16 %v251
      %v445 = vunpack.c.l.b16 %v252
      %v446 = vunpack.c.l.b16 %v253
      %v447 = vunpack.c.l.b16 %v254
      %v448 = vunpack.c.l.b16 %v255
      %v449 = vunpack.c.l.b16 %v256
      %v450 = vunpack.c.l.b16 %v257
      %v451 = vunpack.c.l.b16 %v258
      %v452 = vunpack.c.l.b16 %v259
      %v453 = vunpack.c.l.b16 %v260
      %v454 = vunpack.c.l.b16 %v261
      %v455 = vunpack.c.l.b16 %v262
      %v456 = vunpack.c.l.b16 %v263
      %v457 = vunpack.c.l.b16 %v264
      %v458 = vunpack.c.l.b16 %v265
      %v459 = vunpack.c.l.b16 %v266
      %v460 = vunpack.c.l.b16 %v267
      %v461 = vunpack.c.l.b16 %v268
      %v462 = vunpack.c.l.b16 %v269
      %v463 = vunpack.c.l.b16 %v270
      %v464 = vunpack.c.l.b16 %v271
      %v465 = vunpack.c.l.b16 %v272
      %v466 = vunpack.c.l.b16 %v273
      %v467 = vunpack.c.l.b16 %v274
      %v468 = vunpack.c.l.b16 %v275
      %v469 = vunpack.c.l.b16 %v276
      %v470 = vunpack.c.l.b16 %v277
      %v471 = vunpack.c.l.b16 %v278
      %v472 = vunpack.c.l.b16 %v279
      %v473 = vunpack.c.l.b16 %v280
      %v474 = vunpack.c.l.b16 %v281
      %v475 = vunpack.c.l.b16 %v282
      %v476 = vunpack.c.l.b16 %v283
      %v477 = vpack.c.b16 %v382, %v381
      %v478 = vpack.c.b16 %v384, %v383
      %v479 = vpack.c.b16 %v386, %v385
      %v480 = vpack.c.b16 %v388, %v387
      %v481 = vpack.c.b16 %v390, %v389
      %v482 = vpack.c.b16 %v392, %v391
      %v483 = vpack.c.b16 %v394, %v393
      %v484 = vpack.c.b16 %v396, %v395
      %v485 = vpack.c.b16 %v398, %v397
      %v486 = vpack.c.b16 %v400, %v399
      %v487 = vpack.c.b16 %v402, %v401
      %v488 = vpack.c.b16 %v404, %v403
      %v489 = vpack.c.b16 %v406, %v405
      %v490 = vpack.c.b16 %v408, %v407
      %v491 = vpack.c.b16 %v410, %v409
      %v492 = vpack.c.b16 %v412, %v411
      %v493 = vpack.c.b16 %v414, %v413
      %v494 = vpack.c.b16 %v416, %v415
      %v495 = vpack.c.b16 %v418, %v417
      %v496 = vpack.c.b16 %v420, %v419
      %v497 = vpack.c.b16 %v422, %v421
      %v498 = vpack.c.b16 %v424, %v423
      %v499 = vpack.c.b16 %v426, %v425
      %v500 = vpack.c.b16 %v428, %v427
      %v501 = vpack.c.b16 %v430, %v429
      %v502 = vpack.c.b16 %v432, %v431
      %v503 = vpack.c.b16 %v434, %v433
      %v504 = vpack.c.b16 %v436, %v435
      %v505 = vpack.c.b16 %v438, %v437
      %v506 = vpack.c.b16 %v440, %v439
      %v507 = vpack.c.b16 %v442, %v441
      %v508 = vpack.c.b16 %v444, %v443
      %v509 = vpack.c.b16 %v446, %v445
      %v510 = vpack.c.b16 %v448, %v447
      %v511 = vpack.c.b16 %v450, %v449
      %v512 = vpack.c.b16 %v452, %v451
      %v513 = vpack.c.b16 %v454, %v453
      %v514 = vpack.c.b16 %v456, %v455
      %v515 = vpack.c.b16 %v458, %v457
      %v516 = vpack.c.b16 %v460, %v459
      %v517 = vpack.c.b16 %v462, %v461
      %v518 = vpack.c.b16 %v464, %v463
      %v519 = vpack.c.b16 %v466, %v465
      %v520 = vpack.c.b16 %v468, %v467
      %v521 = vpack.c.b16 %v470, %v469
      %v522 = vpack.c.b16 %v472, %v471
      %v523 = vpack.c.b16 %v474, %v473
      %v524 = vpack.c.b16 %v476, %v475
      %573 = vmatprep.subr.bf16.mxu0 0
      %574 = vmatpush1.bf16.msra.mxu0 %v477
      %575 = vmatprep.subr.bf16.mxu0 0
      %576 = vmatpush1.bf16.msra.mxu0 %v478
      %577 = vmatprep.subr.bf16.mxu0 0
      %578 = vmatpush1.bf16.msra.mxu0 %v479
      %579 = vmatprep.subr.bf16.mxu0 0
      %580 = vmatpush1.bf16.msra.mxu0 %v480
      %581 = vmatprep.subr.bf16.mxu0 0
      %582 = vmatpush1.bf16.msra.mxu0 %v481
      %583 = vmatprep.subr.bf16.mxu0 0
      %584 = vmatpush1.bf16.msra.mxu0 %v482
      %585 = vmatprep.subr.bf16.mxu0 0
      %586 = vmatpush1.bf16.msra.mxu0 %v483
      %587 = vmatprep.subr.bf16.mxu0 0
      %588 = vmatpush1.bf16.msra.mxu0 %v484
      %589 = vmatprep.subr.bf16.mxu0 0
      %590 = vmatpush1.bf16.msra.mxu0 %v485
      %591 = vmatprep.subr.bf16.mxu0 0
      %592 = vmatpush1.bf16.msra.mxu0 %v486
      %593 = vmatprep.subr.bf16.mxu0 0
      %594 = vmatpush1.bf16.msra.mxu0 %v487
      %595 = vmatprep.subr.bf16.mxu0 0
      %596 = vmatpush1.bf16.msra.mxu0 %v488
      %597 = vmatprep.subr.bf16.mxu0 0
      %598 = vmatpush1.bf16.msra.mxu0 %v489
      %599 = vmatprep.subr.bf16.mxu0 0
      %600 = vmatpush1.bf16.msra.mxu0 %v490
      %601 = vmatprep.subr.bf16.mxu0 0
      %602 = vmatpush1.bf16.msra.mxu0 %v491
      %603 = vmatprep.subr.bf16.mxu0 0
      %604 = vmatpush1.bf16.msra.mxu0 %v492
      %605 = vmatprep.mubr.bf16.mxu0 %v183
      %606 = vmatmul.mubr.bf16.gmra.mrb[0].mxu0 %v182
      %v607 = vpop.f32.mrb[0].mxu0
      %v608 = vadd.f32 %v284, %v607
      %v609 = vpop.f32.mrb[0].mxu0
      %v610 = vpop.f32.mrb[0].mxu0
      %v611 = vpop.f32.mrb[0].mxu0
      %612 = vdwg.mxu0
      %613 = vmatprep.subr.bf16.mxu0 0
      %614 = vmatpush1.bf16.msra.mxu0 %v493
      %615 = vmatprep.subr.bf16.mxu0 0
      %616 = vmatpush1.bf16.msra.mxu0 %v494
      %617 = vmatprep.subr.bf16.mxu0 0
      %618 = vmatpush1.bf16.msra.mxu0 %v495
      %619 = vmatprep.subr.bf16.mxu0 0
      %620 = vmatpush1.bf16.msra.mxu0 %v496
      %621 = vmatprep.subr.bf16.mxu0 0
      %622 = vmatpush1.bf16.msra.mxu0 %v497
      %623 = vmatprep.subr.bf16.mxu0 0
      %624 = vmatpush1.bf16.msra.mxu0 %v498
      %625 = vmatprep.subr.bf16.mxu0 0
      %626 = vmatpush1.bf16.msra.mxu0 %v499
      %627 = vmatprep.subr.bf16.mxu0 0
      %628 = vmatpush1.bf16.msra.mxu0 %v500
      %629 = vmatprep.subr.bf16.mxu0 0
      %630 = vmatpush1.bf16.msra.mxu0 %v501
      %631 = vmatprep.subr.bf16.mxu0 0
      %632 = vmatpush1.bf16.msra.mxu0 %v502
      %633 = vmatprep.subr.bf16.mxu0 0
      %634 = vmatpush1.bf16.msra.mxu0 %v503
      %635 = vmatprep.subr.bf16.mxu0 0
      %636 = vmatpush1.bf16.msra.mxu0 %v504
      %637 = vmatprep.subr.bf16.mxu0 0
      %638 = vmatpush1.bf16.msra.mxu0 %v505
      %639 = vmatprep.subr.bf16.mxu0 0
      %640 = vmatpush1.bf16.msra.mxu0 %v506
      %641 = vmatprep.subr.bf16.mxu0 0
      %642 = vmatpush1.bf16.msra.mxu0 %v507
      %643 = vmatprep.subr.bf16.mxu0 0
      %644 = vmatpush1.bf16.msra.mxu0 %v508
      %645 = vmatprep.mubr.bf16.mxu0 %v185
      %646 = vmatmul.mubr.bf16.gmra.mrb[0].mxu0 %v184
      %v647 = vpop.f32.mrb[0].mxu0
      %v648 = vadd.f32 %v608, %v647
      %v649 = vpop.f32.mrb[0].mxu0
      %v650 = vpop.f32.mrb[0].mxu0
      %v651 = vpop.f32.mrb[0].mxu0
      %652 = vdwg.mxu0
      %653 = vmatprep.subr.bf16.mxu0 0
      %654 = vmatpush1.bf16.msra.mxu0 %v509
      %655 = vmatprep.subr.bf16.mxu0 0
      %656 = vmatpush1.bf16.msra.mxu0 %v510
      %657 = vmatprep.subr.bf16.mxu0 0
      %658 = vmatpush1.bf16.msra.mxu0 %v511
      %659 = vmatprep.subr.bf16.mxu0 0
      %660 = vmatpush1.bf16.msra.mxu0 %v512
      %661 = vmatprep.subr.bf16.mxu0 0
      %662 = vmatpush1.bf16.msra.mxu0 %v513
      %663 = vmatprep.subr.bf16.mxu0 0
      %664 = vmatpush1.bf16.msra.mxu0 %v514
      %665 = vmatprep.subr.bf16.mxu0 0
      %666 = vmatpush1.bf16.msra.mxu0 %v515
      %667 = vmatprep.subr.bf16.mxu0 0
      %668 = vmatpush1.bf16.msra.mxu0 %v516
      %669 = vmatprep.subr.bf16.mxu0 0
      %670 = vmatpush1.bf16.msra.mxu0 %v517
      %671 = vmatprep.subr.bf16.mxu0 0
      %672 = vmatpush1.bf16.msra.mxu0 %v518
      %673 = vmatprep.subr.bf16.mxu0 0
      %674 = vmatpush1.bf16.msra.mxu0 %v519
      %675 = vmatprep.subr.bf16.mxu0 0
      %676 = vmatpush1.bf16.msra.mxu0 %v520
      %677 = vmatprep.subr.bf16.mxu0 0
      %678 = vmatpush1.bf16.msra.mxu0 %v521
      %679 = vmatprep.subr.bf16.mxu0 0
      %680 = vmatpush1.bf16.msra.mxu0 %v522
      %681 = vmatprep.subr.bf16.mxu0 0
      %682 = vmatpush1.bf16.msra.mxu0 %v523
      %683 = vmatprep.subr.bf16.mxu0 0
      %684 = vmatpush1.bf16.msra.mxu0 %v524
      %685 = vmatprep.mubr.bf16.mxu0 %v187
      %686 = vmatmul.mubr.bf16.gmra.mrb[0].mxu0 %v186
      %v687 = vpop.f32.mrb[0].mxu0
      %v688 = vadd.f32 %v648, %v687
      %v689 = vpop.f32.mrb[0].mxu0
      %v690 = vpop.f32.mrb[0].mxu0
      %v691 = vpop.f32.mrb[0].mxu0
      %692 = vdwg.mxu0
      %vm693 = vcmask 519168
      %694 = vst.msk [vmem:[%s168] sm:$0xf] %vm693, %v688
      %p695 = scmp.lt.s32.totalorder %s14, 1
      %s696 = scalar_select %p695, %s14, 1
      %s697 = smul.addr %s696, 4
      %s698 = scalar_lea.vmem %s3, %s697
      // Predicated region
      $region33: #{vit_forward.6} parent=31 // pred_check
        %p699 = pneg %p100
      $region34: #{vit_forward.6} parent=31 // pred_check_branch
        %701 = sbr.rel (%p699) target = $region36
      $region35: #{vit_forward.6} parent=31 // pred_region
        _
      $region36: #{vit_forward.6} parent=31 // pred_fallthru
        _
    $region32: #{vit_forward.6} parent=5 // pred_fallthru
      _
    %p702 = scmp.le.s32.totalorder 2, %s9
    // Predicated region
    $region37: #{vit_forward.6} parent=5 // pred_check
      %p703 = pneg %p702
    $region38: #{vit_forward.6} parent=5 // pred_check_branch
      %705 = sbr.rel (%p703) target = $region40
    $region39: #{vit_forward.6} parent=5 // pred_region
      %s706 = ssub.s32 %s9, 2
      // Predicated region
      $region41: #{vit_forward.6} parent=39 // pred_check
        %p707 = pneg %p106
      $region42: #{vit_forward.6} parent=39 // pred_check_branch
        %709 = sbr.rel (%p707) target = $region44
      $region43: #{vit_forward.6} parent=39 // pred_region
        %p710 = scmp.lt.s32.totalorder %s15, 1
        %s711 = scalar_select %p710, %s15, 1
        %s712 = smul.addr %s711, 4
        %s713 = scalar_lea.vmem %s3, %s712
      $region44: #{vit_forward.6} parent=39 // pred_fallthru
        _
    $region40: #{vit_forward.6} parent=5 // pred_fallthru
      _
  $region6: #{vit_forward.6} parent=0 // loop_footer
    %s13 = sadd.s32 1, %s9
  $region7: #{vit_forward.6} parent=0 // loop_footer_branch
    %8 = sbr.rel target = $region3
  $region8: #{vit_forward.6} parent=0 // loop_exit
    _

// kernel: vit_forward.7
$region0: #{vit_forward.7}
  #allocation0 [shape = 'u32[]', space=smem, size = 0x4, offset = 0x4, fixed_abs, tag = 'smem constant byte address 0x4 - core index']
  #allocation1 [shape = 'u32[144,128]{1,0:T(1,128)}', space=vmem, size = 0x12000, scoped, tag = 'internal scratch']
  %s0 = inlined_call_operand.vmem [shape: f32[2,5,64], index: 0, kind: input, shape index: {}, may-alias: {0,11}]
  %s1 = inlined_call_operand.vmem [shape: f32[1,64], index: 1, kind: input, shape index: {}]
  %s2 = inlined_call_operand.vmem [shape: f32[1,64], index: 2, kind: input, shape index: {}]
  %s3 = inlined_call_operand.vmem [shape: bf16[4,64,16], index: 3, kind: input, shape index: {}]
  %s4 = inlined_call_operand.vmem [shape: bf16[4,64,16], index: 4, kind: input, shape index: {}]
  %s5 = inlined_call_operand.vmem [shape: bf16[4,64,16], index: 5, kind: input, shape index: {}]
  %s6 = inlined_call_operand.vmem [shape: f32[4,1,16], index: 6, kind: input, shape index: {}]
  %s7 = inlined_call_operand.vmem [shape: f32[4,1,16], index: 7, kind: input, shape index: {}]
  %s8 = inlined_call_operand.vmem [shape: f32[4,1,16], index: 8, kind: input, shape index: {}]
  %s9 = inlined_call_operand.vmem [shape: bf16[4,16,64], index: 9, kind: input, shape index: {}]
  %s10 = inlined_call_operand.vmem [shape: f32[1,64], index: 10, kind: input, shape index: {}]
  %s11 = inlined_call_operand.vmem [shape: f32[2,5,64], index: 11, kind: output, shape index: {}, may-alias: {0,11}]
  %s12 = sld [smem:[#allocation0]]
  $region77: #{vit_forward.7} parent=0
    _
  %s14 = ssub.s32 1, %s12
  %s15 = scalar_select 0, %s14, %s12
  loop: start=0, step=1, limit=4
  $region2: #{vit_forward.7} parent=0 // loop_pre_header
    _
  $region3: #{vit_forward.7} parent=0 // loop_header
    %s17 = sphi 0, %s21
    %p18 = scmp.ge.s32.totalorder %s17, 4
    %s27 = sphi 0, %s29
    %s30 = sphi 0, %s27
    %s31 = sphi 0, %s30
    %s47 = sphi 0, %s31
    %s51 = sphi 0, %s51
    %s53 = sphi 0, %s51
    %s54 = sphi 0, %s53
    %s68 = sphi 0, %s54
    %s72 = sphi 0, %s72
    %s74 = sphi 0, %s72
    %s75 = sphi 0, %s74
    %s89 = sphi 0, %s75
    %s93 = sphi 0, %s93
    %s95 = sphi 0, %s93
    %s96 = sphi 0, %s95
    %s110 = sphi 0, %s96
    %s114 = sphi 0, %s114
    %s116 = sphi 0, %s114
    %s117 = sphi 0, %s116
    %s131 = sphi 0, %s117
    %s135 = sphi 0, %s135
    %s137 = sphi 0, %s135
    %s138 = sphi 0, %s137
    %s152 = sphi 0, %s138
    %s156 = sphi 0, %s156
    %s158 = sphi 0, %s156
    %s159 = sphi 0, %s158
    %s173 = sphi 0, %s159
    %s177 = sphi 0, %s177
    %s179 = sphi 0, %s177
    %s180 = sphi 0, %s179
    %s194 = sphi 0, %s180
    %s198 = sphi 0, %s198
    %s200 = sphi 0, %s198
    %s201 = sphi 0, %s200
    %s215 = sphi 0, %s201
    %s219 = sphi 0, %s219
    %s221 = sphi 0, %s219
    %s222 = sphi 0, %s221
    %s236 = sphi 0, %s222
    %s240 = sphi 0, %s240
    %s242 = sphi 0, %s240
    %s243 = sphi 0, %s242
    %s257 = sphi 0, %s243
    %s263 = sphi 0, %s265
    %s266 = sphi 0, %s263
    %s267 = sphi 0, %s266
    %s283 = sphi 0, %s267
  $region4: #{vit_forward.7} parent=0 // loop_header_branch
    %20 = sbr.rel (%p18) target = $region8
  $region5: #{vit_forward.7} parent=0 // loop_body
    %s22 = ssub.s32 %s17, 1
    %s23 = ssub.s32 %s17, 2
    %s24 = sadd.s32 %s17, 1
    %s25 = ssub.s32 %s17, %s24
    %p26 = scmp.eq.s32.totalorder %s25, 0
    %s28 = sadd.s32 %s27, 1
    %s29 = scalar_select %p26, %s27, %s28
    %p32 = pneg %p26
    %p33 = scmp.eq.s32.totalorder %s17, 1
    %p34 = por %p32, %p33
    %p35 = scmp.ne.s32.totalorder %s27, %s30
    %p36 = scmp.eq.s32.totalorder %s17, 0
    %p37 = por %p35, %p36
    %p38 = scmp.ne.s32.totalorder %s27, %s30
    %p39 = scmp.eq.s32.totalorder %s22, 1
    %p40 = por %p38, %p39
    %p41 = scmp.ne.s32.totalorder %s30, %s31
    %p42 = scmp.eq.s32.totalorder %s22, 0
    %p43 = por %p41, %p42
    %p44 = scmp.ne.s32.totalorder %s30, %s31
    %p45 = scmp.eq.s32.totalorder %s23, 1
    %p46 = por %p44, %p45
    %p48 = scmp.ne.s32.totalorder %s31, %s47
    %p49 = scmp.eq.s32.totalorder %s23, 0
    %p50 = por %p48, %p49
    %s52 = sadd.s32 %s51, 1
    %p55 = scmp.eq.s32.totalorder %s17, 1
    %p56 = scmp.ne.s32.totalorder %s51, %s53
    %p57 = scmp.eq.s32.totalorder %s17, 0
    %p58 = por %p56, %p57
    %p59 = scmp.ne.s32.totalorder %s51, %s53
    %p60 = scmp.eq.s32.totalorder %s22, 1
    %p61 = por %p59, %p60
    %p62 = scmp.ne.s32.totalorder %s53, %s54
    %p63 = scmp.eq.s32.totalorder %s22, 0
    %p64 = por %p62, %p63
    %p65 = scmp.ne.s32.totalorder %s53, %s54
    %p66 = scmp.eq.s32.totalorder %s23, 1
    %p67 = por %p65, %p66
    %p69 = scmp.ne.s32.totalorder %s54, %s68
    %p70 = scmp.eq.s32.totalorder %s23, 0
    %p71 = por %p69, %p70
    %s73 = sadd.s32 %s72, 1
    %p76 = scmp.eq.s32.totalorder %s17, 1
    %p77 = scmp.ne.s32.totalorder %s72, %s74
    %p78 = scmp.eq.s32.totalorder %s17, 0
    %p79 = por %p77, %p78
    %p80 = scmp.ne.s32.totalorder %s72, %s74
    %p81 = scmp.eq.s32.totalorder %s22, 1
    %p82 = por %p80, %p81
    %p83 = scmp.ne.s32.totalorder %s74, %s75
    %p84 = scmp.eq.s32.totalorder %s22, 0
    %p85 = por %p83, %p84
    %p86 = scmp.ne.s32.totalorder %s74, %s75
    %p87 = scmp.eq.s32.totalorder %s23, 1
    %p88 = por %p86, %p87
    %p90 = scmp.ne.s32.totalorder %s75, %s89
    %p91 = scmp.eq.s32.totalorder %s23, 0
    %p92 = por %p90, %p91
    %s94 = sadd.s32 %s93, 1
    %p97 = scmp.eq.s32.totalorder %s17, 1
    %p98 = scmp.ne.s32.totalorder %s93, %s95
    %p99 = scmp.eq.s32.totalorder %s17, 0
    %p100 = por %p98, %p99
    %p101 = scmp.ne.s32.totalorder %s93, %s95
    %p102 = scmp.eq.s32.totalorder %s22, 1
    %p103 = por %p101, %p102
    %p104 = scmp.ne.s32.totalorder %s95, %s96
    %p105 = scmp.eq.s32.totalorder %s22, 0
    %p106 = por %p104, %p105
    %p107 = scmp.ne.s32.totalorder %s95, %s96
    %p108 = scmp.eq.s32.totalorder %s23, 1
    %p109 = por %p107, %p108
    %p111 = scmp.ne.s32.totalorder %s96, %s110
    %p112 = scmp.eq.s32.totalorder %s23, 0
    %p113 = por %p111, %p112
    %s115 = sadd.s32 %s114, 1
    %p118 = scmp.eq.s32.totalorder %s17, 1
    %p119 = scmp.ne.s32.totalorder %s114, %s116
    %p120 = scmp.eq.s32.totalorder %s17, 0
    %p121 = por %p119, %p120
    %p122 = scmp.ne.s32.totalorder %s114, %s116
    %p123 = scmp.eq.s32.totalorder %s22, 1
    %p124 = por %p122, %p123
    %p125 = scmp.ne.s32.totalorder %s116, %s117
    %p126 = scmp.eq.s32.totalorder %s22, 0
    %p127 = por %p125, %p126
    %p128 = scmp.ne.s32.totalorder %s116, %s117
    %p129 = scmp.eq.s32.totalorder %s23, 1
    %p130 = por %p128, %p129
    %p132 = scmp.ne.s32.totalorder %s117, %s131
    %p133 = scmp.eq.s32.totalorder %s23, 0
    %p134 = por %p132, %p133
    %s136 = sadd.s32 %s135, 1
    %p139 = scmp.eq.s32.totalorder %s17, 1
    %p140 = scmp.ne.s32.totalorder %s135, %s137
    %p141 = scmp.eq.s32.totalorder %s17, 0
    %p142 = por %p140, %p141
    %p143 = scmp.ne.s32.totalorder %s135, %s137
    %p144 = scmp.eq.s32.totalorder %s22, 1
    %p145 = por %p143, %p144
    %p146 = scmp.ne.s32.totalorder %s137, %s138
    %p147 = scmp.eq.s32.totalorder %s22, 0
    %p148 = por %p146, %p147
    %p149 = scmp.ne.s32.totalorder %s137, %s138
    %p150 = scmp.eq.s32.totalorder %s23, 1
    %p151 = por %p149, %p150
    %p153 = scmp.ne.s32.totalorder %s138, %s152
    %p154 = scmp.eq.s32.totalorder %s23, 0
    %p155 = por %p153, %p154
    %s157 = sadd.s32 %s156, 1
    %p160 = scmp.eq.s32.totalorder %s17, 1
    %p161 = scmp.ne.s32.totalorder %s156, %s158
    %p162 = scmp.eq.s32.totalorder %s17, 0
    %p163 = por %p161, %p162
    %p164 = scmp.ne.s32.totalorder %s156, %s158
    %p165 = scmp.eq.s32.totalorder %s22, 1
    %p166 = por %p164, %p165
    %p167 = scmp.ne.s32.totalorder %s158, %s159
    %p168 = scmp.eq.s32.totalorder %s22, 0
    %p169 = por %p167, %p168
    %p170 = scmp.ne.s32.totalorder %s158, %s159
    %p171 = scmp.eq.s32.totalorder %s23, 1
    %p172 = por %p170, %p171
    %p174 = scmp.ne.s32.totalorder %s159, %s173
    %p175 = scmp.eq.s32.totalorder %s23, 0
    %p176 = por %p174, %p175
    %s178 = sadd.s32 %s177, 1
    %p181 = scmp.eq.s32.totalorder %s17, 1
    %p182 = scmp.ne.s32.totalorder %s177, %s179
    %p183 = scmp.eq.s32.totalorder %s17, 0
    %p184 = por %p182, %p183
    %p185 = scmp.ne.s32.totalorder %s177, %s179
    %p186 = scmp.eq.s32.totalorder %s22, 1
    %p187 = por %p185, %p186
    %p188 = scmp.ne.s32.totalorder %s179, %s180
    %p189 = scmp.eq.s32.totalorder %s22, 0
    %p190 = por %p188, %p189
    %p191 = scmp.ne.s32.totalorder %s179, %s180
    %p192 = scmp.eq.s32.totalorder %s23, 1
    %p193 = por %p191, %p192
    %p195 = scmp.ne.s32.totalorder %s180, %s194
    %p196 = scmp.eq.s32.totalorder %s23, 0
    %p197 = por %p195, %p196
    %s199 = sadd.s32 %s198, 1
    %p202 = scmp.eq.s32.totalorder %s17, 1
    %p203 = scmp.ne.s32.totalorder %s198, %s200
    %p204 = scmp.eq.s32.totalorder %s17, 0
    %p205 = por %p203, %p204
    %p206 = scmp.ne.s32.totalorder %s198, %s200
    %p207 = scmp.eq.s32.totalorder %s22, 1
    %p208 = por %p206, %p207
    %p209 = scmp.ne.s32.totalorder %s200, %s201
    %p210 = scmp.eq.s32.totalorder %s22, 0
    %p211 = por %p209, %p210
    %p212 = scmp.ne.s32.totalorder %s200, %s201
    %p213 = scmp.eq.s32.totalorder %s23, 1
    %p214 = por %p212, %p213
    %p216 = scmp.ne.s32.totalorder %s201, %s215
    %p217 = scmp.eq.s32.totalorder %s23, 0
    %p218 = por %p216, %p217
    %s220 = sadd.s32 %s219, 1
    %p223 = scmp.eq.s32.totalorder %s17, 1
    %p224 = scmp.ne.s32.totalorder %s219, %s221
    %p225 = scmp.eq.s32.totalorder %s17, 0
    %p226 = por %p224, %p225
    %p227 = scmp.ne.s32.totalorder %s219, %s221
    %p228 = scmp.eq.s32.totalorder %s22, 1
    %p229 = por %p227, %p228
    %p230 = scmp.ne.s32.totalorder %s221, %s222
    %p231 = scmp.eq.s32.totalorder %s22, 0
    %p232 = por %p230, %p231
    %p233 = scmp.ne.s32.totalorder %s221, %s222
    %p234 = scmp.eq.s32.totalorder %s23, 1
    %p235 = por %p233, %p234
    %p237 = scmp.ne.s32.totalorder %s222, %s236
    %p238 = scmp.eq.s32.totalorder %s23, 0
    %p239 = por %p237, %p238
    %s241 = sadd.s32 %s240, 1
    %p244 = scmp.eq.s32.totalorder %s17, 1
    %p245 = scmp.ne.s32.totalorder %s240, %s242
    %p246 = scmp.eq.s32.totalorder %s17, 0
    %p247 = por %p245, %p246
    %p248 = scmp.ne.s32.totalorder %s240, %s242
    %p249 = scmp.eq.s32.totalorder %s22, 1
    %p250 = por %p248, %p249
    %p251 = scmp.ne.s32.totalorder %s242, %s243
    %p252 = scmp.eq.s32.totalorder %s22, 0
    %p253 = por %p251, %p252
    %p254 = scmp.ne.s32.totalorder %s242, %s243
    %p255 = scmp.eq.s32.totalorder %s23, 1
    %p256 = por %p254, %p255
    %p258 = scmp.ne.s32.totalorder %s243, %s257
    %p259 = scmp.eq.s32.totalorder %s23, 0
    %p260 = por %p258, %p259
    %s261 = ssub.s32 %s17, %s24
    %p262 = scmp.eq.s32.totalorder %s261, 0
    %s264 = sadd.s32 %s263, 1
    %s265 = scalar_select %p262, %s263, %s264
    %p268 = pneg %p262
    %p269 = scmp.eq.s32.totalorder %s17, 1
    %p270 = por %p268, %p269
    %p271 = scmp.ne.s32.totalorder %s263, %s266
    %p272 = scmp.eq.s32.totalorder %s17, 0
    %p273 = por %p271, %p272
    %p274 = scmp.ne.s32.totalorder %s263, %s266
    %p275 = scmp.eq.s32.totalorder %s22, 1
    %p276 = por %p274, %p275
    %p277 = scmp.ne.s32.totalorder %s266, %s267
    %p278 = scmp.eq.s32.totalorder %s22, 0
    %p279 = por %p277, %p278
    %p280 = scmp.ne.s32.totalorder %s266, %s267
    %p281 = scmp.eq.s32.totalorder %s23, 1
    %p282 = por %p280, %p281
    %p284 = scmp.ne.s32.totalorder %s267, %s283
    %p285 = scmp.eq.s32.totalorder %s23, 0
    %p286 = por %p284, %p285
    %p287 = scmp.le.s32.totalorder 1, %s17
    %p288 = scmp.lt.s32.totalorder %s17, 3
    %p289 = pnand %p287, %p288
    %p290 = pneg %p289
    // Predicated region
    $region9: #{vit_forward.7} parent=5 // pred_check
      _
    $region10: #{vit_forward.7} parent=5 // pred_check_branch
      %292 = sbr.rel (%p289) target = $region12
    $region11: #{vit_forward.7} parent=5 // pred_region
      %s293 = ssub.s32 %s17, 1
      // Predicated region
      $region13: #{vit_forward.7} parent=11 // pred_check
        %p294 = pneg %p64
      $region14: #{vit_forward.7} parent=11 // pred_check_branch
        %296 = sbr.rel (%p294) target = $region16
      $region15: #{vit_forward.7} parent=11 // pred_region
        _
      $region16: #{vit_forward.7} parent=11 // pred_fallthru
        _
      // Predicated region
      $region17: #{vit_forward.7} parent=11 // pred_check
        %p297 = pneg %p85
      $region18: #{vit_forward.7} parent=11 // pred_check_branch
        %299 = sbr.rel (%p297) target = $region20
      $region19: #{vit_forward.7} parent=11 // pred_region
        _
      $region20: #{vit_forward.7} parent=11 // pred_fallthru
        _
      // Predicated region
      $region21: #{vit_forward.7} parent=11 // pred_check
        %p300 = pneg %p106
      $region22: #{vit_forward.7} parent=11 // pred_check_branch
        %302 = sbr.rel (%p300) target = $region24
      $region23: #{vit_forward.7} parent=11 // pred_region
        _
      $region24: #{vit_forward.7} parent=11 // pred_fallthru
        _
      // Predicated region
      $region25: #{vit_forward.7} parent=11 // pred_check
        %p303 = pneg %p127
      $region26: #{vit_forward.7} parent=11 // pred_check_branch
        %305 = sbr.rel (%p303) target = $region28
      $region27: #{vit_forward.7} parent=11 // pred_region
        _
      $region28: #{vit_forward.7} parent=11 // pred_fallthru
        _
      // Predicated region
      $region29: #{vit_forward.7} parent=11 // pred_check
        %p306 = pneg %p148
      $region30: #{vit_forward.7} parent=11 // pred_check_branch
        %308 = sbr.rel (%p306) target = $region32
      $region31: #{vit_forward.7} parent=11 // pred_region
        _
      $region32: #{vit_forward.7} parent=11 // pred_fallthru
        _
      // Predicated region
      $region33: #{vit_forward.7} parent=11 // pred_check
        %p309 = pneg %p169
      $region34: #{vit_forward.7} parent=11 // pred_check_branch
        %311 = sbr.rel (%p309) target = $region36
      $region35: #{vit_forward.7} parent=11 // pred_region
        _
      $region36: #{vit_forward.7} parent=11 // pred_fallthru
        _
      // Predicated region
      $region37: #{vit_forward.7} parent=11 // pred_check
        %p312 = pneg %p190
      $region38: #{vit_forward.7} parent=11 // pred_check_branch
        %314 = sbr.rel (%p312) target = $region40
      $region39: #{vit_forward.7} parent=11 // pred_region
        _
      $region40: #{vit_forward.7} parent=11 // pred_fallthru
        _
      // Predicated region
      $region41: #{vit_forward.7} parent=11 // pred_check
        %p315 = pneg %p211
      $region42: #{vit_forward.7} parent=11 // pred_check_branch
        %317 = sbr.rel (%p315) target = $region44
      $region43: #{vit_forward.7} parent=11 // pred_region
        _
      $region44: #{vit_forward.7} parent=11 // pred_fallthru
        _
      // Predicated region
      $region45: #{vit_forward.7} parent=11 // pred_check
        %p318 = pneg %p232
      $region46: #{vit_forward.7} parent=11 // pred_check_branch
        %320 = sbr.rel (%p318) target = $region48
      $region47: #{vit_forward.7} parent=11 // pred_region
        _
      $region48: #{vit_forward.7} parent=11 // pred_fallthru
        _
      // Predicated region
      $region49: #{vit_forward.7} parent=11 // pred_check
        %p321 = pneg %p253
      $region50: #{vit_forward.7} parent=11 // pred_check_branch
        %323 = sbr.rel (%p321) target = $region52
      $region51: #{vit_forward.7} parent=11 // pred_region
        _
      $region52: #{vit_forward.7} parent=11 // pred_fallthru
        _
    $region12: #{vit_forward.7} parent=5 // pred_fallthru
      _
    %p324 = scmp.lt.s32.totalorder %s17, 2
    // Predicated region
    $region53: #{vit_forward.7} parent=5 // pred_check
      %p325 = pneg %p324
    $region54: #{vit_forward.7} parent=5 // pred_check_branch
      %327 = sbr.rel (%p325) target = $region56
    $region55: #{vit_forward.7} parent=5 // pred_region
      // Predicated region
      $region57: #{vit_forward.7} parent=55 // pred_check
        %p328 = pneg %p37
      $region58: #{vit_forward.7} parent=55 // pred_check_branch
        %330 = sbr.rel (%p328) target = $region60
      $region59: #{vit_forward.7} parent=55 // pred_region
        %p331 = scmp.lt.s32.totalorder %s17, 1
        %s332 = scalar_select %p331, %s17, 1
        %s333 = smul.addr %s332, 8
        %s334 = scalar_lea.vmem %s0, %s333
      $region60: #{vit_forward.7} parent=55 // pred_fallthru
        _
    $region56: #{vit_forward.7} parent=5 // pred_fallthru
      _
    %p335 = scmp.le.s32.totalorder 1, %s17
    %p336 = scmp.lt.s32.totalorder %s17, 3
    %p337 = pnand %p335, %p336
    %p338 = pneg %p337
    // Predicated region
    $region61: #{vit_forward.7} parent=5 // pred_check
      _
    $region62: #{vit_forward.7} parent=5 // pred_check_branch
      %340 = sbr.rel (%p337) target = $region64
    $region63: #{vit_forward.7} parent=5 // pred_region
      %s341 = ssub.s32 %s17, 1
      %p342 = scmp.lt.s32.totalorder %s22, 1
      %s343 = scalar_select %p342, %s22, 1
      %s344 = smul.addr %s343, 8
      %s345 = scalar_lea.vmem %s0, %s344
      %p346 = pneg %p43
      %p347 = pneg %p40
      %p348 = pneg %p64
      %p349 = pneg %p61
      %p350 = pneg %p85
      %p351 = pneg %p82
      %p352 = pneg %p106
      %p353 = pneg %p103
      %p354 = pneg %p127
      %p355 = pneg %p124
      %p356 = pneg %p148
      %p357 = pneg %p145
      %p358 = pneg %p169
      %p359 = pneg %p166
      %p360 = pneg %p190
      %p361 = pneg %p187
      %p362 = pneg %p211
      %p363 = pneg %p208
      %p364 = pneg %p232
      %p365 = pneg %p229
      %p366 = pneg %p253
      %p367 = pneg %p250
      %p368 = pneg %p279
      %p369 = pneg %p276
      %p370 = scmp.lt.s32.totalorder %s22, 1
      %s371 = scalar_select %p370, %s22, 1
      %s372 = smul.addr %s371, 8
      %s373 = scalar_lea.vmem %s11, %s372
      %p374 = scmp.lt.s32.totalorder %s22, 1
      %s375 = scalar_select %p374, %s22, 1
      %s376 = smul.addr %s375, 8
      %s377 = scalar_lea.vmem %s0, %s376
      %p378 = scmp.lt.s32.totalorder %s22, 1
      %s379 = scalar_select %p378, %s22, 1
      %s380 = smul.addr %s379, 8
      %s381 = scalar_lea.vmem %s11, %s380
      %v383 = vld [vmem:[%s377] sm:$0x1f]
      %v384 = vld [vmem:[%s1] sm:$0x1]
      %v385 = vld [vmem:[%s2] sm:$0x1]
      %vm386 = vcmask 520192
      %v387 = vsel %vm386, %v383, 0.0
      %388 = vadd.xlane.f32.xlu0 %v387
      %v389 = vpop.xlane.xlu0 %388
      %v390 = vrcp.pop 64.0
      %v391 = vmul.f32 %v389, %v390
      %v392 = vsub.f32 %v383, %v391
      %v393 = vmul.f32 %v392, %v392
      %v394 = vsel %vm386, %v393, 0.0
      %395 = vadd.xlane.f32.xlu0 %v394
      %v396 = vpop.xlane.xlu0 %395
      %v397 = vmul.f32 %v396, %v390
      %v398 = vadd.f32 %v397, 1e-06
      %v399 = vrsqrt.pop %v398
      %v400 = vmul.f32 %v392, %v399
      %v402 = vlaneseq
      %v403 = vshrl.u32 %v402, 7
      %v404 = vsub.s32 0, %v403
      %v405 = vrot.slane %v384, %v404
      %v407 = vmul.f32 %v400, %v405
      %v409 = vlaneseq
      %v410 = vshrl.u32 %v409, 7
      %v411 = vsub.s32 0, %v410
      %v412 = vrot.slane %v385, %v411
      %v414 = vadd.f32 %v407, %v412
      %v415 = vpack.c.bf16 %v414, %v414
      %v416 = vld [vmem:[%s3] sm:$0xf]
      %v417 = vld [vmem:[%s3 + $0x4] sm:$0xf]
      %v418 = vld [vmem:[%s3 + $0x8] sm:$0xf]
      %v419 = vld [vmem:[%s3 + $0xc] sm:$0xf]
      %v420 = vld [vmem:[%s3 + $0x10] sm:$0xf]
      %v421 = vld [vmem:[%s3 + $0x14] sm:$0xf]
      %v422 = vld [vmem:[%s3 + $0x18] sm:$0xf]
      %v423 = vld [vmem:[%s3 + $0x1c] sm:$0xf]
      %v424 = vld [vmem:[%s6] sm:$0x1]
      %v426 = vlaneseq
      %v427 = vshrl.u32 %v426, 7
      %v428 = vsub.s32 0, %v427
      %v429 = vrot.slane %v424, %v428
      %v439 = vunpack.c.l.b16 %v416
      %v440 = vunpack.c.l.b16 %v417
      %v441 = vunpack.c.l.b16 %v418
      %v442 = vunpack.c.l.b16 %v419
      %v443 = vunpack.c.l.b16 %v420
      %v444 = vunpack.c.l.b16 %v421
      %v445 = vunpack.c.l.b16 %v422
      %v446 = vunpack.c.l.b16 %v423
      %v447 = vpack.c.b16 %v440, %v439
      %v448 = vpack.c.b16 %v442, %v441
      %v449 = vpack.c.b16 %v444, %v443
      %v450 = vpack.c.b16 %v446, %v445
      %vm455 = vcmask 523264
      %v457 = vsel %vm455, %v415, 0
      %459 = vmatprep.subr.bf16.mxu0 0
      %460 = vmatpush1.bf16.msra.mxu0 %v447
      %461 = vmatprep.subr.bf16.mxu0 0
      %462 = vmatpush1.bf16.msra.mxu0 %v448
      %463 = vmatprep.subr.bf16.mxu0 0
      %464 = vmatpush1.bf16.msra.mxu0 %v449
      %465 = vmatprep.subr.bf16.mxu0 0
      %466 = vmatpush1.bf16.msra.mxu0 %v450
      %467 = vmatprep.subr.bf16.mxu0 0
      %468 = vmatpush1.bf16.msra.mxu0 0
      %469 = vmatprep.subr.bf16.mxu0 0
      %470 = vmatpush1.bf16.msra.mxu0 0
      %471 = vmatprep.subr.bf16.mxu0 0
      %472 = vmatpush1.bf16.msra.mxu0 0
      %473 = vmatprep.subr.bf16.mxu0 0
      %474 = vmatpush1.bf16.msra.mxu0 0
      %475 = vmatprep.subr.bf16.mxu0 0
      %476 = vmatpush1.bf16.msra.mxu0 0
      %477 = vmatprep.subr.bf16.mxu0 0
      %478 = vmatpush1.bf16.msra.mxu0 0
      %479 = vmatprep.subr.bf16.mxu0 0
      %480 = vmatpush1.bf16.msra.mxu0 0
      %481 = vmatprep.subr.bf16.mxu0 0
      %482 = vmatpush1.bf16.msra.mxu0 0
      %483 = vmatprep.subr.bf16.mxu0 0
      %484 = vmatpush1.bf16.msra.mxu0 0
      %485 = vmatprep.subr.bf16.mxu0 0
      %486 = vmatpush1.bf16.msra.mxu0 0
      %487 = vmatprep.subr.bf16.mxu0 0
      %488 = vmatpush1.bf16.msra.mxu0 0
      %489 = vmatprep.subr.bf16.mxu0 0
      %490 = vmatpush1.bf16.msra.mxu0 0
      %491 = vmatprep.mubr.bf16.mxu0 0
      %492 = vmatmul.mubr.bf16.gmra.mrb[0].mxu0 %v457
      %v493 = vpop.f32.mrb[0].mxu0
      %v494 = vadd.f32 %v429, %v493
      %v495 = vpop.f32.mrb[0].mxu0
      %v496 = vpop.f32.mrb[0].mxu0
      %v497 = vpop.f32.mrb[0].mxu0
      %498 = vdwg.mxu0
      %v499 = vld [vmem:[%s4] sm:$0xf]
      %v500 = vld [vmem:[%s4 + $0x4] sm:$0xf]
      %v501 = vld [vmem:[%s4 + $0x8] sm:$0xf]
      %v502 = vld [vmem:[%s4 + $0xc] sm:$0xf]
      %v503 = vld [vmem:[%s4 + $0x10] sm:$0xf]
      %v504 = vld [vmem:[%s4 + $0x14] sm:$0xf]
      %v505 = vld [vmem:[%s4 + $0x18] sm:$0xf]
      %v506 = vld [vmem:[%s4 + $0x1c] sm:$0xf]
      %v507 = vld [vmem:[%s7] sm:$0x1]
      %v509 = vlaneseq
      %v510 = vshrl.u32 %v509, 7
      %v511 = vsub.s32 0, %v510
      %v512 = vrot.slane %v507, %v511
      %v522 = vunpack.c.l.b16 %v499
      %v523 = vunpack.c.l.b16 %v500
      %v524 = vunpack.c.l.b16 %v501
      %v525 = vunpack.c.l.b16 %v502
      %v526 = vunpack.c.l.b16 %v503
      %v527 = vunpack.c.l.b16 %v504
      %v528 = vunpack.c.l.b16 %v505
      %v529 = vunpack.c.l.b16 %v506
      %v530 = vpack.c.b16 %v523, %v522
      %v531 = vpack.c.b16 %v525, %v524
      %v532 = vpack.c.b16 %v527, %v526
      %v533 = vpack.c.b16 %v529, %v528
      %538 = vmatprep.subr.bf16.mxu0 0
      %539 = vmatpush1.bf16.msra.mxu0 %v530
      %540 = vmatprep.subr.bf16.mxu0 0
      %541 = vmatpush1.bf16.msra.mxu0 %v531
      %542 = vmatprep.subr.bf16.mxu0 0
      %543 = vmatpush1.bf16.msra.mxu0 %v532
      %544 = vmatprep.subr.bf16.mxu0 0
      %545 = vmatpush1.bf16.msra.mxu0 %v533
      %546 = vmatprep.subr.bf16.mxu0 0
      %547 = vmatpush1.bf16.msra.mxu0 0
      %548 = vmatprep.subr.bf16.mxu0 0
      %549 = vmatpush1.bf16.msra.mxu0 0
      %550 = vmatprep.subr.bf16.mxu0 0
      %551 = vmatpush1.bf16.msra.mxu0 0
      %552 = vmatprep.subr.bf16.mxu0 0
      %553 = vmatpush1.bf16.msra.mxu0 0
      %554 = vmatprep.subr.bf16.mxu0 0
      %555 = vmatpush1.bf16.msra.mxu0 0
      %556 = vmatprep.subr.bf16.mxu0 0
      %557 = vmatpush1.bf16.msra.mxu0 0
      %558 = vmatprep.subr.bf16.mxu0 0
      %559 = vmatpush1.bf16.msra.mxu0 0
      %560 = vmatprep.subr.bf16.mxu0 0
      %561 = vmatpush1.bf16.msra.mxu0 0
      %562 = vmatprep.subr.bf16.mxu0 0
      %563 = vmatpush1.bf16.msra.mxu0 0
      %564 = vmatprep.subr.bf16.mxu0 0
      %565 = vmatpush1.bf16.msra.mxu0 0
      %566 = vmatprep.subr.bf16.mxu0 0
      %567 = vmatpush1.bf16.msra.mxu0 0
      %568 = vmatprep.subr.bf16.mxu0 0
      %569 = vmatpush1.bf16.msra.mxu0 0
      %570 = vmatprep.mubr.bf16.mxu0 0
      %571 = vmatmul.mubr.bf16.gmra.mrb[0].mxu0 %v457
      %v572 = vpop.f32.mrb[0].mxu0
      %v573 = vadd.f32 %v512, %v572
      %v574 = vpop.f32.mrb[0].mxu0
      %v575 = vpop.f32.mrb[0].mxu0
      %v576 = vpop.f32.mrb[0].mxu0
      %577 = vdwg.mxu0
      %v578 = vld [vmem:[%s5] sm:$0xf]
      %v579 = vld [vmem:[%s5 + $0x4] sm:$0xf]
      %v580 = vld [vmem:[%s5 + $0x8] sm:$0xf]
      %v581 = vld [vmem:[%s5 + $0xc] sm:$0xf]
      %v582 = vld [vmem:[%s5 + $0x10] sm:$0xf]
      %v583 = vld [vmem:[%s5 + $0x14] sm:$0xf]
      %v584 = vld [vmem:[%s5 + $0x18] sm:$0xf]
      %v585 = vld [vmem:[%s5 + $0x1c] sm:$0xf]
      %v586 = vld [vmem:[%s8] sm:$0x1]
      %v588 = vlaneseq
      %v589 = vshrl.u32 %v588, 7
      %v590 = vsub.s32 0, %v589
      %v591 = vrot.slane %v586, %v590
      %v601 = vunpack.c.l.b16 %v578
      %v602 = vunpack.c.l.b16 %v579
      %v603 = vunpack.c.l.b16 %v580
      %v604 = vunpack.c.l.b16 %v581
      %v605 = vunpack.c.l.b16 %v582
      %v606 = vunpack.c.l.b16 %v583
      %v607 = vunpack.c.l.b16 %v584
      %v608 = vunpack.c.l.b16 %v585
      %v609 = vpack.c.b16 %v602, %v601
      %v610 = vpack.c.b16 %v604, %v603
      %v611 = vpack.c.b16 %v606, %v605
      %v612 = vpack.c.b16 %v608, %v607
      %617 = vmatprep.subr.bf16.mxu0 0
      %618 = vmatpush1.bf16.msra.mxu0 %v609
      %619 = vmatprep.subr.bf16.mxu0 0
      %620 = vmatpush1.bf16.msra.mxu0 %v610
      %621 = vmatprep.subr.bf16.mxu0 0
      %622 = vmatpush1.bf16.msra.mxu0 %v611
      %623 = vmatprep.subr.bf16.mxu0 0
      %624 = vmatpush1.bf16.msra.mxu0 %v612
      %625 = vmatprep.subr.bf16.mxu0 0
      %626 = vmatpush1.bf16.msra.mxu0 0
      %627 = vmatprep.subr.bf16.mxu0 0
      %628 = vmatpush1.bf16.msra.mxu0 0
      %629 = vmatprep.subr.bf16.mxu0 0
      %630 = vmatpush1.bf16.msra.mxu0 0
      %631 = vmatprep.subr.bf16.mxu0 0
      %632 = vmatpush1.bf16.msra.mxu0 0
      %633 = vmatprep.subr.bf16.mxu0 0
      %634 = vmatpush1.bf16.msra.mxu0 0
      %635 = vmatprep.subr.bf16.mxu0 0
      %636 = vmatpush1.bf16.msra.mxu0 0
      %637 = vmatprep.subr.bf16.mxu0 0
      %638 = vmatpush1.bf16.msra.mxu0 0
      %639 = vmatprep.subr.bf16.mxu0 0
      %640 = vmatpush1.bf16.msra.mxu0 0
      %641 = vmatprep.subr.bf16.mxu0 0
      %642 = vmatpush1.bf16.msra.mxu0 0
      %643 = vmatprep.subr.bf16.mxu0 0
      %644 = vmatpush1.bf16.msra.mxu0 0
      %645 = vmatprep.subr.bf16.mxu0 0
      %646 = vmatpush1.bf16.msra.mxu0 0
      %647 = vmatprep.subr.bf16.mxu0 0
      %648 = vmatpush1.bf16.msra.mxu0 0
      %649 = vmatprep.mubr.bf16.mxu0 0
      %650 = vmatmul.mubr.bf16.gmra.mrb[0].mxu0 %v457
      %v651 = vpop.f32.mrb[0].mxu0
      %v652 = vadd.f32 %v591, %v651
      %v653 = vpop.f32.mrb[0].mxu0
      %v654 = vpop.f32.mrb[0].mxu0
      %v655 = vpop.f32.mrb[0].mxu0
      %656 = vdwg.mxu0
      %vm657 = vcmask 130048
      %v659 = vsel %vm657, %v494, 0
      %v662 = vsel %vm657, %v573, 0
      %664 = vmatprep.subr.mxu0 0.0
      %665 = vmatpush1.xpose.msra.mxu0 %v662
      %666 = vmatprep.subr.mxu0 0.0
      %667 = vmatpush1.xpose.msra.mxu0 0.0
      %668 = vmatprep.subr.mxu0 0.0
      %669 = vmatpush1.xpose.msra.mxu0 0.0
      %670 = vmatprep.subr.mxu0 0.0
      %671 = vmatpush1.xpose.msra.mxu0 0.0
      %672 = vmatprep.subr.mxu0 0.0
      %673 = vmatpush1.xpose.msra.mxu0 0.0
      %674 = vmatprep.subr.mxu0 0.0
      %675 = vmatpush1.xpose.msra.mxu0 0.0
      %676 = vmatprep.subr.mxu0 0.0
      %677 = vmatpush1.xpose.msra.mxu0 0.0
      %678 = vmatprep.subr.mxu0 0.0
      %679 = vmatpush1.xpose.msra.mxu0 0.0
      %680 = vmatprep.subr.mxu0 0.0
      %681 = vmatpush1.xpose.msra.mxu0 0.0
      %682 = vmatprep.subr.mxu0 0.0
      %683 = vmatpush1.xpose.msra.mxu0 0.0
      %684 = vmatprep.subr.mxu0 0.0
      %685 = vmatpush1.xpose.msra.mxu0 0.0
      %686 = vmatprep.subr.mxu0 0.0
      %687 = vmatpush1.xpose.msra.mxu0 0.0
      %688 = vmatprep.subr.mxu0 0.0
      %689 = vmatpush1.xpose.msra.mxu0 0.0
      %690 = vmatprep.subr.mxu0 0.0
      %691 = vmatpush1.xpose.msra.mxu0 0.0
      %692 = vmatprep.subr.mxu0 0.0
      %693 = vmatpush1.xpose.msra.mxu0 0.0
      %694 = vmatprep.subr.mxu0 0.0
      %695 = vmatpush1.xpose.msra.mxu0 0.0
      %696 = vmatprep.subr.mxu0 0.0
      %697 = vmatpush1.xpose.msra.mxu0 0.0
      %698 = vmatprep.subr.mxu0 0.0
      %699 = vmatpush1.xpose.msra.mxu0 0.0
      %700 = vmatprep.subr.mxu0 0.0
      %701 = vmatpush1.xpose.msra.mxu0 0.0
      %702 = vmatprep.subr.mxu0 0.0
      %703 = vmatpush1.xpose.msra.mxu0 0.0
      %704 = vmatprep.subr.mxu0 0.0
      %705 = vmatpush1.xpose.msra.mxu0 0.0
      %706 = vmatprep.subr.mxu0 0.0
      %707 = vmatpush1.xpose.msra.mxu0 0.0
      %708 = vmatprep.subr.mxu0 0.0
      %709 = vmatpush1.xpose.msra.mxu0 0.0
      %710 = vmatprep.subr.mxu0 0.0
      %711 = vmatpush1.xpose.msra.mxu0 0.0
      %712 = vmatprep.subr.mxu0 0.0
      %713 = vmatpush1.xpose.msra.mxu0 0.0
      %714 = vmatprep.subr.mxu0 0.0
      %715 = vmatpush1.xpose.msra.mxu0 0.0
      %716 = vmatprep.subr.mxu0 0.0
      %717 = vmatpush1.xpose.msra.mxu0 0.0
      %718 = vmatprep.subr.mxu0 0.0
      %719 = vmatpush1.xpose.msra.mxu0 0.0
      %720 = vmatprep.subr.mxu0 0.0
      %721 = vmatpush1.xpose.msra.mxu0 0.0
      %722 = vmatprep.subr.mxu0 0.0
      %723 = vmatpush1.xpose.msra.mxu0 0.0
      %724 = vmatprep.subr.mxu0 0.0
      %725 = vmatpush1.xpose.msra.mxu0 0.0
      %726 = vmatprep.subr.mxu0 0.0
      %727 = vmatpush1.xpose.msra.mxu0 0.0
      %728 = vmatprep.mubr.f32.mxu0 0.0
      %729 = vmatmul.mubr.f32.gmra.mrb[0].mxu0 %v659
      %v730 = vpop.f32.mrb[0].mxu0
      %v731 = vadd.f32 0.0, %v730
      %v732 = vpop.f32.mrb[0].mxu0
      %733 = vdwg.mxu0
      %v734 = vmul.f32 %v731, 0.25
      %vm735 = vcmask 36864
      %v736 = vsel %vm735, %v734, -inf
      %737 = vmax.xlane.f32.xlu0 %v736
      %v738 = vpop.xlane.xlu0 %737
      %v739 = vsub.f32 %v734, %v738
      %v740 = vmul.f32 %v739, 1.442695
      %v741 = vpow.pop %v740
      %v742 = vsel %vm735, %v741, 0.0
      %743 = vadd.xlane.f32.xlu0 %v742
      %v744 = vpop.xlane.xlu0 %743
      %v745 = vrcp.pop %v744
      %v746 = vmul.f32 %v741, %v745
      %v747 = vpack.c.bf16 %v746, %v746
      %v748 = vpack.c.bf16 %v652, %v652
      %vm749 = vcmask 39936
      %v751 = vsel %vm749, %v747, 0
      %vm753 = vcmask 1041408
      %vm754 = vcmask 1042432
      %v755 = vsel %vm753, 4294967295, 65535
      %v756 = vsel %vm754, %v755, 0
      %v758 = vand.u32 %v748, %v756
      %760 = vmatprep.subr.bf16.mxu0 0
      %761 = vmatpush1.bf16.msra.mxu0 %v758
      %762 = vmatprep.subr.bf16.mxu0 0
      %763 = vmatpush1.bf16.msra.mxu0 0
      %764 = vmatprep.subr.bf16.mxu0 0
      %765 = vmatpush1.bf16.msra.mxu0 0
      %766 = vmatprep.subr.bf16.mxu0 0
      %767 = vmatpush1.bf16.msra.mxu0 0
      %768 = vmatprep.subr.bf16.mxu0 0
      %769 = vmatpush1.bf16.msra.mxu0 0
      %770 = vmatprep.subr.bf16.mxu0 0
      %771 = vmatpush1.bf16.msra.mxu0 0
      %772 = vmatprep.subr.bf16.mxu0 0
      %773 = vmatpush1.bf16.msra.mxu0 0
      %774 = vmatprep.subr.bf16.mxu0 0
      %775 = vmatpush1.bf16.msra.mxu0 0
      %776 = vmatprep.subr.bf16.mxu0 0
      %777 = vmatpush1.bf16.msra.mxu0 0
      %778 = vmatprep.subr.bf16.mxu0 0
      %779 = vmatpush1.bf16.msra.mxu0 0
      %780 = vmatprep.subr.bf16.mxu0 0
      %781 = vmatpush1.bf16.msra.mxu0 0
      %782 = vmatprep.subr.bf16.mxu0 0
      %783 = vmatpush1.bf16.msra.mxu0 0
      %784 = vmatprep.subr.bf16.mxu0 0
      %785 = vmatpush1.bf16.msra.mxu0 0
      %786 = vmatprep.subr.bf16.mxu0 0
      %787 = vmatpush1.bf16.msra.mxu0 0
      %788 = vmatprep.subr.bf16.mxu0 0
      %789 = vmatpush1.bf16.msra.mxu0 0
      %790 = vmatprep.subr.bf16.mxu0 0
      %791 = vmatpush1.bf16.msra.mxu0 0
      %792 = vmatprep.mubr.bf16.mxu0 0
      %793 = vmatmul.mubr.bf16.gmra.mrb[0].mxu0 %v751
      %v794 = vpop.f32.mrb[0].mxu0
      %v795 = vadd.f32 0.0, %v794
      %v796 = vpop.f32.mrb[0].mxu0
      %v797 = vpop.f32.mrb[0].mxu0
      %v798 = vpop.f32.mrb[0].mxu0
      %799 = vdwg.mxu0
      %v800 = vpack.c.bf16 %v795, %v795
      %v801 = vld [vmem:[%s9] sm:$0xf]
      %v802 = vld [vmem:[%s9 + $0x4] sm:$0xf]
      %s803 = scalar_lea.vmem %s3, 32
      %v804 = vld [vmem:[%s803] sm:$0xf]
      %v805 = vld [vmem:[%s803 + $0x4] sm:$0xf]
      %v806 = vld [vmem:[%s803 + $0x8] sm:$0xf]
      %v807 = vld [vmem:[%s803 + $0xc] sm:$0xf]
      %v808 = vld [vmem:[%s803 + $0x10] sm:$0xf]
      %v809 = vld [vmem:[%s803 + $0x14] sm:$0xf]
      %v810 = vld [vmem:[%s803 + $0x18] sm:$0xf]
      %v811 = vld [vmem:[%s803 + $0x1c] sm:$0xf]
      %s812 = scalar_lea.vmem %s6, 1
      %v813 = vld [vmem:[%s812] sm:$0x1]
      %v815 = vlaneseq
      %v816 = vshrl.u32 %v815, 7
      %v817 = vsub.s32 0, %v816
      %v818 = vrot.slane %v813, %v817
      %v828 = vunpack.c.l.b16 %v804
      %v829 = vunpack.c.l.b16 %v805
      %v830 = vunpack.c.l.b16 %v806
      %v831 = vunpack.c.l.b16 %v807
      %v832 = vunpack.c.l.b16 %v808
      %v833 = vunpack.c.l.b16 %v809
      %v834 = vunpack.c.l.b16 %v810
      %v835 = vunpack.c.l.b16 %v811
      %v836 = vpack.c.b16 %v829, %v828
      %v837 = vpack.c.b16 %v831, %v830
      %v838 = vpack.c.b16 %v833, %v832
      %v839 = vpack.c.b16 %v835, %v834
      %844 = vmatprep.subr.bf16.mxu0 0
      %845 = vmatpush1.bf16.msra.mxu0 %v836
      %846 = vmatprep.subr.bf16.mxu0 0
      %847 = vmatpush1.bf16.msra.mxu0 %v837
      %848 = vmatprep.subr.bf16.mxu0 0
      %849 = vmatpush1.bf16.msra.mxu0 %v838
      %850 = vmatprep.subr.bf16.mxu0 0
      %851 = vmatpush1.bf16.msra.mxu0 %v839
      %852 = vmatprep.subr.bf16.mxu0 0
      %853 = vmatpush1.bf16.msra.mxu0 0
      %854 = vmatprep.subr.bf16.mxu0 0
      %855 = vmatpush1.bf16.msra.mxu0 0
      %856 = vmatprep.subr.bf16.mxu0 0
      %857 = vmatpush1.bf16.msra.mxu0 0
      %858 = vmatprep.subr.bf16.mxu0 0
      %859 = vmatpush1.bf16.msra.mxu0 0
      %860 = vmatprep.subr.bf16.mxu0 0
      %861 = vmatpush1.bf16.msra.mxu0 0
      %862 = vmatprep.subr.bf16.mxu0 0
      %863 = vmatpush1.bf16.msra.mxu0 0
      %864 = vmatprep.subr.bf16.mxu0 0
      %865 = vmatpush1.bf16.msra.mxu0 0
      %866 = vmatprep.subr.bf16.mxu0 0
      %867 = vmatpush1.bf16.msra.mxu0 0
      %868 = vmatprep.subr.bf16.mxu0 0
      %869 = vmatpush1.bf16.msra.mxu0 0
      %870 = vmatprep.subr.bf16.mxu0 0
      %871 = vmatpush1.bf16.msra.mxu0 0
      %872 = vmatprep.subr.bf16.mxu0 0
      %873 = vmatpush1.bf16.msra.mxu0 0
      %874 = vmatprep.subr.bf16.mxu0 0
      %875 = vmatpush1.bf16.msra.mxu0 0
      %876 = vmatprep.mubr.bf16.mxu0 0
      %877 = vmatmul.mubr.bf16.gmra.mrb[0].mxu0 %v457
      %v878 = vpop.f32.mrb[0].mxu0
      %v879 = vadd.f32 %v818, %v878
      %v880 = vpop.f32.mrb[0].mxu0
      %v881 = vpop.f32.mrb[0].mxu0
      %v882 = vpop.f32.mrb[0].mxu0
      %883 = vdwg.mxu0
      %s884 = scalar_lea.vmem %s4, 32
      %v885 = vld [vmem:[%s884] sm:$0xf]
      %v886 = vld [vmem:[%s884 + $0x4] sm:$0xf]
      %v887 = vld [vmem:[%s884 + $0x8] sm:$0xf]
      %v888 = vld [vmem:[%s884 + $0xc] sm:$0xf]
      %v889 = vld [vmem:[%s884 + $0x10] sm:$0xf]
      %v890 = vld [vmem:[%s884 + $0x14] sm:$0xf]
      %v891 = vld [vmem:[%s884 + $0x18] sm:$0xf]
      %v892 = vld [vmem:[%s884 + $0x1c] sm:$0xf]
      %s893 = scalar_lea.vmem %s7, 1
      %v894 = vld [vmem:[%s893] sm:$0x1]
      %v896 = vlaneseq
      %v897 = vshrl.u32 %v896, 7
      %v898 = vsub.s32 0, %v897
      %v899 = vrot.slane %v894, %v898
      %v909 = vunpack.c.l.b16 %v885
      %v910 = vunpack.c.l.b16 %v886
      %v911 = vunpack.c.l.b16 %v887
      %v912 = vunpack.c.l.b16 %v888
      %v913 = vunpack.c.l.b16 %v889
      %v914 = vunpack.c.l.b16 %v890
      %v915 = vunpack.c.l.b16 %v891
      %v916 = vunpack.c.l.b16 %v892
      %v917 = vpack.c.b16 %v910, %v909
      %v918 = vpack.c.b16 %v912, %v911
      %v919 = vpack.c.b16 %v914, %v913
      %v920 = vpack.c.b16 %v916, %v915
      %925 = vmatprep.subr.bf16.mxu0 0
      %926 = vmatpush1.bf16.msra.mxu0 %v917
      %927 = vmatprep.subr.bf16.mxu0 0
      %928 = vmatpush1.bf16.msra.mxu0 %v918
      %929 = vmatprep.subr.bf16.mxu0 0
      %930 = vmatpush1.bf16.msra.mxu0 %v919
      %931 = vmatprep.subr.bf16.mxu0 0
      %932 = vmatpush1.bf16.msra.mxu0 %v920
      %933 = vmatprep.subr.bf16.mxu0 0
      %934 = vmatpush1.bf16.msra.mxu0 0
      %935 = vmatprep.subr.bf16.mxu0 0
      %936 = vmatpush1.bf16.msra.mxu0 0
      %937 = vmatprep.subr.bf16.mxu0 0
      %938 = vmatpush1.bf16.msra.mxu0 0
      %939 = vmatprep.subr.bf16.mxu0 0
      %940 = vmatpush1.bf16.msra.mxu0 0
      %941 = vmatprep.subr.bf16.mxu0 0
      %942 = vmatpush1.bf16.msra.mxu0 0
      %943 = vmatprep.subr.bf16.mxu0 0
      %944 = vmatpush1.bf16.msra.mxu0 0
      %945 = vmatprep.subr.bf16.mxu0 0
      %946 = vmatpush1.bf16.msra.mxu0 0
      %947 = vmatprep.subr.bf16.mxu0 0
      %948 = vmatpush1.bf16.msra.mxu0 0
      %949 = vmatprep.subr.bf16.mxu0 0
      %950 = vmatpush1.bf16.msra.mxu0 0
      %951 = vmatprep.subr.bf16.mxu0 0
      %952 = vmatpush1.bf16.msra.mxu0 0
      %953 = vmatprep.subr.bf16.mxu0 0
      %954 = vmatpush1.bf16.msra.mxu0 0
      %955 = vmatprep.subr.bf16.mxu0 0
      %956 = vmatpush1.bf16.msra.mxu0 0
      %957 = vmatprep.mubr.bf16.mxu0 0
      %958 = vmatmul.mubr.bf16.gmra.mrb[0].mxu0 %v457
      %v959 = vpop.f32.mrb[0].mxu0
      %v960 = vadd.f32 %v899, %v959
      %v961 = vpop.f32.mrb[0].mxu0
      %v962 = vpop.f32.mrb[0].mxu0
      %v963 = vpop.f32.mrb[0].mxu0
      %964 = vdwg.mxu0
      %s965 = scalar_lea.vmem %s5, 32
      %v966 = vld [vmem:[%s965] sm:$0xf]
      %v967 = vld [vmem:[%s965 + $0x4] sm:$0xf]
      %v968 = vld [vmem:[%s965 + $0x8] sm:$0xf]
      %v969 = vld [vmem:[%s965 + $0xc] sm:$0xf]
      %v970 = vld [vmem:[%s965 + $0x10] sm:$0xf]
      %v971 = vld [vmem:[%s965 + $0x14] sm:$0xf]
      %v972 = vld [vmem:[%s965 + $0x18] sm:$0xf]
      %v973 = vld [vmem:[%s965 + $0x1c] sm:$0xf]
      %s974 = scalar_lea.vmem %s8, 1
      %v975 = vld [vmem:[%s974] sm:$0x1]
      %v977 = vlaneseq
      %v978 = vshrl.u32 %v977, 7
      %v979 = vsub.s32 0, %v978
      %v980 = vrot.slane %v975, %v979
      %v990 = vunpack.c.l.b16 %v966
      %v991 = vunpack.c.l.b16 %v967
      %v992 = vunpack.c.l.b16 %v968
      %v993 = vunpack.c.l.b16 %v969
      %v994 = vunpack.c.l.b16 %v970
      %v995 = vunpack.c.l.b16 %v971
      %v996 = vunpack.c.l.b16 %v972
      %v997 = vunpack.c.l.b16 %v973
      %v998 = vpack.c.b16 %v991, %v990
      %v999 = vpack.c.b16 %v993, %v992
      %v1000 = vpack.c.b16 %v995, %v994
      %v1001 = vpack.c.b16 %v997, %v996
      %1006 = vmatprep.subr.bf16.mxu0 0
      %1007 = vmatpush1.bf16.msra.mxu0 %v998
      %1008 = vmatprep.subr.bf16.mxu0 0
      %1009 = vmatpush1.bf16.msra.mxu0 %v999
      %1010 = vmatprep.subr.bf16.mxu0 0
      %1011 = vmatpush1.bf16.msra.mxu0 %v1000
      %1012 = vmatprep.subr.bf16.mxu0 0
      %1013 = vmatpush1.bf16.msra.mxu0 %v1001
      %1014 = vmatprep.subr.bf16.mxu0 0
      %1015 = vmatpush1.bf16.msra.mxu0 0
      %1016 = vmatprep.subr.bf16.mxu0 0
      %1017 = vmatpush1.bf16.msra.mxu0 0
      %1018 = vmatprep.subr.bf16.mxu0 0
      %1019 = vmatpush1.bf16.msra.mxu0 0
      %1020 = vmatprep.subr.bf16.mxu0 0
      %1021 = vmatpush1.bf16.msra.mxu0 0
      %1022 = vmatprep.subr.bf16.mxu0 0
      %1023 = vmatpush1.bf16.msra.mxu0 0
      %1024 = vmatprep.subr.bf16.mxu0 0
      %1025 = vmatpush1.bf16.msra.mxu0 0
      %1026 = vmatprep.subr.bf16.mxu0 0
      %1027 = vmatpush1.bf16.msra.mxu0 0
      %1028 = vmatprep.subr.bf16.mxu0 0
      %1029 = vmatpush1.bf16.msra.mxu0 0
      %1030 = vmatprep.subr.bf16.mxu0 0
      %1031 = vmatpush1.bf16.msra.mxu0 0
      %1032 = vmatprep.subr.bf16.mxu0 0
      %1033 = vmatpush1.bf16.msra.mxu0 0
      %1034 = vmatprep.subr.bf16.mxu0 0
      %1035 = vmatpush1.bf16.msra.mxu0 0
      %1036 = vmatprep.subr.bf16.mxu0 0
      %1037 = vmatpush1.bf16.msra.mxu0 0
      %1038 = vmatprep.mubr.bf16.mxu0 0
      %1039 = vmatmul.mubr.bf16.gmra.mrb[0].mxu0 %v457
      %v1040 = vpop.f32.mrb[0].mxu0
      %v1041 = vadd.f32 %v980, %v1040
      %v1042 = vpop.f32.mrb[0].mxu0
      %v1043 = vpop.f32.mrb[0].mxu0
      %v1044 = vpop.f32.mrb[0].mxu0
      %1045 = vdwg.mxu0
      %v1047 = vsel %vm657, %v879, 0
      %v1050 = vsel %vm657, %v960, 0
      %1052 = vmatprep.subr.mxu0 0.0
      %1053 = vmatpush1.xpose.msra.mxu0 %v1050
      %1054 = vmatprep.subr.mxu0 0.0
      %1055 = vmatpush1.xpose.msra.mxu0 0.0
      %1056 = vmatprep.subr.mxu0 0.0
      %1057 = vmatpush1.xpose.msra.mxu0 0.0
      %1058 = vmatprep.subr.mxu0 0.0
      %1059 = vmatpush1.xpose.msra.mxu0 0.0
      %1060 = vmatprep.subr.mxu0 0.0
      %1061 = vmatpush1.xpose.msra.mxu0 0.0
      %1062 = vmatprep.subr.mxu0 0.0
      %1063 = vmatpush1.xpose.msra.mxu0 0.0
      %1064 = vmatprep.subr.mxu0 0.0
      %1065 = vmatpush1.xpose.msra.mxu0 0.0
      %1066 = vmatprep.subr.mxu0 0.0
      %1067 = vmatpush1.xpose.msra.mxu0 0.0
      %1068 = vmatprep.subr.mxu0 0.0
      %1069 = vmatpush1.xpose.msra.mxu0 0.0
      %1070 = vmatprep.subr.mxu0 0.0
      %1071 = vmatpush1.xpose.msra.mxu0 0.0
      %1072 = vmatprep.subr.mxu0 0.0
      %1073 = vmatpush1.xpose.msra.mxu0 0.0
      %1074 = vmatprep.subr.mxu0 0.0
      %1075 = vmatpush1.xpose.msra.mxu0 0.0
      %1076 = vmatprep.subr.mxu0 0.0
      %1077 = vmatpush1.xpose.msra.mxu0 0.0
      %1078 = vmatprep.subr.mxu0 0.0
      %1079 = vmatpush1.xpose.msra.mxu0 0.0
      %1080 = vmatprep.subr.mxu0 0.0
      %1081 = vmatpush1.xpose.msra.mxu0 0.0
      %1082 = vmatprep.subr.mxu0 0.0
      %1083 = vmatpush1.xpose.msra.mxu0 0.0
      %1084 = vmatprep.subr.mxu0 0.0
      %1085 = vmatpush1.xpose.msra.mxu0 0.0
      %1086 = vmatprep.subr.mxu0 0.0
      %1087 = vmatpush1.xpose.msra.mxu0 0.0
      %1088 = vmatprep.subr.mxu0 0.0
      %1089 = vmatpush1.xpose.msra.mxu0 0.0
      %1090 = vmatprep.subr.mxu0 0.0
      %1091 = vmatpush1.xpose.msra.mxu0 0.0
      %1092 = vmatprep.subr.mxu0 0.0
      %1093 = vmatpush1.xpose.msra.mxu0 0.0
      %1094 = vmatprep.subr.mxu0 0.0
      %1095 = vmatpush1.xpose.msra.mxu0 0.0
      %1096 = vmatprep.subr.mxu0 0.0
      %1097 = vmatpush1.xpose.msra.mxu0 0.0
      %1098 = vmatprep.subr.mxu0 0.0
      %1099 = vmatpush1.xpose.msra.mxu0 0.0
      %1100 = vmatprep.subr.mxu0 0.0
      %1101 = vmatpush1.xpose.msra.mxu0 0.0
      %1102 = vmatprep.subr.mxu0 0.0
      %1103 = vmatpush1.xpose.msra.mxu0 0.0
      %1104 = vmatprep.subr.mxu0 0.0
      %1105 = vmatpush1.xpose.msra.mxu0 0.0
      %1106 = vmatprep.subr.mxu0 0.0
      %1107 = vmatpush1.xpose.msra.mxu0 0.0
      %1108 = vmatprep.subr.mxu0 0.0
      %1109 = vmatpush1.xpose.msra.mxu0 0.0
      %1110 = vmatprep.subr.mxu0 0.0
      %1111 = vmatpush1.xpose.msra.mxu0 0.0
      %1112 = vmatprep.subr.mxu0 0.0
      %1113 = vmatpush1.xpose.msra.mxu0 0.0
      %1114 = vmatprep.subr.mxu0 0.0
      %1115 = vmatpush1.xpose.msra.mxu0 0.0
      %1116 = vmatprep.mubr.f32.mxu0 0.0
      %1117 = vmatmul.mubr.f32.gmra.mrb[0].mxu0 %v1047
      %v1118 = vpop.f32.mrb[0].mxu0
      %v1119 = vadd.f32 0.0, %v1118
      %v1120 = vpop.f32.mrb[0].mxu0
      %1121 = vdwg.mxu0
      %v1122 = vmul.f32 %v1119, 0.25
      %v1123 = vsel %vm735, %v1122, -inf
      %1124 = vmax.xlane.f32.xlu0 %v1123
      %v1125 = vpop.xlane.xlu0 %1124
      %v1126 = vsub.f32 %v1122, %v1125
      %v1127 = vmul.f32 %v1126, 1.442695
      %v1128 = vpow.pop %v1127
      %v1129 = vsel %vm735, %v1128, 0.0
      %1130 = vadd.xlane.f32.xlu0 %v1129
      %v1131 = vpop.xlane.xlu0 %1130
      %v1132 = vrcp.pop %v1131
      %v1133 = vmul.f32 %v1128, %v1132
      %v1134 = vpack.c.bf16 %v1133, %v1133
      %v1135 = vpack.c.bf16 %v1041, %v1041
      %v1137 = vsel %vm749, %v1134, 0
      %v1140 = vand.u32 %v1135, %v756
      %1142 = vmatprep.subr.bf16.mxu0 0
      %1143 = vmatpush1.bf16.msra.mxu0 %v1140
      %1144 = vmatprep.subr.bf16.mxu0 0
      %1145 = vmatpush1.bf16.msra.mxu0 0
      %1146 = vmatprep.subr.bf16.mxu0 0
      %1147 = vmatpush1.bf16.msra.mxu0 0
      %1148 = vmatprep.subr.bf16.mxu0 0
      %1149 = vmatpush1.bf16.msra.mxu0 0
      %1150 = vmatprep.subr.bf16.mxu0 0
      %1151 = vmatpush1.bf16.msra.mxu0 0
      %1152 = vmatprep.subr.bf16.mxu0 0
      %1153 = vmatpush1.bf16.msra.mxu0 0
      %1154 = vmatprep.subr.bf16.mxu0 0
      %1155 = vmatpush1.bf16.msra.mxu0 0
      %1156 = vmatprep.subr.bf16.mxu0 0
      %1157 = vmatpush1.bf16.msra.mxu0 0
      %1158 = vmatprep.subr.bf16.mxu0 0
      %1159 = vmatpush1.bf16.msra.mxu0 0
      %1160 = vmatprep.subr.bf16.mxu0 0
      %1161 = vmatpush1.bf16.msra.mxu0 0
      %1162 = vmatprep.subr.bf16.mxu0 0
      %1163 = vmatpush1.bf16.msra.mxu0 0
      %1164 = vmatprep.subr.bf16.mxu0 0
      %1165 = vmatpush1.bf16.msra.mxu0 0
      %1166 = vmatprep.subr.bf16.mxu0 0
      %1167 = vmatpush1.bf16.msra.mxu0 0
      %1168 = vmatprep.subr.bf16.mxu0 0
      %1169 = vmatpush1.bf16.msra.mxu0 0
      %1170 = vmatprep.subr.bf16.mxu0 0
      %1171 = vmatpush1.bf16.msra.mxu0 0
      %1172 = vmatprep.subr.bf16.mxu0 0
      %1173 = vmatpush1.bf16.msra.mxu0 0
      %1174 = vmatprep.mubr.bf16.mxu0 0
      %1175 = vmatmul.mubr.bf16.gmra.mrb[0].mxu0 %v1137
      %v1176 = vpop.f32.mrb[0].mxu0
      %v1177 = vadd.f32 0.0, %v1176
      %v1178 = vpop.f32.mrb[0].mxu0
      %v1179 = vpop.f32.mrb[0].mxu0
      %v1180 = vpop.f32.mrb[0].mxu0
      %1181 = vdwg.mxu0
      %v1182 = vpack.c.bf16 %v1177, %v1177
      %s1183 = scalar_lea.vmem %s9, 8
      %v1184 = vld [vmem:[%s1183] sm:$0xf]
      %v1185 = vld [vmem:[%s1183 + $0x4] sm:$0xf]
      %v1188 = vunpack.c.l.b16 %v1184
      %v1189 = vunpack.c.l.b16 %v1185
      %v1190 = vpack.c.b16 %v1189, %v1188
      %v1193 = vsel %vm657, %v1182, 0
      %1195 = vmatprep.subr.bf16.mxu0 0
      %1196 = vmatpush1.bf16.msra.mxu0 %v1190
      %1197 = vmatprep.subr.bf16.mxu0 0
      %1198 = vmatpush1.bf16.msra.mxu0 0
      %1199 = vmatprep.subr.bf16.mxu0 0
      %1200 = vmatpush1.bf16.msra.mxu0 0
      %1201 = vmatprep.subr.bf16.mxu0 0
      %1202 = vmatpush1.bf16.msra.mxu0 0
      %1203 = vmatprep.subr.bf16.mxu0 0
      %1204 = vmatpush1.bf16.msra.mxu0 0
      %1205 = vmatprep.subr.bf16.mxu0 0
      %1206 = vmatpush1.bf16.msra.mxu0 0
      %1207 = vmatprep.subr.bf16.mxu0 0
      %1208 = vmatpush1.bf16.msra.mxu0 0
      %1209 = vmatprep.subr.bf16.mxu0 0
      %1210 = vmatpush1.bf16.msra.mxu0 0
      %1211 = vmatprep.subr.bf16.mxu0 0
      %1212 = vmatpush1.bf16.msra.mxu0 0
      %1213 = vmatprep.subr.bf16.mxu0 0
      %1214 = vmatpush1.bf16.msra.mxu0 0
      %1215 = vmatprep.subr.bf16.mxu0 0
      %1216 = vmatpush1.bf16.msra.mxu0 0
      %1217 = vmatprep.subr.bf16.mxu0 0
      %1218 = vmatpush1.bf16.msra.mxu0 0
      %1219 = vmatprep.subr.bf16.mxu0 0
      %1220 = vmatpush1.bf16.msra.mxu0 0
      %1221 = vmatprep.subr.bf16.mxu0 0
      %1222 = vmatpush1.bf16.msra.mxu0 0
      %1223 = vmatprep.subr.bf16.mxu0 0
      %1224 = vmatpush1.bf16.msra.mxu0 0
      %1225 = vmatprep.subr.bf16.mxu0 0
      %1226 = vmatpush1.bf16.msra.mxu0 0
      %1227 = vmatprep.mubr.bf16.mxu0 0
      %1228 = vmatmul.mubr.bf16.gmra.mrb[0].mxu0 %v1193
      %v1229 = vpop.f32.mrb[0].mxu0
      %v1230 = vadd.f32 0.0, %v1229
      %v1231 = vpop.f32.mrb[0].mxu0
      %v1232 = vpop.f32.mrb[0].mxu0
      %v1233 = vpop.f32.mrb[0].mxu0
      %1234 = vdwg.mxu0
      %v1237 = vunpack.c.l.b16 %v801
      %v1238 = vunpack.c.l.b16 %v802
      %v1239 = vpack.c.b16 %v1238, %v1237
      %v1242 = vsel %vm657, %v800, 0
      %1244 = vmatprep.subr.bf16.mxu0 0
      %1245 = vmatpush1.bf16.msra.mxu0 %v1239
      %1246 = vmatprep.subr.bf16.mxu0 0
      %1247 = vmatpush1.bf16.msra.mxu0 0
      %1248 = vmatprep.subr.bf16.mxu0 0
      %1249 = vmatpush1.bf16.msra.mxu0 0
      %1250 = vmatprep.subr.bf16.mxu0 0
      %1251 = vmatpush1.bf16.msra.mxu0 0
      %1252 = vmatprep.subr.bf16.mxu0 0
      %1253 = vmatpush1.bf16.msra.mxu0 0
      %1254 = vmatprep.subr.bf16.mxu0 0
      %1255 = vmatpush1.bf16.msra.mxu0 0
      %1256 = vmatprep.subr.bf16.mxu0 0
      %1257 = vmatpush1.bf16.msra.mxu0 0
      %1258 = vmatprep.subr.bf16.mxu0 0
      %1259 = vmatpush1.bf16.msra.mxu0 0
      %1260 = vmatprep.subr.bf16.mxu0 0
      %1261 = vmatpush1.bf16.msra.mxu0 0
      %1262 = vmatprep.subr.bf16.mxu0 0
      %1263 = vmatpush1.bf16.msra.mxu0 0
      %1264 = vmatprep.subr.bf16.mxu0 0
      %1265 = vmatpush1.bf16.msra.mxu0 0
      %1266 = vmatprep.subr.bf16.mxu0 0
      %1267 = vmatpush1.bf16.msra.mxu0 0
      %1268 = vmatprep.subr.bf16.mxu0 0
      %1269 = vmatpush1.bf16.msra.mxu0 0
      %1270 = vmatprep.subr.bf16.mxu0 0
      %1271 = vmatpush1.bf16.msra.mxu0 0
      %1272 = vmatprep.subr.bf16.mxu0 0
      %1273 = vmatpush1.bf16.msra.mxu0 0
      %1274 = vmatprep.subr.bf16.mxu0 0
      %1275 = vmatpush1.bf16.msra.mxu0 0
      %1276 = vmatprep.mubr.bf16.mxu0 0
      %1277 = vmatmul.mubr.bf16.gmra.mrb[0].mxu0 %v1242
      %v1278 = vpop.f32.mrb[0].mxu0
      %v1279 = vadd.f32 %v1230, %v1278
      %v1280 = vpop.f32.mrb[0].mxu0
      %v1281 = vpop.f32.mrb[0].mxu0
      %v1282 = vpop.f32.mrb[0].mxu0
      %1283 = vdwg.mxu0
      %s1284 = scalar_lea.vmem %s3, 64
      %v1285 = vld [vmem:[%s1284] sm:$0xf]
      %v1286 = vld [vmem:[%s1284 + $0x4] sm:$0xf]
      %v1287 = vld [vmem:[%s1284 + $0x8] sm:$0xf]
      %v1288 = vld [vmem:[%s1284 + $0xc] sm:$0xf]
      %v1289 = vld [vmem:[%s1284 + $0x10] sm:$0xf]
      %v1290 = vld [vmem:[%s1284 + $0x14] sm:$0xf]
      %v1291 = vld [vmem:[%s1284 + $0x18] sm:$0xf]
      %v1292 = vld [vmem:[%s1284 + $0x1c] sm:$0xf]
      %s1293 = scalar_lea.vmem %s6, 2
      %v1294 = vld [vmem:[%s1293] sm:$0x1]
      %v1296 = vlaneseq
      %v1297 = vshrl.u32 %v1296, 7
      %v1298 = vsub.s32 0, %v1297
      %v1299 = vrot.slane %v1294, %v1298
      %v1309 = vunpack.c.l.b16 %v1285
      %v1310 = vunpack.c.l.b16 %v1286
      %v1311 = vunpack.c.l.b16 %v1287
      %v1312 = vunpack.c.l.b16 %v1288
      %v1313 = vunpack.c.l.b16 %v1289
      %v1314 = vunpack.c.l.b16 %v1290
      %v1315 = vunpack.c.l.b16 %v1291
      %v1316 = vunpack.c.l.b16 %v1292
      %v1317 = vpack.c.b16 %v1310, %v1309
      %v1318 = vpack.c.b16 %v1312, %v1311
      %v1319 = vpack.c.b16 %v1314, %v1313
      %v1320 = vpack.c.b16 %v1316, %v1315
      %1325 = vmatprep.subr.bf16.mxu0 0
      %1326 = vmatpush1.bf16.msra.mxu0 %v1317
      %1327 = vmatprep.subr.bf16.mxu0 0
      %1328 = vmatpush1.bf16.msra.mxu0 %v1318
      %1329 = vmatprep.subr.bf16.mxu0 0
      %1330 = vmatpush1.bf16.msra.mxu0 %v1319
      %1331 = vmatprep.subr.bf16.mxu0 0
      %1332 = vmatpush1.bf16.msra.mxu0 %v1320
      %1333 = vmatprep.subr.bf16.mxu0 0
      %1334 = vmatpush1.bf16.msra.mxu0 0
      %1335 = vmatprep.subr.bf16.mxu0 0
      %1336 = vmatpush1.bf16.msra.mxu0 0
      %1337 = vmatprep.subr.bf16.mxu0 0
      %1338 = vmatpush1.bf16.msra.mxu0 0
      %1339 = vmatprep.subr.bf16.mxu0 0
      %1340 = vmatpush1.bf16.msra.mxu0 0
      %1341 = vmatprep.subr.bf16.mxu0 0
      %1342 = vmatpush1.bf16.msra.mxu0 0
      %1343 = vmatprep.subr.bf16.mxu0 0
      %1344 = vmatpush1.bf16.msra.mxu0 0
      %1345 = vmatprep.subr.bf16.mxu0 0
      %1346 = vmatpush1.bf16.msra.mxu0 0
      %1347 = vmatprep.subr.bf16.mxu0 0
      %1348 = vmatpush1.bf16.msra.mxu0 0
      %1349 = vmatprep.subr.bf16.mxu0 0
      %1350 = vmatpush1.bf16.msra.mxu0 0
      %1351 = vmatprep.subr.bf16.mxu0 0
      %1352 = vmatpush1.bf16.msra.mxu0 0
      %1353 = vmatprep.subr.bf16.mxu0 0
      %1354 = vmatpush1.bf16.msra.mxu0 0
      %1355 = vmatprep.subr.bf16.mxu0 0
      %1356 = vmatpush1.bf16.msra.mxu0 0
      %1357 = vmatprep.mubr.bf16.mxu0 0
      %1358 = vmatmul.mubr.bf16.gmra.mrb[0].mxu0 %v457
      %v1359 = vpop.f32.mrb[0].mxu0
      %v1360 = vadd.f32 %v1299, %v1359
      %v1361 = vpop.f32.mrb[0].mxu0
      %v1362 = vpop.f32.mrb[0].mxu0
      %v1363 = vpop.f32.mrb[0].mxu0
      %1364 = vdwg.mxu0
      %s1365 = scalar_lea.vmem %s4, 64
      %v1366 = vld [vmem:[%s1365] sm:$0xf]
      %v1367 = vld [vmem:[%s1365 + $0x4] sm:$0xf]
      %v1368 = vld [vmem:[%s1365 + $0x8] sm:$0xf]
      %v1369 = vld [vmem:[%s1365 + $0xc] sm:$0xf]
      %v1370 = vld [vmem:[%s1365 + $0x10] sm:$0xf]
      %v1371 = vld [vmem:[%s1365 + $0x14] sm:$0xf]
      %v1372 = vld [vmem:[%s1365 + $0x18] sm:$0xf]
      %v1373 = vld [vmem:[%s1365 + $0x1c] sm:$0xf]
      %s1374 = scalar_lea.vmem %s7, 2
      %v1375 = vld [vmem:[%s1374] sm:$0x1]
      %v1377 = vlaneseq
      %v1378 = vshrl.u32 %v1377, 7
      %v1379 = vsub.s32 0, %v1378
      %v1380 = vrot.slane %v1375, %v1379
      %v1390 = vunpack.c.l.b16 %v1366
      %v1391 = vunpack.c.l.b16 %v1367
      %v1392 = vunpack.c.l.b16 %v1368
      %v1393 = vunpack.c.l.b16 %v1369
      %v1394 = vunpack.c.l.b16 %v1370
      %v1395 = vunpack.c.l.b16 %v1371
      %v1396 = vunpack.c.l.b16 %v1372
      %v1397 = vunpack.c.l.b16 %v1373
      %v1398 = vpack.c.b16 %v1391, %v1390
      %v1399 = vpack.c.b16 %v1393, %v1392
      %v1400 = vpack.c.b16 %v1395, %v1394
      %v1401 = vpack.c.b16 %v1397, %v1396
      %1406 = vmatprep.subr.bf16.mxu0 0
      %1407 = vmatpush1.bf16.msra.mxu0 %v1398
      %1408 = vmatprep.subr.bf16.mxu0 0
      %1409 = vmatpush1.bf16.msra.mxu0 %v1399
      %1410 = vmatprep.subr.bf16.mxu0 0
      %1411 = vmatpush1.bf16.msra.mxu0 %v1400
      %1412 = vmatprep.subr.bf16.mxu0 0
      %1413 = vmatpush1.bf16.msra.mxu0 %v1401
      %1414 = vmatprep.subr.bf16.mxu0 0
      %1415 = vmatpush1.bf16.msra.mxu0 0
      %1416 = vmatprep.subr.bf16.mxu0 0
      %1417 = vmatpush1.bf16.msra.mxu0 0
      %1418 = vmatprep.subr.bf16.mxu0 0
      %1419 = vmatpush1.bf16.msra.mxu0 0
      %1420 = vmatprep.subr.bf16.mxu0 0
      %1421 = vmatpush1.bf16.msra.mxu0 0
      %1422 = vmatprep.subr.bf16.mxu0 0
      %1423 = vmatpush1.bf16.msra.mxu0 0
      %1424 = vmatprep.subr.bf16.mxu0 0
      %1425 = vmatpush1.bf16.msra.mxu0 0
      %1426 = vmatprep.subr.bf16.mxu0 0
      %1427 = vmatpush1.bf16.msra.mxu0 0
      %1428 = vmatprep.subr.bf16.mxu0 0
      %1429 = vmatpush1.bf16.msra.mxu0 0
      %1430 = vmatprep.subr.bf16.mxu0 0
      %1431 = vmatpush1.bf16.msra.mxu0 0
      %1432 = vmatprep.subr.bf16.mxu0 0
      %1433 = vmatpush1.bf16.msra.mxu0 0
      %1434 = vmatprep.subr.bf16.mxu0 0
      %1435 = vmatpush1.bf16.msra.mxu0 0
      %1436 = vmatprep.subr.bf16.mxu0 0
      %1437 = vmatpush1.bf16.msra.mxu0 0
      %1438 = vmatprep.mubr.bf16.mxu0 0
      %1439 = vmatmul.mubr.bf16.gmra.mrb[0].mxu0 %v457
      %v1440 = vpop.f32.mrb[0].mxu0
      %v1441 = vadd.f32 %v1380, %v1440
      %v1442 = vpop.f32.mrb[0].mxu0
      %v1443 = vpop.f32.mrb[0].mxu0
      %v1444 = vpop.f32.mrb[0].mxu0
      %1445 = vdwg.mxu0
      %s1446 = scalar_lea.vmem %s5, 64
      %v1447 = vld [vmem:[%s1446] sm:$0xf]
      %v1448 = vld [vmem:[%s1446 + $0x4] sm:$0xf]
      %v1449 = vld [vmem:[%s1446 + $0x8] sm:$0xf]
      %v1450 = vld [vmem:[%s1446 + $0xc] sm:$0xf]
      %v1451 = vld [vmem:[%s1446 + $0x10] sm:$0xf]
      %v1452 = vld [vmem:[%s1446 + $0x14] sm:$0xf]
      %v1453 = vld [vmem:[%s1446 + $0x18] sm:$0xf]
      %v1454 = vld [vmem:[%s1446 + $0x1c] sm:$0xf]
      %s1455 = scalar_lea.vmem %s8, 2
      %v1456 = vld [vmem:[%s1455] sm:$0x1]
      %v1458 = vlaneseq
      %v1459 = vshrl.u32 %v1458, 7
      %v1460 = vsub.s32 0, %v1459
      %v1461 = vrot.slane %v1456, %v1460
      %v1471 = vunpack.c.l.b16 %v1447
      %v1472 = vunpack.c.l.b16 %v1448
      %v1473 = vunpack.c.l.b16 %v1449
      %v1474 = vunpack.c.l.b16 %v1450
      %v1475 = vunpack.c.l.b16 %v1451
      %v1476 = vunpack.c.l.b16 %v1452
      %v1477 = vunpack.c.l.b16 %v1453
      %v1478 = vunpack.c.l.b16 %v1454
      %v1479 = vpack.c.b16 %v1472, %v1471
      %v1480 = vpack.c.b16 %v1474, %v1473
      %v1481 = vpack.c.b16 %v1476, %v1475
      %v1482 = vpack.c.b16 %v1478, %v1477
      %1487 = vmatprep.subr.bf16.mxu0 0
      %1488 = vmatpush1.bf16.msra.mxu0 %v1479
      %1489 = vmatprep.subr.bf16.mxu0 0
      %1490 = vmatpush1.bf16.msra.mxu0 %v1480
      %1491 = vmatprep.subr.bf16.mxu0 0
      %1492 = vmatpush1.bf16.msra.mxu0 %v1481
      %1493 = vmatprep.subr.bf16.mxu0 0
      %1494 = vmatpush1.bf16.msra.mxu0 %v1482
      %1495 = vmatprep.subr.bf16.mxu0 0
      %1496 = vmatpush1.bf16.msra.mxu0 0
      %1497 = vmatprep.subr.bf16.mxu0 0
      %1498 = vmatpush1.bf16.msra.mxu0 0
      %1499 = vmatprep.subr.bf16.mxu0 0
      %1500 = vmatpush1.bf16.msra.mxu0 0
      %1501 = vmatprep.subr.bf16.mxu0 0
      %1502 = vmatpush1.bf16.msra.mxu0 0
      %1503 = vmatprep.subr.bf16.mxu0 0
      %1504 = vmatpush1.bf16.msra.mxu0 0
      %1505 = vmatprep.subr.bf16.mxu0 0
      %1506 = vmatpush1.bf16.msra.mxu0 0
      %1507 = vmatprep.subr.bf16.mxu0 0
      %1508 = vmatpush1.bf16.msra.mxu0 0
      %1509 = vmatprep.subr.bf16.mxu0 0
      %1510 = vmatpush1.bf16.msra.mxu0 0
      %1511 = vmatprep.subr.bf16.mxu0 0
      %1512 = vmatpush1.bf16.msra.mxu0 0
      %1513 = vmatprep.subr.bf16.mxu0 0
      %1514 = vmatpush1.bf16.msra.mxu0 0
      %1515 = vmatprep.subr.bf16.mxu0 0
      %1516 = vmatpush1.bf16.msra.mxu0 0
      %1517 = vmatprep.subr.bf16.mxu0 0
      %1518 = vmatpush1.bf16.msra.mxu0 0
      %1519 = vmatprep.mubr.bf16.mxu0 0
      %1520 = vmatmul.mubr.bf16.gmra.mrb[0].mxu0 %v457
      %v1521 = vpop.f32.mrb[0].mxu0
      %v1522 = vadd.f32 %v1461, %v1521
      %v1523 = vpop.f32.mrb[0].mxu0
      %v1524 = vpop.f32.mrb[0].mxu0
      %v1525 = vpop.f32.mrb[0].mxu0
      %1526 = vdwg.mxu0
      %v1528 = vsel %vm657, %v1360, 0
      %v1531 = vsel %vm657, %v1441, 0
      %1533 = vmatprep.subr.mxu0 0.0
      %1534 = vmatpush1.xpose.msra.mxu0 %v1531
      %1535 = vmatprep.subr.mxu0 0.0
      %1536 = vmatpush1.xpose.msra.mxu0 0.0
      %1537 = vmatprep.subr.mxu0 0.0
      %1538 = vmatpush1.xpose.msra.mxu0 0.0
      %1539 = vmatprep.subr.mxu0 0.0
      %1540 = vmatpush1.xpose.msra.mxu0 0.0
      %1541 = vmatprep.subr.mxu0 0.0
      %1542 = vmatpush1.xpose.msra.mxu0 0.0
      %1543 = vmatprep.subr.mxu0 0.0
      %1544 = vmatpush1.xpose.msra.mxu0 0.0
      %1545 = vmatprep.subr.mxu0 0.0
      %1546 = vmatpush1.xpose.msra.mxu0 0.0
      %1547 = vmatprep.subr.mxu0 0.0
      %1548 = vmatpush1.xpose.msra.mxu0 0.0
      %1549 = vmatprep.subr.mxu0 0.0
      %1550 = vmatpush1.xpose.msra.mxu0 0.0
      %1551 = vmatprep.subr.mxu0 0.0
      %1552 = vmatpush1.xpose.msra.mxu0 0.0
      %1553 = vmatprep.subr.mxu0 0.0
      %1554 = vmatpush1.xpose.msra.mxu0 0.0
      %1555 = vmatprep.subr.mxu0 0.0
      %1556 = vmatpush1.xpose.msra.mxu0 0.0
      %1557 = vmatprep.subr.mxu0 0.0
      %1558 = vmatpush1.xpose.msra.mxu0 0.0
      %1559 = vmatprep.subr.mxu0 0.0
      %1560 = vmatpush1.xpose.msra.mxu0 0.0
      %1561 = vmatprep.subr.mxu0 0.0
      %1562 = vmatpush1.xpose.msra.mxu0 0.0
      %1563 = vmatprep.subr.mxu0 0.0
      %1564 = vmatpush1.xpose.msra.mxu0 0.0
      %1565 = vmatprep.subr.mxu0 0.0
      %1566 = vmatpush1.xpose.msra.mxu0 0.0
      %1567 = vmatprep.subr.mxu0 0.0
      %1568 = vmatpush1.xpose.msra.mxu0 0.0
      %1569 = vmatprep.subr.mxu0 0.0
      %1570 = vmatpush1.xpose.msra.mxu0 0.0
      %1571 = vmatprep.subr.mxu0 0.0
      %1572 = vmatpush1.xpose.msra.mxu0 0.0
      %1573 = vmatprep.subr.mxu0 0.0
      %1574 = vmatpush1.xpose.msra.mxu0 0.0
      %1575 = vmatprep.subr.mxu0 0.0
      %1576 = vmatpush1.xpose.msra.mxu0 0.0
      %1577 = vmatprep.subr.mxu0 0.0
      %1578 = vmatpush1.xpose.msra.mxu0 0.0
      %1579 = vmatprep.subr.mxu0 0.0
      %1580 = vmatpush1.xpose.msra.mxu0 0.0
      %1581 = vmatprep.subr.mxu0 0.0
      %1582 = vmatpush1.xpose.msra.mxu0 0.0
      %1583 = vmatprep.subr.mxu0 0.0
      %1584 = vmatpush1.xpose.msra.mxu0 0.0
      %1585 = vmatprep.subr.mxu0 0.0
      %1586 = vmatpush1.xpose.msra.mxu0 0.0
      %1587 = vmatprep.subr.mxu0 0.0
      %1588 = vmatpush1.xpose.msra.mxu0 0.0
      %1589 = vmatprep.subr.mxu0 0.0
      %1590 = vmatpush1.xpose.msra.mxu0 0.0
      %1591 = vmatprep.subr.mxu0 0.0
      %1592 = vmatpush1.xpose.msra.mxu0 0.0
      %1593 = vmatprep.subr.mxu0 0.0
      %1594 = vmatpush1.xpose.msra.mxu0 0.0
      %1595 = vmatprep.subr.mxu0 0.0
      %1596 = vmatpush1.xpose.msra.mxu0 0.0
      %1597 = vmatprep.mubr.f32.mxu0 0.0
      %1598 = vmatmul.mubr.f32.gmra.mrb[0].mxu0 %v1528
      %v1599 = vpop.f32.mrb[0].mxu0
      %v1600 = vadd.f32 0.0, %v1599
      %v1601 = vpop.f32.mrb[0].mxu0
      %1602 = vdwg.mxu0
      %v1603 = vmul.f32 %v1600, 0.25
      %v1604 = vsel %vm735, %v1603, -inf
      %1605 = vmax.xlane.f32.xlu0 %v1604
      %v1606 = vpop.xlane.xlu0 %1605
      %v1607 = vsub.f32 %v1603, %v1606
      %v1608 = vmul.f32 %v1607, 1.442695
      %v1609 = vpow.pop %v1608
      %v1610 = vsel %vm735, %v1609, 0.0
      %1611 = vadd.xlane.f32.xlu0 %v1610
      %v1612 = vpop.xlane.xlu0 %1611
      %v1613 = vrcp.pop %v1612
      %v1614 = vmul.f32 %v1609, %v1613
      %v1615 = vpack.c.bf16 %v1614, %v1614
      %v1616 = vpack.c.bf16 %v1522, %v1522
      %v1618 = vsel %vm749, %v1615, 0
      %v1621 = vand.u32 %v1616, %v756
      %1623 = vmatprep.subr.bf16.mxu0 0
      %1624 = vmatpush1.bf16.msra.mxu0 %v1621
      %1625 = vmatprep.subr.bf16.mxu0 0
      %1626 = vmatpush1.bf16.msra.mxu0 0
      %1627 = vmatprep.subr.bf16.mxu0 0
      %1628 = vmatpush1.bf16.msra.mxu0 0
      %1629 = vmatprep.subr.bf16.mxu0 0
      %1630 = vmatpush1.bf16.msra.mxu0 0
      %1631 = vmatprep.subr.bf16.mxu0 0
      %1632 = vmatpush1.bf16.msra.mxu0 0
      %1633 = vmatprep.subr.bf16.mxu0 0
      %1634 = vmatpush1.bf16.msra.mxu0 0
      %1635 = vmatprep.subr.bf16.mxu0 0
      %1636 = vmatpush1.bf16.msra.mxu0 0
      %1637 = vmatprep.subr.bf16.mxu0 0
      %1638 = vmatpush1.bf16.msra.mxu0 0
      %1639 = vmatprep.subr.bf16.mxu0 0
      %1640 = vmatpush1.bf16.msra.mxu0 0
      %1641 = vmatprep.subr.bf16.mxu0 0
      %1642 = vmatpush1.bf16.msra.mxu0 0
      %1643 = vmatprep.subr.bf16.mxu0 0
      %1644 = vmatpush1.bf16.msra.mxu0 0
      %1645 = vmatprep.subr.bf16.mxu0 0
      %1646 = vmatpush1.bf16.msra.mxu0 0
      %1647 = vmatprep.subr.bf16.mxu0 0
      %1648 = vmatpush1.bf16.msra.mxu0 0
      %1649 = vmatprep.subr.bf16.mxu0 0
      %1650 = vmatpush1.bf16.msra.mxu0 0
      %1651 = vmatprep.subr.bf16.mxu0 0
      %1652 = vmatpush1.bf16.msra.mxu0 0
      %1653 = vmatprep.subr.bf16.mxu0 0
      %1654 = vmatpush1.bf16.msra.mxu0 0
      %1655 = vmatprep.mubr.bf16.mxu0 0
      %1656 = vmatmul.mubr.bf16.gmra.mrb[0].mxu0 %v1618
      %v1657 = vpop.f32.mrb[0].mxu0
      %v1658 = vadd.f32 0.0, %v1657
      %v1659 = vpop.f32.mrb[0].mxu0
      %v1660 = vpop.f32.mrb[0].mxu0
      %v1661 = vpop.f32.mrb[0].mxu0
      %1662 = vdwg.mxu0
      %v1663 = vpack.c.bf16 %v1658, %v1658
      %s1664 = scalar_lea.vmem %s9, 16
      %v1665 = vld [vmem:[%s1664] sm:$0xf]
      %v1666 = vld [vmem:[%s1664 + $0x4] sm:$0xf]
      %v1669 = vunpack.c.l.b16 %v1665
      %v1670 = vunpack.c.l.b16 %v1666
      %v1671 = vpack.c.b16 %v1670, %v1669
      %v1674 = vsel %vm657, %v1663, 0
      %1676 = vmatprep.subr.bf16.mxu0 0
      %1677 = vmatpush1.bf16.msra.mxu0 %v1671
      %1678 = vmatprep.subr.bf16.mxu0 0
      %1679 = vmatpush1.bf16.msra.mxu0 0
      %1680 = vmatprep.subr.bf16.mxu0 0
      %1681 = vmatpush1.bf16.msra.mxu0 0
      %1682 = vmatprep.subr.bf16.mxu0 0
      %1683 = vmatpush1.bf16.msra.mxu0 0
      %1684 = vmatprep.subr.bf16.mxu0 0
      %1685 = vmatpush1.bf16.msra.mxu0 0
      %1686 = vmatprep.subr.bf16.mxu0 0
      %1687 = vmatpush1.bf16.msra.mxu0 0
      %1688 = vmatprep.subr.bf16.mxu0 0
      %1689 = vmatpush1.bf16.msra.mxu0 0
      %1690 = vmatprep.subr.bf16.mxu0 0
      %1691 = vmatpush1.bf16.msra.mxu0 0
      %1692 = vmatprep.subr.bf16.mxu0 0
      %1693 = vmatpush1.bf16.msra.mxu0 0
      %1694 = vmatprep.subr.bf16.mxu0 0
      %1695 = vmatpush1.bf16.msra.mxu0 0
      %1696 = vmatprep.subr.bf16.mxu0 0
      %1697 = vmatpush1.bf16.msra.mxu0 0
      %1698 = vmatprep.subr.bf16.mxu0 0
      %1699 = vmatpush1.bf16.msra.mxu0 0
      %1700 = vmatprep.subr.bf16.mxu0 0
      %1701 = vmatpush1.bf16.msra.mxu0 0
      %1702 = vmatprep.subr.bf16.mxu0 0
      %1703 = vmatpush1.bf16.msra.mxu0 0
      %1704 = vmatprep.subr.bf16.mxu0 0
      %1705 = vmatpush1.bf16.msra.mxu0 0
      %1706 = vmatprep.subr.bf16.mxu0 0
      %1707 = vmatpush1.bf16.msra.mxu0 0
      %1708 = vmatprep.mubr.bf16.mxu0 0
      %1709 = vmatmul.mubr.bf16.gmra.mrb[0].mxu0 %v1674
      %v1710 = vpop.f32.mrb[0].mxu0
      %v1711 = vadd.f32 0.0, %v1710
      %v1712 = vpop.f32.mrb[0].mxu0
      %v1713 = vpop.f32.mrb[0].mxu0
      %v1714 = vpop.f32.mrb[0].mxu0
      %1715 = vdwg.mxu0
      %v1716 = vadd.f32 %v1279, %v1711
      %s1717 = scalar_lea.vmem %s3, 96
      %v1718 = vld [vmem:[%s1717] sm:$0xf]
      %v1719 = vld [vmem:[%s1717 + $0x4] sm:$0xf]
      %v1720 = vld [vmem:[%s1717 + $0x8] sm:$0xf]
      %v1721 = vld [vmem:[%s1717 + $0xc] sm:$0xf]
      %v1722 = vld [vmem:[%s1717 + $0x10] sm:$0xf]
      %v1723 = vld [vmem:[%s1717 + $0x14] sm:$0xf]
      %v1724 = vld [vmem:[%s1717 + $0x18] sm:$0xf]
      %v1725 = vld [vmem:[%s1717 + $0x1c] sm:$0xf]
      %s1726 = scalar_lea.vmem %s6, 3
      %v1727 = vld [vmem:[%s1726] sm:$0x1]
      %v1729 = vlaneseq
      %v1730 = vshrl.u32 %v1729, 7
      %v1731 = vsub.s32 0, %v1730
      %v1732 = vrot.slane %v1727, %v1731
      %v1742 = vunpack.c.l.b16 %v1718
      %v1743 = vunpack.c.l.b16 %v1719
      %v1744 = vunpack.c.l.b16 %v1720
      %v1745 = vunpack.c.l.b16 %v1721
      %v1746 = vunpack.c.l.b16 %v1722
      %v1747 = vunpack.c.l.b16 %v1723
      %v1748 = vunpack.c.l.b16 %v1724
      %v1749 = vunpack.c.l.b16 %v1725
      %v1750 = vpack.c.b16 %v1743, %v1742
      %v1751 = vpack.c.b16 %v1745, %v1744
      %v1752 = vpack.c.b16 %v1747, %v1746
      %v1753 = vpack.c.b16 %v1749, %v1748
      %1758 = vmatprep.subr.bf16.mxu0 0
      %1759 = vmatpush1.bf16.msra.mxu0 %v1750
      %1760 = vmatprep.subr.bf16.mxu0 0
      %1761 = vmatpush1.bf16.msra.mxu0 %v1751
      %1762 = vmatprep.subr.bf16.mxu0 0
      %1763 = vmatpush1.bf16.msra.mxu0 %v1752
      %1764 = vmatprep.subr.bf16.mxu0 0
      %1765 = vmatpush1.bf16.msra.mxu0 %v1753
      %1766 = vmatprep.subr.bf16.mxu0 0
      %1767 = vmatpush1.bf16.msra.mxu0 0
      %1768 = vmatprep.subr.bf16.mxu0 0
      %1769 = vmatpush1.bf16.msra.mxu0 0
      %1770 = vmatprep.subr.bf16.mxu0 0
      %1771 = vmatpush1.bf16.msra.mxu0 0
      %1772 = vmatprep.subr.bf16.mxu0 0
      %1773 = vmatpush1.bf16.msra.mxu0 0
      %1774 = vmatprep.subr.bf16.mxu0 0
      %1775 = vmatpush1.bf16.msra.mxu0 0
      %1776 = vmatprep.subr.bf16.mxu0 0
      %1777 = vmatpush1.bf16.msra.mxu0 0
      %1778 = vmatprep.subr.bf16.mxu0 0
      %1779 = vmatpush1.bf16.msra.mxu0 0
      %1780 = vmatprep.subr.bf16.mxu0 0
      %1781 = vmatpush1.bf16.msra.mxu0 0
      %1782 = vmatprep.subr.bf16.mxu0 0
      %1783 = vmatpush1.bf16.msra.mxu0 0
      %1784 = vmatprep.subr.bf16.mxu0 0
      %1785 = vmatpush1.bf16.msra.mxu0 0
      %1786 = vmatprep.subr.bf16.mxu0 0
      %1787 = vmatpush1.bf16.msra.mxu0 0
      %1788 = vmatprep.subr.bf16.mxu0 0
      %1789 = vmatpush1.bf16.msra.mxu0 0
      %1790 = vmatprep.mubr.bf16.mxu0 0
      %1791 = vmatmul.mubr.bf16.gmra.mrb[0].mxu0 %v457
      %v1792 = vpop.f32.mrb[0].mxu0
      %v1793 = vadd.f32 %v1732, %v1792
      %v1794 = vpop.f32.mrb[0].mxu0
      %v1795 = vpop.f32.mrb[0].mxu0
      %v1796 = vpop.f32.mrb[0].mxu0
      %1797 = vdwg.mxu0
      %s1798 = scalar_lea.vmem %s4, 96
      %v1799 = vld [vmem:[%s1798] sm:$0xf]
      %v1800 = vld [vmem:[%s1798 + $0x4] sm:$0xf]
      %v1801 = vld [vmem:[%s1798 + $0x8] sm:$0xf]
      %v1802 = vld [vmem:[%s1798 + $0xc] sm:$0xf]
      %v1803 = vld [vmem:[%s1798 + $0x10] sm:$0xf]
      %v1804 = vld [vmem:[%s1798 + $0x14] sm:$0xf]
      %v1805 = vld [vmem:[%s1798 + $0x18] sm:$0xf]
      %v1806 = vld [vmem:[%s1798 + $0x1c] sm:$0xf]
      %s1807 = scalar_lea.vmem %s7, 3
      %v1808 = vld [vmem:[%s1807] sm:$0x1]
      %v1810 = vlaneseq
      %v1811 = vshrl.u32 %v1810, 7
      %v1812 = vsub.s32 0, %v1811
      %v1813 = vrot.slane %v1808, %v1812
      %v1823 = vunpack.c.l.b16 %v1799
      %v1824 = vunpack.c.l.b16 %v1800
      %v1825 = vunpack.c.l.b16 %v1801
      %v1826 = vunpack.c.l.b16 %v1802
      %v1827 = vunpack.c.l.b16 %v1803
      %v1828 = vunpack.c.l.b16 %v1804
      %v1829 = vunpack.c.l.b16 %v1805
      %v1830 = vunpack.c.l.b16 %v1806
      %v1831 = vpack.c.b16 %v1824, %v1823
      %v1832 = vpack.c.b16 %v1826, %v1825
      %v1833 = vpack.c.b16 %v1828, %v1827
      %v1834 = vpack.c.b16 %v1830, %v1829
      %1839 = vmatprep.subr.bf16.mxu0 0
      %1840 = vmatpush1.bf16.msra.mxu0 %v1831
      %1841 = vmatprep.subr.bf16.mxu0 0
      %1842 = vmatpush1.bf16.msra.mxu0 %v1832
      %1843 = vmatprep.subr.bf16.mxu0 0
      %1844 = vmatpush1.bf16.msra.mxu0 %v1833
      %1845 = vmatprep.subr.bf16.mxu0 0
      %1846 = vmatpush1.bf16.msra.mxu0 %v1834
      %1847 = vmatprep.subr.bf16.mxu0 0
      %1848 = vmatpush1.bf16.msra.mxu0 0
      %1849 = vmatprep.subr.bf16.mxu0 0
      %1850 = vmatpush1.bf16.msra.mxu0 0
      %1851 = vmatprep.subr.bf16.mxu0 0
      %1852 = vmatpush1.bf16.msra.mxu0 0
      %1853 = vmatprep.subr.bf16.mxu0 0
      %1854 = vmatpush1.bf16.msra.mxu0 0
      %1855 = vmatprep.subr.bf16.mxu0 0
      %1856 = vmatpush1.bf16.msra.mxu0 0
      %1857 = vmatprep.subr.bf16.mxu0 0
      %1858 = vmatpush1.bf16.msra.mxu0 0
      %1859 = vmatprep.subr.bf16.mxu0 0
      %1860 = vmatpush1.bf16.msra.mxu0 0
      %1861 = vmatprep.subr.bf16.mxu0 0
      %1862 = vmatpush1.bf16.msra.mxu0 0
      %1863 = vmatprep.subr.bf16.mxu0 0
      %1864 = vmatpush1.bf16.msra.mxu0 0
      %1865 = vmatprep.subr.bf16.mxu0 0
      %1866 = vmatpush1.bf16.msra.mxu0 0
      %1867 = vmatprep.subr.bf16.mxu0 0
      %1868 = vmatpush1.bf16.msra.mxu0 0
      %1869 = vmatprep.subr.bf16.mxu0 0
      %1870 = vmatpush1.bf16.msra.mxu0 0
      %1871 = vmatprep.mubr.bf16.mxu0 0
      %1872 = vmatmul.mubr.bf16.gmra.mrb[0].mxu0 %v457
      %v1873 = vpop.f32.mrb[0].mxu0
      %v1874 = vadd.f32 %v1813, %v1873
      %v1875 = vpop.f32.mrb[0].mxu0
      %v1876 = vpop.f32.mrb[0].mxu0
      %v1877 = vpop.f32.mrb[0].mxu0
      %1878 = vdwg.mxu0
      %s1879 = scalar_lea.vmem %s5, 96
      %v1880 = vld [vmem:[%s1879] sm:$0xf]
      %v1881 = vld [vmem:[%s1879 + $0x4] sm:$0xf]
      %v1882 = vld [vmem:[%s1879 + $0x8] sm:$0xf]
      %v1883 = vld [vmem:[%s1879 + $0xc] sm:$0xf]
      %v1884 = vld [vmem:[%s1879 + $0x10] sm:$0xf]
      %v1885 = vld [vmem:[%s1879 + $0x14] sm:$0xf]
      %v1886 = vld [vmem:[%s1879 + $0x18] sm:$0xf]
      %v1887 = vld [vmem:[%s1879 + $0x1c] sm:$0xf]
      %s1888 = scalar_lea.vmem %s8, 3
      %v1889 = vld [vmem:[%s1888] sm:$0x1]
      %v1891 = vlaneseq
      %v1892 = vshrl.u32 %v1891, 7
      %v1893 = vsub.s32 0, %v1892
      %v1894 = vrot.slane %v1889, %v1893
      %v1904 = vunpack.c.l.b16 %v1880
      %v1905 = vunpack.c.l.b16 %v1881
      %v1906 = vunpack.c.l.b16 %v1882
      %v1907 = vunpack.c.l.b16 %v1883
      %v1908 = vunpack.c.l.b16 %v1884
      %v1909 = vunpack.c.l.b16 %v1885
      %v1910 = vunpack.c.l.b16 %v1886
      %v1911 = vunpack.c.l.b16 %v1887
      %v1912 = vpack.c.b16 %v1905, %v1904
      %v1913 = vpack.c.b16 %v1907, %v1906
      %v1914 = vpack.c.b16 %v1909, %v1908
      %v1915 = vpack.c.b16 %v1911, %v1910
      %1920 = vmatprep.subr.bf16.mxu0 0
      %1921 = vmatpush1.bf16.msra.mxu0 %v1912
      %1922 = vmatprep.subr.bf16.mxu0 0
      %1923 = vmatpush1.bf16.msra.mxu0 %v1913
      %1924 = vmatprep.subr.bf16.mxu0 0
      %1925 = vmatpush1.bf16.msra.mxu0 %v1914
      %1926 = vmatprep.subr.bf16.mxu0 0
      %1927 = vmatpush1.bf16.msra.mxu0 %v1915
      %1928 = vmatprep.subr.bf16.mxu0 0
      %1929 = vmatpush1.bf16.msra.mxu0 0
      %1930 = vmatprep.subr.bf16.mxu0 0
      %1931 = vmatpush1.bf16.msra.mxu0 0
      %1932 = vmatprep.subr.bf16.mxu0 0
      %1933 = vmatpush1.bf16.msra.mxu0 0
      %1934 = vmatprep.subr.bf16.mxu0 0
      %1935 = vmatpush1.bf16.msra.mxu0 0
      %1936 = vmatprep.subr.bf16.mxu0 0
      %1937 = vmatpush1.bf16.msra.mxu0 0
      %1938 = vmatprep.subr.bf16.mxu0 0
      %1939 = vmatpush1.bf16.msra.mxu0 0
      %1940 = vmatprep.subr.bf16.mxu0 0
      %1941 = vmatpush1.bf16.msra.mxu0 0
      %1942 = vmatprep.subr.bf16.mxu0 0
      %1943 = vmatpush1.bf16.msra.mxu0 0
      %1944 = vmatprep.subr.bf16.mxu0 0
      %1945 = vmatpush1.bf16.msra.mxu0 0
      %1946 = vmatprep.subr.bf16.mxu0 0
      %1947 = vmatpush1.bf16.msra.mxu0 0
      %1948 = vmatprep.subr.bf16.mxu0 0
      %1949 = vmatpush1.bf16.msra.mxu0 0
      %1950 = vmatprep.subr.bf16.mxu0 0
      %1951 = vmatpush1.bf16.msra.mxu0 0
      %1952 = vmatprep.mubr.bf16.mxu0 0
      %1953 = vmatmul.mubr.bf16.gmra.mrb[0].mxu0 %v457
      %v1954 = vpop.f32.mrb[0].mxu0
      %v1955 = vadd.f32 %v1894, %v1954
      %v1956 = vpop.f32.mrb[0].mxu0
      %v1957 = vpop.f32.mrb[0].mxu0
      %v1958 = vpop.f32.mrb[0].mxu0
      %1959 = vdwg.mxu0
      %v1961 = vsel %vm657, %v1793, 0
      %v1964 = vsel %vm657, %v1874, 0
      %1966 = vmatprep.subr.mxu0 0.0
      %1967 = vmatpush1.xpose.msra.mxu0 %v1964
      %1968 = vmatprep.subr.mxu0 0.0
      %1969 = vmatpush1.xpose.msra.mxu0 0.0
      %1970 = vmatprep.subr.mxu0 0.0
      %1971 = vmatpush1.xpose.msra.mxu0 0.0
      %1972 = vmatprep.subr.mxu0 0.0
      %1973 = vmatpush1.xpose.msra.mxu0 0.0
      %1974 = vmatprep.subr.mxu0 0.0
      %1975 = vmatpush1.xpose.msra.mxu0 0.0
      %1976 = vmatprep.subr.mxu0 0.0
      %1977 = vmatpush1.xpose.msra.mxu0 0.0
      %1978 = vmatprep.subr.mxu0 0.0
      %1979 = vmatpush1.xpose.msra.mxu0 0.0
      %1980 = vmatprep.subr.mxu0 0.0
      %1981 = vmatpush1.xpose.msra.mxu0 0.0
      %1982 = vmatprep.subr.mxu0 0.0
      %1983 = vmatpush1.xpose.msra.mxu0 0.0
      %1984 = vmatprep.subr.mxu0 0.0
      %1985 = vmatpush1.xpose.msra.mxu0 0.0
      %1986 = vmatprep.subr.mxu0 0.0
      %1987 = vmatpush1.xpose.msra.mxu0 0.0
      %1988 = vmatprep.subr.mxu0 0.0
      %1989 = vmatpush1.xpose.msra.mxu0 0.0
      %1990 = vmatprep.subr.mxu0 0.0
      %1991 = vmatpush1.xpose.msra.mxu0 0.0
      %1992 = vmatprep.subr.mxu0 0.0
      %1993 = vmatpush1.xpose.msra.mxu0 0.0
      %1994 = vmatprep.subr.mxu0 0.0
      %1995 = vmatpush1.xpose.msra.mxu0 0.0
      %1996 = vmatprep.subr.mxu0 0.0
      %1997 = vmatpush1.xpose.msra.mxu0 0.0
      %1998 = vmatprep.subr.mxu0 0.0
      %1999 = vmatpush1.xpose.msra.mxu0 0.0
      %2000 = vmatprep.subr.mxu0 0.0
      %2001 = vmatpush1.xpose.msra.mxu0 0.0
      %2002 = vmatprep.subr.mxu0 0.0
      %2003 = vmatpush1.xpose.msra.mxu0 0.0
      %2004 = vmatprep.subr.mxu0 0.0
      %2005 = vmatpush1.xpose.msra.mxu0 0.0
      %2006 = vmatprep.subr.mxu0 0.0
      %2007 = vmatpush1.xpose.msra.mxu0 0.0
      %2008 = vmatprep.subr.mxu0 0.0
      %2009 = vmatpush1.xpose.msra.mxu0 0.0
      %2010 = vmatprep.subr.mxu0 0.0
      %2011 = vmatpush1.xpose.msra.mxu0 0.0
      %2012 = vmatprep.subr.mxu0 0.0
      %2013 = vmatpush1.xpose.msra.mxu0 0.0
      %2014 = vmatprep.subr.mxu0 0.0
      %2015 = vmatpush1.xpose.msra.mxu0 0.0
      %2016 = vmatprep.subr.mxu0 0.0
      %2017 = vmatpush1.xpose.msra.mxu0 0.0
      %2018 = vmatprep.subr.mxu0 0.0
      %2019 = vmatpush1.xpose.msra.mxu0 0.0
      %2020 = vmatprep.subr.mxu0 0.0
      %2021 = vmatpush1.xpose.msra.mxu0 0.0
      %2022 = vmatprep.subr.mxu0 0.0
      %2023 = vmatpush1.xpose.msra.mxu0 0.0
      %2024 = vmatprep.subr.mxu0 0.0
      %2025 = vmatpush1.xpose.msra.mxu0 0.0
      %2026 = vmatprep.subr.mxu0 0.0
      %2027 = vmatpush1.xpose.msra.mxu0 0.0
      %2028 = vmatprep.subr.mxu0 0.0
      %2029 = vmatpush1.xpose.msra.mxu0 0.0
      %2030 = vmatprep.mubr.f32.mxu0 0.0
      %2031 = vmatmul.mubr.f32.gmra.mrb[0].mxu0 %v1961
      %v2032 = vpop.f32.mrb[0].mxu0
      %v2033 = vadd.f32 0.0, %v2032
      %v2034 = vpop.f32.mrb[0].mxu0
      %2035 = vdwg.mxu0
      %v2036 = vmul.f32 %v2033, 0.25
      %v2037 = vsel %vm735, %v2036, -inf
      %2038 = vmax.xlane.f32.xlu0 %v2037
      %v2039 = vpop.xlane.xlu0 %2038
      %v2040 = vsub.f32 %v2036, %v2039
      %v2041 = vmul.f32 %v2040, 1.442695
      %v2042 = vpow.pop %v2041
      %v2043 = vsel %vm735, %v2042, 0.0
      %2044 = vadd.xlane.f32.xlu0 %v2043
      %v2045 = vpop.xlane.xlu0 %2044
      %v2046 = vrcp.pop %v2045
      %v2047 = vmul.f32 %v2042, %v2046
      %v2048 = vpack.c.bf16 %v2047, %v2047
      %v2049 = vpack.c.bf16 %v1955, %v1955
      %v2051 = vsel %vm749, %v2048, 0
      %v2054 = vand.u32 %v2049, %v756
      %2056 = vmatprep.subr.bf16.mxu0 0
      %2057 = vmatpush1.bf16.msra.mxu0 %v2054
      %2058 = vmatprep.subr.bf16.mxu0 0
      %2059 = vmatpush1.bf16.msra.mxu0 0
      %2060 = vmatprep.subr.bf16.mxu0 0
      %2061 = vmatpush1.bf16.msra.mxu0 0
      %2062 = vmatprep.subr.bf16.mxu0 0
      %2063 = vmatpush1.bf16.msra.mxu0 0
      %2064 = vmatprep.subr.bf16.mxu0 0
      %2065 = vmatpush1.bf16.msra.mxu0 0
      %2066 = vmatprep.subr.bf16.mxu0 0
      %2067 = vmatpush1.bf16.msra.mxu0 0
      %2068 = vmatprep.subr.bf16.mxu0 0
      %2069 = vmatpush1.bf16.msra.mxu0 0
      %2070 = vmatprep.subr.bf16.mxu0 0
      %2071 = vmatpush1.bf16.msra.mxu0 0
      %2072 = vmatprep.subr.bf16.mxu0 0
      %2073 = vmatpush1.bf16.msra.mxu0 0
      %2074 = vmatprep.subr.bf16.mxu0 0
      %2075 = vmatpush1.bf16.msra.mxu0 0
      %2076 = vmatprep.subr.bf16.mxu0 0
      %2077 = vmatpush1.bf16.msra.mxu0 0
      %2078 = vmatprep.subr.bf16.mxu0 0
      %2079 = vmatpush1.bf16.msra.mxu0 0
      %2080 = vmatprep.subr.bf16.mxu0 0
      %2081 = vmatpush1.bf16.msra.mxu0 0
      %2082 = vmatprep.subr.bf16.mxu0 0
      %2083 = vmatpush1.bf16.msra.mxu0 0
      %2084 = vmatprep.subr.bf16.mxu0 0
      %2085 = vmatpush1.bf16.msra.mxu0 0
      %2086 = vmatprep.subr.bf16.mxu0 0
      %2087 = vmatpush1.bf16.msra.mxu0 0
      %2088 = vmatprep.mubr.bf16.mxu0 0
      %2089 = vmatmul.mubr.bf16.gmra.mrb[0].mxu0 %v2051
      %v2090 = vpop.f32.mrb[0].mxu0
      %v2091 = vadd.f32 0.0, %v2090
      %v2092 = vpop.f32.mrb[0].mxu0
      %v2093 = vpop.f32.mrb[0].mxu0
      %v2094 = vpop.f32.mrb[0].mxu0
      %2095 = vdwg.mxu0
      %v2096 = vpack.c.bf16 %v2091, %v2091
      %s2097 = scalar_lea.vmem %s9, 24
      %v2098 = vld [vmem:[%s2097] sm:$0xf]
      %v2099 = vld [vmem:[%s2097 + $0x4] sm:$0xf]
      %v2102 = vunpack.c.l.b16 %v2098
      %v2103 = vunpack.c.l.b16 %v2099
      %v2104 = vpack.c.b16 %v2103, %v2102
      %v2107 = vsel %vm657, %v2096, 0
      %2109 = vmatprep.subr.bf16.mxu0 0
      %2110 = vmatpush1.bf16.msra.mxu0 %v2104
      %2111 = vmatprep.subr.bf16.mxu0 0
      %2112 = vmatpush1.bf16.msra.mxu0 0
      %2113 = vmatprep.subr.bf16.mxu0 0
      %2114 = vmatpush1.bf16.msra.mxu0 0
      %2115 = vmatprep.subr.bf16.mxu0 0
      %2116 = vmatpush1.bf16.msra.mxu0 0
      %2117 = vmatprep.subr.bf16.mxu0 0
      %2118 = vmatpush1.bf16.msra.mxu0 0
      %2119 = vmatprep.subr.bf16.mxu0 0
      %2120 = vmatpush1.bf16.msra.mxu0 0
      %2121 = vmatprep.subr.bf16.mxu0 0
      %2122 = vmatpush1.bf16.msra.mxu0 0
      %2123 = vmatprep.subr.bf16.mxu0 0
      %2124 = vmatpush1.bf16.msra.mxu0 0
      %2125 = vmatprep.subr.bf16.mxu0 0
      %2126 = vmatpush1.bf16.msra.mxu0 0
      %2127 = vmatprep.subr.bf16.mxu0 0
      %2128 = vmatpush1.bf16.msra.mxu0 0
      %2129 = vmatprep.subr.bf16.mxu0 0
      %2130 = vmatpush1.bf16.msra.mxu0 0
      %2131 = vmatprep.subr.bf16.mxu0 0
      %2132 = vmatpush1.bf16.msra.mxu0 0
      %2133 = vmatprep.subr.bf16.mxu0 0
      %2134 = vmatpush1.bf16.msra.mxu0 0
      %2135 = vmatprep.subr.bf16.mxu0 0
      %2136 = vmatpush1.bf16.msra.mxu0 0
      %2137 = vmatprep.subr.bf16.mxu0 0
      %2138 = vmatpush1.bf16.msra.mxu0 0
      %2139 = vmatprep.subr.bf16.mxu0 0
      %2140 = vmatpush1.bf16.msra.mxu0 0
      %2141 = vmatprep.mubr.bf16.mxu0 0
      %2142 = vmatmul.mubr.bf16.gmra.mrb[0].mxu0 %v2107
      %v2143 = vpop.f32.mrb[0].mxu0
      %v2144 = vadd.f32 0.0, %v2143
      %v2145 = vpop.f32.mrb[0].mxu0
      %v2146 = vpop.f32.mrb[0].mxu0
      %v2147 = vpop.f32.mrb[0].mxu0
      %2148 = vdwg.mxu0
      %v2149 = vadd.f32 %v1716, %v2144
      %v2150 = vld [vmem:[%s10] sm:$0x1]
      %v2152 = vlaneseq
      %v2153 = vshrl.u32 %v2152, 7
      %v2154 = vsub.s32 0, %v2153
      %v2155 = vrot.slane %v2150, %v2154
      %v2157 = vadd.f32 %v2149, %v2155
      %v2158 = vadd.f32 %v2157, %v383
      %2159 = vst.msk [vmem:[%s381] sm:$0x1f] %vm386, %v2158
      %p2160 = scmp.lt.s32.totalorder %s22, 1
      %s2161 = scalar_select %p2160, %s22, 1
      %s2162 = smul.addr %s2161, 8
      %s2163 = scalar_lea.vmem %s11, %s2162
      // Predicated region
      $region65: #{vit_forward.7} parent=63 // pred_check
        %p2164 = pneg %p276
      $region66: #{vit_forward.7} parent=63 // pred_check_branch
        %2166 = sbr.rel (%p2164) target = $region68
      $region67: #{vit_forward.7} parent=63 // pred_region
        _
      $region68: #{vit_forward.7} parent=63 // pred_fallthru
        _
    $region64: #{vit_forward.7} parent=5 // pred_fallthru
      _
    %p2167 = scmp.le.s32.totalorder 2, %s17
    // Predicated region
    $region69: #{vit_forward.7} parent=5 // pred_check
      %p2168 = pneg %p2167
    $region70: #{vit_forward.7} parent=5 // pred_check_branch
      %2170 = sbr.rel (%p2168) target = $region72
    $region71: #{vit_forward.7} parent=5 // pred_region
      %s2171 = ssub.s32 %s17, 2
      // Predicated region
      $region73: #{vit_forward.7} parent=71 // pred_check
        %p2172 = pneg %p282
      $region74: #{vit_forward.7} parent=71 // pred_check_branch
        %2174 = sbr.rel (%p2172) target = $region76
      $region75: #{vit_forward.7} parent=71 // pred_region
        %p2175 = scmp.lt.s32.totalorder %s23, 1
        %s2176 = scalar_select %p2175, %s23, 1
        %s2177 = smul.addr %s2176, 8
        %s2178 = scalar_lea.vmem %s11, %s2177
      $region76: #{vit_forward.7} parent=71 // pred_fallthru
        _
    $region72: #{vit_forward.7} parent=5 // pred_fallthru
      _
  $region6: #{vit_forward.7} parent=0 // loop_footer
    %s21 = sadd.s32 1, %s17
  $region7: #{vit_forward.7} parent=0 // loop_footer_branch
    %16 = sbr.rel target = $region3
  $region8: #{vit_forward.7} parent=0 // loop_exit
    _

</llo_original>
